<compile_context>
chip_gen: v7x
topology: tpu7x:2x2x1
jax: 0.10.0
libtpu: 0.0.40
codegen_flags: <defaults>
</compile_context>

<pallas_src>
import jax
import jax.numpy as jnp
from jax import lax
from jax.experimental import pallas as pl
from jax.experimental.pallas import tpu as pltpu


def _round_up(x: int, m: int) -> int:
    return ((x + m - 1) // m) * m


# ----------------------------------------------------------------------------
# Fused kernel: 27 tap matmuls + bias + LeakyReLU(0.1) for one (b, od, oh) row
# ----------------------------------------------------------------------------
def _make_fused_conv_kernel(Wo: int, Cout_p: int):
    def kernel(s00, s01, s02, s10, s11, s12, s20, s21, s22, w_ref, b_ref, o_ref):
        # s{kd}{kh}: (1, 2, Wo+1, Cin) bf16 — padded input row (b, 2*od+kd, 2*oh+kh),
        #            W-parity-split (axis 1: even/odd padded w).
        # w_ref:     (27, Cin, Cout_p) bf16, tap order (kd, kh, kw).
        # b_ref:     (1, Cout_p) f32.
        # o_ref:     (1, Wo, Cout_p) bf16.
        slabs = (s00, s01, s02, s10, s11, s12, s20, s21, s22)
        acc = jnp.zeros((Wo, Cout_p), jnp.float32)
        for kd in range(3):
            for kh in range(3):
                s = slabs[kd * 3 + kh][0]                  # (2, Wo+1, Cin)
                for kw in range(3):
                    par, off = kw % 2, kw // 2             # kw -> (parity, +1 shift)
                    a = s[par, off:off + Wo, :]            # (Wo, Cin) bf16
                    wt = w_ref[kd * 9 + kh * 3 + kw]       # (Cin, Cout_p) bf16
                    acc = acc + jnp.dot(a, wt, preferred_element_type=jnp.float32)
        y = acc + b_ref[...]                               # broadcast bias
        o_ref[0] = jnp.where(y >= 0.0, y, 0.1 * y).astype(o_ref.dtype)

    return kernel


# ----------------------------------------------------------------------------
# Module forward
# ----------------------------------------------------------------------------
@jax.jit
def stride_conv3d_block(x, weight, bias):
    """x: (B, Cin, D, H, W); weight: (Cout, Cin, 3, 3, 3); bias: (Cout,)."""
    B, Cin, D, H, W = x.shape
    Cout = weight.shape[0]

    Do = (D - 1) // 2 + 1
    Ho = (H - 1) // 2 + 1
    Wo = (W - 1) // 2 + 1
    Dp, Hp = 2 * Do + 1, 2 * Ho + 1          # padded extents actually read
    Wp = 2 * (Wo + 1)                        # even width -> clean parity split

    # Lane-dense output stores only when Cout is big enough to be worth padding.
    Cout_p = _round_up(Cout, 128) if Cout >= 32 else Cout

    # ---- input-sized preprocessing (no 27x patch materialization) ----
    xt = jnp.transpose(x, (0, 2, 3, 4, 1)).astype(jnp.bfloat16)       # NDHWC, bf16
    xp = jnp.pad(xt, ((0, 0),
                      (1, Dp - 1 - D),
                      (1, Hp - 1 - H),
                      (1, Wp - 1 - W),
                      (0, 0)))                                        # (B,Dp,Hp,Wp,C)
    x_par = jnp.stack([xp[:, :, :, 0::2, :],                          # even padded w
                       xp[:, :, :, 1::2, :]], axis=3)                 # odd padded w
    x_par = x_par.reshape(B * Dp * Hp, 2, Wo + 1, Cin)

    # Weight -> (27, Cin, Cout_p), tap order (kd, kh, kw); bias -> (1, Cout_p).
    w_taps = jnp.transpose(weight, (2, 3, 4, 1, 0)).reshape(27, Cin, Cout)
    w_taps = w_taps.astype(jnp.bfloat16)
    b_row = bias.astype(jnp.float32).reshape(1, Cout)
    if Cout_p != Cout:
        w_taps = jnp.pad(w_taps, ((0, 0), (0, 0), (0, Cout_p - Cout)))
        b_row = jnp.pad(b_row, ((0, 0), (0, Cout_p - Cout)))

    # ---- Pallas call: grid over (b, od, oh), all parallel ----
    def slab_map(kd, kh):
        # block size 1 along dim 0 => block index == element (row) index
        return lambda b, od, oh: ((b * Dp + 2 * od + kd) * Hp + 2 * oh + kh, 0, 0, 0)

    in_specs = [pl.BlockSpec((1, 2, Wo + 1, Cin), slab_map(kd, kh))
                for kd in range(3) for kh in range(3)]
    in_specs.append(pl.BlockSpec((27, Cin, Cout_p), lambda b, od, oh: (0, 0, 0)))
    in_specs.append(pl.BlockSpec((1, Cout_p), lambda b, od, oh: (0, 0)))

    out_specs = pl.BlockSpec(
        (1, Wo, Cout_p), lambda b, od, oh: (b * Do * Ho + od * Ho + oh, 0, 0))

    flops = 2 * B * Do * Ho * Wo * 27 * Cin * Cout_p
    bytes_accessed = (B * Do * Ho * 9 * 2 * (Wo + 1) * Cin * 2     # input slabs
                      + 27 * Cin * Cout_p * 2 + Cout_p * 4          # weight + bias
                      + B * Do * Ho * Wo * Cout_p * 2)              # output

    out = pl.pallas_call(
        _make_fused_conv_kernel(Wo, Cout_p),
        out_shape=jax.ShapeDtypeStruct((B * Do * Ho, Wo, Cout_p), jnp.bfloat16),
        grid=(B, Do, Ho),
        in_specs=in_specs,
        out_specs=out_specs,
        compiler_params=pltpu.CompilerParams(
            dimension_semantics=("parallel", "parallel", "parallel")),
        cost_estimate=pl.CostEstimate(flops=flops, transcendentals=0,
                                      bytes_accessed=bytes_accessed),
    )(*([x_par] * 9), w_taps, b_row)

    if Cout_p != Cout:
        out = out[:, :, :Cout]
    out = out.reshape(B, Do, Ho, Wo, Cout)
    out = jnp.transpose(out, (0, 4, 1, 2, 3))      # bf16 transpose back to NCDHW
    return out.astype(x.dtype)


def _reference(x, weight, bias):
    """Pure-JAX reference for correctness check."""
    y = lax.conv_general_dilated(
        x.astype(jnp.float32), weight.astype(jnp.float32),
        window_strides=(2, 2, 2), padding=((1, 1), (1, 1), (1, 1)),
        dimension_numbers=("NCDHW", "OIDHW", "NCDHW"),
    )
    y = y + bias.reshape(1, -1, 1, 1, 1)
    return jnp.where(y >= 0.0, y, 0.1 * y)


if __name__ == "__main__":
    key = jax.random.PRNGKey(0)
    k_x, k_w, k_b = jax.random.split(key, 3)

    B, Cin, Cout = 2, 4, 8
    D = H = W = 8

    x = jax.random.normal(k_x, (B, Cin, D, H, W), dtype=jnp.float32)
    fan_in = Cin * 27
    bound = 1.0 / (fan_in ** 0.5)
    weight = jax.random.uniform(k_w, (Cout, Cin, 3, 3, 3),
                                minval=-bound, maxval=bound, dtype=jnp.float32)
    bias = jax.random.uniform(k_b, (Cout,),
                              minval=-bound, maxval=bound, dtype=jnp.float32)

    out = jax.block_until_ready(stride_conv3d_block(x, weight, bias))
    ref = jax.block_until_ready(_reference(x, weight, bias))

    assert out.shape == (B, Cout, 4, 4, 4), out.shape
    # bf16 operands + bf16 output store (f32 accumulation) -> loosened tolerance
    # vs PyTorch's f32 conv; documented trade-off.
    assert jnp.allclose(out, ref, atol=3e-2, rtol=2e-2), float(
        jnp.max(jnp.abs(out - ref)))

    print("KERNEL_OK")
</pallas_src>

<mosaic_0001>
module attributes {stable_mosaic.version = 11 : i64} {
  func.func @kernel(%arg0: i32, %arg1: i32, %arg2: i32, %arg3: memref<1x2x5x4xbf16, #tpu.memory_space<vmem>>, %arg4: memref<1x2x5x4xbf16, #tpu.memory_space<vmem>>, %arg5: memref<1x2x5x4xbf16, #tpu.memory_space<vmem>>, %arg6: memref<1x2x5x4xbf16, #tpu.memory_space<vmem>>, %arg7: memref<1x2x5x4xbf16, #tpu.memory_space<vmem>>, %arg8: memref<1x2x5x4xbf16, #tpu.memory_space<vmem>>, %arg9: memref<1x2x5x4xbf16, #tpu.memory_space<vmem>>, %arg10: memref<1x2x5x4xbf16, #tpu.memory_space<vmem>>, %arg11: memref<1x2x5x4xbf16, #tpu.memory_space<vmem>>, %arg12: memref<27x4x8xbf16, #tpu.memory_space<vmem>>, %arg13: memref<1x8xf32, #tpu.memory_space<vmem>>, %arg14: memref<1x4x8xbf16, #tpu.memory_space<vmem>>) attributes {dimension_semantics = [#tpu.dimension_semantics<parallel>, #tpu.dimension_semantics<parallel>, #tpu.dimension_semantics<parallel>], iteration_bounds = array<i64: 2, 4, 4>, scalar_prefetch = 0 : i64, scratch_operands = 0 : i64, tpu.core_type = #tpu.core_type<tc>, window_params = [{transform_indices = @transform_0, window_bounds = array<i64: 1, 2, 5, 4>}, {transform_indices = @transform_1, window_bounds = array<i64: 1, 2, 5, 4>}, {transform_indices = @transform_2, window_bounds = array<i64: 1, 2, 5, 4>}, {transform_indices = @transform_3, window_bounds = array<i64: 1, 2, 5, 4>}, {transform_indices = @transform_4, window_bounds = array<i64: 1, 2, 5, 4>}, {transform_indices = @transform_5, window_bounds = array<i64: 1, 2, 5, 4>}, {transform_indices = @transform_6, window_bounds = array<i64: 1, 2, 5, 4>}, {transform_indices = @transform_7, window_bounds = array<i64: 1, 2, 5, 4>}, {transform_indices = @transform_8, window_bounds = array<i64: 1, 2, 5, 4>}, {pipeline_mode = #tpu.pipeline_mode<synchronous>, transform_indices = @transform_9, window_bounds = array<i64: 27, 4, 8>}, {pipeline_mode = #tpu.pipeline_mode<synchronous>, transform_indices = @transform_10, window_bounds = array<i64: 1, 8>}, {transform_indices = @transform_11, window_bounds = array<i64: 1, 4, 8>}]} {
    %cst = arith.constant 0.000000e+00 : f32
    %0 = vector.broadcast %cst : f32 to vector<4x8xf32>
    %c0 = arith.constant 0 : index
    %c0_0 = arith.constant 0 : index
    %c0_1 = arith.constant 0 : index
    %c0_2 = arith.constant 0 : index
    %1 = vector.load %arg3[%c0, %c0_0, %c0_1, %c0_2] : memref<1x2x5x4xbf16, #tpu.memory_space<vmem>>, vector<1x2x5x4xbf16>
    %2 = vector.shape_cast %1 : vector<1x2x5x4xbf16> to vector<2x5x4xbf16>
    %3 = vector.extract_strided_slice %2 {offsets = [0, 0, 0], sizes = [1, 4, 4], strides = [1, 1, 1]} : vector<2x5x4xbf16> to vector<1x4x4xbf16>
    %4 = vector.shape_cast %3 : vector<1x4x4xbf16> to vector<4x4xbf16>
    %c0_3 = arith.constant 0 : index
    %c0_4 = arith.constant 0 : index
    %c0_5 = arith.constant 0 : index
    %5 = vector.load %arg12[%c0_3, %c0_4, %c0_5] : memref<27x4x8xbf16, #tpu.memory_space<vmem>>, vector<1x4x8xbf16>
    %6 = vector.shape_cast %5 : vector<1x4x8xbf16> to vector<4x8xbf16>
    %cst_6 = arith.constant dense<0.000000e+00> : vector<4x8xf32>
    %7 = tpu.matmul %4, %6, %cst_6 {dimension_numbers = #tpu.dot_dimension_numbers<[1], [0], [0], [1], [0, 0, 1, 1], [], []>} : vector<4x4xbf16>, vector<4x8xbf16>, vector<4x8xf32> -> vector<4x8xf32>
    %8 = arith.addf %0, %7 : vector<4x8xf32>
    %9 = vector.extract_strided_slice %2 {offsets = [1, 0, 0], sizes = [1, 4, 4], strides = [1, 1, 1]} : vector<2x5x4xbf16> to vector<1x4x4xbf16>
    %10 = vector.shape_cast %9 : vector<1x4x4xbf16> to vector<4x4xbf16>
    %c1 = arith.constant 1 : index
    %c0_7 = arith.constant 0 : index
    %c0_8 = arith.constant 0 : index
    %11 = vector.load %arg12[%c1, %c0_7, %c0_8] : memref<27x4x8xbf16, #tpu.memory_space<vmem>>, vector<1x4x8xbf16>
    %12 = vector.shape_cast %11 : vector<1x4x8xbf16> to vector<4x8xbf16>
    %cst_9 = arith.constant dense<0.000000e+00> : vector<4x8xf32>
    %13 = tpu.matmul %10, %12, %cst_9 {dimension_numbers = #tpu.dot_dimension_numbers<[1], [0], [0], [1], [0, 0, 1, 1], [], []>} : vector<4x4xbf16>, vector<4x8xbf16>, vector<4x8xf32> -> vector<4x8xf32>
    %14 = arith.addf %8, %13 : vector<4x8xf32>
    %15 = vector.extract_strided_slice %2 {offsets = [0, 1, 0], sizes = [1, 4, 4], strides = [1, 1, 1]} : vector<2x5x4xbf16> to vector<1x4x4xbf16>
    %16 = vector.shape_cast %15 : vector<1x4x4xbf16> to vector<4x4xbf16>
    %c2 = arith.constant 2 : index
    %c0_10 = arith.constant 0 : index
    %c0_11 = arith.constant 0 : index
    %17 = vector.load %arg12[%c2, %c0_10, %c0_11] : memref<27x4x8xbf16, #tpu.memory_space<vmem>>, vector<1x4x8xbf16>
    %18 = vector.shape_cast %17 : vector<1x4x8xbf16> to vector<4x8xbf16>
    %cst_12 = arith.constant dense<0.000000e+00> : vector<4x8xf32>
    %19 = tpu.matmul %16, %18, %cst_12 {dimension_numbers = #tpu.dot_dimension_numbers<[1], [0], [0], [1], [0, 0, 1, 1], [], []>} : vector<4x4xbf16>, vector<4x8xbf16>, vector<4x8xf32> -> vector<4x8xf32>
    %20 = arith.addf %14, %19 : vector<4x8xf32>
    %c0_13 = arith.constant 0 : index
    %c0_14 = arith.constant 0 : index
    %c0_15 = arith.constant 0 : index
    %c0_16 = arith.constant 0 : index
    %21 = vector.load %arg4[%c0_13, %c0_14, %c0_15, %c0_16] : memref<1x2x5x4xbf16, #tpu.memory_space<vmem>>, vector<1x2x5x4xbf16>
    %22 = vector.shape_cast %21 : vector<1x2x5x4xbf16> to vector<2x5x4xbf16>
    %23 = vector.extract_strided_slice %22 {offsets = [0, 0, 0], sizes = [1, 4, 4], strides = [1, 1, 1]} : vector<2x5x4xbf16> to vector<1x4x4xbf16>
    %24 = vector.shape_cast %23 : vector<1x4x4xbf16> to vector<4x4xbf16>
    %c3 = arith.constant 3 : index
    %c0_17 = arith.constant 0 : index
    %c0_18 = arith.constant 0 : index
    %25 = vector.load %arg12[%c3, %c0_17, %c0_18] : memref<27x4x8xbf16, #tpu.memory_space<vmem>>, vector<1x4x8xbf16>
    %26 = vector.shape_cast %25 : vector<1x4x8xbf16> to vector<4x8xbf16>
    %cst_19 = arith.constant dense<0.000000e+00> : vector<4x8xf32>
    %27 = tpu.matmul %24, %26, %cst_19 {dimension_numbers = #tpu.dot_dimension_numbers<[1], [0], [0], [1], [0, 0, 1, 1], [], []>} : vector<4x4xbf16>, vector<4x8xbf16>, vector<4x8xf32> -> vector<4x8xf32>
    %28 = arith.addf %20, %27 : vector<4x8xf32>
    %29 = vector.extract_strided_slice %22 {offsets = [1, 0, 0], sizes = [1, 4, 4], strides = [1, 1, 1]} : vector<2x5x4xbf16> to vector<1x4x4xbf16>
    %30 = vector.shape_cast %29 : vector<1x4x4xbf16> to vector<4x4xbf16>
    %c4 = arith.constant 4 : index
    %c0_20 = arith.constant 0 : index
    %c0_21 = arith.constant 0 : index
    %31 = vector.load %arg12[%c4, %c0_20, %c0_21] : memref<27x4x8xbf16, #tpu.memory_space<vmem>>, vector<1x4x8xbf16>
    %32 = vector.shape_cast %31 : vector<1x4x8xbf16> to vector<4x8xbf16>
    %cst_22 = arith.constant dense<0.000000e+00> : vector<4x8xf32>
    %33 = tpu.matmul %30, %32, %cst_22 {dimension_numbers = #tpu.dot_dimension_numbers<[1], [0], [0], [1], [0, 0, 1, 1], [], []>} : vector<4x4xbf16>, vector<4x8xbf16>, vector<4x8xf32> -> vector<4x8xf32>
    %34 = arith.addf %28, %33 : vector<4x8xf32>
    %35 = vector.extract_strided_slice %22 {offsets = [0, 1, 0], sizes = [1, 4, 4], strides = [1, 1, 1]} : vector<2x5x4xbf16> to vector<1x4x4xbf16>
    %36 = vector.shape_cast %35 : vector<1x4x4xbf16> to vector<4x4xbf16>
    %c5 = arith.constant 5 : index
    %c0_23 = arith.constant 0 : index
    %c0_24 = arith.constant 0 : index
    %37 = vector.load %arg12[%c5, %c0_23, %c0_24] : memref<27x4x8xbf16, #tpu.memory_space<vmem>>, vector<1x4x8xbf16>
    %38 = vector.shape_cast %37 : vector<1x4x8xbf16> to vector<4x8xbf16>
    %cst_25 = arith.constant dense<0.000000e+00> : vector<4x8xf32>
    %39 = tpu.matmul %36, %38, %cst_25 {dimension_numbers = #tpu.dot_dimension_numbers<[1], [0], [0], [1], [0, 0, 1, 1], [], []>} : vector<4x4xbf16>, vector<4x8xbf16>, vector<4x8xf32> -> vector<4x8xf32>
    %40 = arith.addf %34, %39 : vector<4x8xf32>
    %c0_26 = arith.constant 0 : index
    %c0_27 = arith.constant 0 : index
    %c0_28 = arith.constant 0 : index
    %c0_29 = arith.constant 0 : index
    %41 = vector.load %arg5[%c0_26, %c0_27, %c0_28, %c0_29] : memref<1x2x5x4xbf16, #tpu.memory_space<vmem>>, vector<1x2x5x4xbf16>
    %42 = vector.shape_cast %41 : vector<1x2x5x4xbf16> to vector<2x5x4xbf16>
    %43 = vector.extract_strided_slice %42 {offsets = [0, 0, 0], sizes = [1, 4, 4], strides = [1, 1, 1]} : vector<2x5x4xbf16> to vector<1x4x4xbf16>
    %44 = vector.shape_cast %43 : vector<1x4x4xbf16> to vector<4x4xbf16>
    %c6 = arith.constant 6 : index
    %c0_30 = arith.constant 0 : index
    %c0_31 = arith.constant 0 : index
    %45 = vector.load %arg12[%c6, %c0_30, %c0_31] : memref<27x4x8xbf16, #tpu.memory_space<vmem>>, vector<1x4x8xbf16>
    %46 = vector.shape_cast %45 : vector<1x4x8xbf16> to vector<4x8xbf16>
    %cst_32 = arith.constant dense<0.000000e+00> : vector<4x8xf32>
    %47 = tpu.matmul %44, %46, %cst_32 {dimension_numbers = #tpu.dot_dimension_numbers<[1], [0], [0], [1], [0, 0, 1, 1], [], []>} : vector<4x4xbf16>, vector<4x8xbf16>, vector<4x8xf32> -> vector<4x8xf32>
    %48 = arith.addf %40, %47 : vector<4x8xf32>
    %49 = vector.extract_strided_slice %42 {offsets = [1, 0, 0], sizes = [1, 4, 4], strides = [1, 1, 1]} : vector<2x5x4xbf16> to vector<1x4x4xbf16>
    %50 = vector.shape_cast %49 : vector<1x4x4xbf16> to vector<4x4xbf16>
    %c7 = arith.constant 7 : index
    %c0_33 = arith.constant 0 : index
    %c0_34 = arith.constant 0 : index
    %51 = vector.load %arg12[%c7, %c0_33, %c0_34] : memref<27x4x8xbf16, #tpu.memory_space<vmem>>, vector<1x4x8xbf16>
    %52 = vector.shape_cast %51 : vector<1x4x8xbf16> to vector<4x8xbf16>
    %cst_35 = arith.constant dense<0.000000e+00> : vector<4x8xf32>
    %53 = tpu.matmul %50, %52, %cst_35 {dimension_numbers = #tpu.dot_dimension_numbers<[1], [0], [0], [1], [0, 0, 1, 1], [], []>} : vector<4x4xbf16>, vector<4x8xbf16>, vector<4x8xf32> -> vector<4x8xf32>
    %54 = arith.addf %48, %53 : vector<4x8xf32>
    %55 = vector.extract_strided_slice %42 {offsets = [0, 1, 0], sizes = [1, 4, 4], strides = [1, 1, 1]} : vector<2x5x4xbf16> to vector<1x4x4xbf16>
    %56 = vector.shape_cast %55 : vector<1x4x4xbf16> to vector<4x4xbf16>
    %c8 = arith.constant 8 : index
    %c0_36 = arith.constant 0 : index
    %c0_37 = arith.constant 0 : index
    %57 = vector.load %arg12[%c8, %c0_36, %c0_37] : memref<27x4x8xbf16, #tpu.memory_space<vmem>>, vector<1x4x8xbf16>
    %58 = vector.shape_cast %57 : vector<1x4x8xbf16> to vector<4x8xbf16>
    %cst_38 = arith.constant dense<0.000000e+00> : vector<4x8xf32>
    %59 = tpu.matmul %56, %58, %cst_38 {dimension_numbers = #tpu.dot_dimension_numbers<[1], [0], [0], [1], [0, 0, 1, 1], [], []>} : vector<4x4xbf16>, vector<4x8xbf16>, vector<4x8xf32> -> vector<4x8xf32>
    %60 = arith.addf %54, %59 : vector<4x8xf32>
    %c0_39 = arith.constant 0 : index
    %c0_40 = arith.constant 0 : index
    %c0_41 = arith.constant 0 : index
    %c0_42 = arith.constant 0 : index
    %61 = vector.load %arg6[%c0_39, %c0_40, %c0_41, %c0_42] : memref<1x2x5x4xbf16, #tpu.memory_space<vmem>>, vector<1x2x5x4xbf16>
    %62 = vector.shape_cast %61 : vector<1x2x5x4xbf16> to vector<2x5x4xbf16>
    %63 = vector.extract_strided_slice %62 {offsets = [0, 0, 0], sizes = [1, 4, 4], strides = [1, 1, 1]} : vector<2x5x4xbf16> to vector<1x4x4xbf16>
    %64 = vector.shape_cast %63 : vector<1x4x4xbf16> to vector<4x4xbf16>
    %c9 = arith.constant 9 : index
    %c0_43 = arith.constant 0 : index
    %c0_44 = arith.constant 0 : index
    %65 = vector.load %arg12[%c9, %c0_43, %c0_44] : memref<27x4x8xbf16, #tpu.memory_space<vmem>>, vector<1x4x8xbf16>
    %66 = vector.shape_cast %65 : vector<1x4x8xbf16> to vector<4x8xbf16>
    %cst_45 = arith.constant dense<0.000000e+00> : vector<4x8xf32>
    %67 = tpu.matmul %64, %66, %cst_45 {dimension_numbers = #tpu.dot_dimension_numbers<[1], [0], [0], [1], [0, 0, 1, 1], [], []>} : vector<4x4xbf16>, vector<4x8xbf16>, vector<4x8xf32> -> vector<4x8xf32>
    %68 = arith.addf %60, %67 : vector<4x8xf32>
    %69 = vector.extract_strided_slice %62 {offsets = [1, 0, 0], sizes = [1, 4, 4], strides = [1, 1, 1]} : vector<2x5x4xbf16> to vector<1x4x4xbf16>
    %70 = vector.shape_cast %69 : vector<1x4x4xbf16> to vector<4x4xbf16>
    %c10 = arith.constant 10 : index
    %c0_46 = arith.constant 0 : index
    %c0_47 = arith.constant 0 : index
    %71 = vector.load %arg12[%c10, %c0_46, %c0_47] : memref<27x4x8xbf16, #tpu.memory_space<vmem>>, vector<1x4x8xbf16>
    %72 = vector.shape_cast %71 : vector<1x4x8xbf16> to vector<4x8xbf16>
    %cst_48 = arith.constant dense<0.000000e+00> : vector<4x8xf32>
    %73 = tpu.matmul %70, %72, %cst_48 {dimension_numbers = #tpu.dot_dimension_numbers<[1], [0], [0], [1], [0, 0, 1, 1], [], []>} : vector<4x4xbf16>, vector<4x8xbf16>, vector<4x8xf32> -> vector<4x8xf32>
    %74 = arith.addf %68, %73 : vector<4x8xf32>
    %75 = vector.extract_strided_slice %62 {offsets = [0, 1, 0], sizes = [1, 4, 4], strides = [1, 1, 1]} : vector<2x5x4xbf16> to vector<1x4x4xbf16>
    %76 = vector.shape_cast %75 : vector<1x4x4xbf16> to vector<4x4xbf16>
    %c11 = arith.constant 11 : index
    %c0_49 = arith.constant 0 : index
    %c0_50 = arith.constant 0 : index
    %77 = vector.load %arg12[%c11, %c0_49, %c0_50] : memref<27x4x8xbf16, #tpu.memory_space<vmem>>, vector<1x4x8xbf16>
    %78 = vector.shape_cast %77 : vector<1x4x8xbf16> to vector<4x8xbf16>
    %cst_51 = arith.constant dense<0.000000e+00> : vector<4x8xf32>
    %79 = tpu.matmul %76, %78, %cst_51 {dimension_numbers = #tpu.dot_dimension_numbers<[1], [0], [0], [1], [0, 0, 1, 1], [], []>} : vector<4x4xbf16>, vector<4x8xbf16>, vector<4x8xf32> -> vector<4x8xf32>
    %80 = arith.addf %74, %79 : vector<4x8xf32>
    %c0_52 = arith.constant 0 : index
    %c0_53 = arith.constant 0 : index
    %c0_54 = arith.constant 0 : index
    %c0_55 = arith.constant 0 : index
    %81 = vector.load %arg7[%c0_52, %c0_53, %c0_54, %c0_55] : memref<1x2x5x4xbf16, #tpu.memory_space<vmem>>, vector<1x2x5x4xbf16>
    %82 = vector.shape_cast %81 : vector<1x2x5x4xbf16> to vector<2x5x4xbf16>
    %83 = vector.extract_strided_slice %82 {offsets = [0, 0, 0], sizes = [1, 4, 4], strides = [1, 1, 1]} : vector<2x5x4xbf16> to vector<1x4x4xbf16>
    %84 = vector.shape_cast %83 : vector<1x4x4xbf16> to vector<4x4xbf16>
    %c12 = arith.constant 12 : index
    %c0_56 = arith.constant 0 : index
    %c0_57 = arith.constant 0 : index
    %85 = vector.load %arg12[%c12, %c0_56, %c0_57] : memref<27x4x8xbf16, #tpu.memory_space<vmem>>, vector<1x4x8xbf16>
    %86 = vector.shape_cast %85 : vector<1x4x8xbf16> to vector<4x8xbf16>
    %cst_58 = arith.constant dense<0.000000e+00> : vector<4x8xf32>
    %87 = tpu.matmul %84, %86, %cst_58 {dimension_numbers = #tpu.dot_dimension_numbers<[1], [0], [0], [1], [0, 0, 1, 1], [], []>} : vector<4x4xbf16>, vector<4x8xbf16>, vector<4x8xf32> -> vector<4x8xf32>
    %88 = arith.addf %80, %87 : vector<4x8xf32>
    %89 = vector.extract_strided_slice %82 {offsets = [1, 0, 0], sizes = [1, 4, 4], strides = [1, 1, 1]} : vector<2x5x4xbf16> to vector<1x4x4xbf16>
    %90 = vector.shape_cast %89 : vector<1x4x4xbf16> to vector<4x4xbf16>
    %c13 = arith.constant 13 : index
    %c0_59 = arith.constant 0 : index
    %c0_60 = arith.constant 0 : index
    %91 = vector.load %arg12[%c13, %c0_59, %c0_60] : memref<27x4x8xbf16, #tpu.memory_space<vmem>>, vector<1x4x8xbf16>
    %92 = vector.shape_cast %91 : vector<1x4x8xbf16> to vector<4x8xbf16>
    %cst_61 = arith.constant dense<0.000000e+00> : vector<4x8xf32>
    %93 = tpu.matmul %90, %92, %cst_61 {dimension_numbers = #tpu.dot_dimension_numbers<[1], [0], [0], [1], [0, 0, 1, 1], [], []>} : vector<4x4xbf16>, vector<4x8xbf16>, vector<4x8xf32> -> vector<4x8xf32>
    %94 = arith.addf %88, %93 : vector<4x8xf32>
    %95 = vector.extract_strided_slice %82 {offsets = [0, 1, 0], sizes = [1, 4, 4], strides = [1, 1, 1]} : vector<2x5x4xbf16> to vector<1x4x4xbf16>
    %96 = vector.shape_cast %95 : vector<1x4x4xbf16> to vector<4x4xbf16>
    %c14 = arith.constant 14 : index
    %c0_62 = arith.constant 0 : index
    %c0_63 = arith.constant 0 : index
    %97 = vector.load %arg12[%c14, %c0_62, %c0_63] : memref<27x4x8xbf16, #tpu.memory_space<vmem>>, vector<1x4x8xbf16>
    %98 = vector.shape_cast %97 : vector<1x4x8xbf16> to vector<4x8xbf16>
    %cst_64 = arith.constant dense<0.000000e+00> : vector<4x8xf32>
    %99 = tpu.matmul %96, %98, %cst_64 {dimension_numbers = #tpu.dot_dimension_numbers<[1], [0], [0], [1], [0, 0, 1, 1], [], []>} : vector<4x4xbf16>, vector<4x8xbf16>, vector<4x8xf32> -> vector<4x8xf32>
    %100 = arith.addf %94, %99 : vector<4x8xf32>
    %c0_65 = arith.constant 0 : index
    %c0_66 = arith.constant 0 : index
    %c0_67 = arith.constant 0 : index
    %c0_68 = arith.constant 0 : index
    %101 = vector.load %arg8[%c0_65, %c0_66, %c0_67, %c0_68] : memref<1x2x5x4xbf16, #tpu.memory_space<vmem>>, vector<1x2x5x4xbf16>
    %102 = vector.shape_cast %101 : vector<1x2x5x4xbf16> to vector<2x5x4xbf16>
    %103 = vector.extract_strided_slice %102 {offsets = [0, 0, 0], sizes = [1, 4, 4], strides = [1, 1, 1]} : vector<2x5x4xbf16> to vector<1x4x4xbf16>
    %104 = vector.shape_cast %103 : vector<1x4x4xbf16> to vector<4x4xbf16>
    %c15 = arith.constant 15 : index
    %c0_69 = arith.constant 0 : index
    %c0_70 = arith.constant 0 : index
    %105 = vector.load %arg12[%c15, %c0_69, %c0_70] : memref<27x4x8xbf16, #tpu.memory_space<vmem>>, vector<1x4x8xbf16>
    %106 = vector.shape_cast %105 : vector<1x4x8xbf16> to vector<4x8xbf16>
    %cst_71 = arith.constant dense<0.000000e+00> : vector<4x8xf32>
    %107 = tpu.matmul %104, %106, %cst_71 {dimension_numbers = #tpu.dot_dimension_numbers<[1], [0], [0], [1], [0, 0, 1, 1], [], []>} : vector<4x4xbf16>, vector<4x8xbf16>, vector<4x8xf32> -> vector<4x8xf32>
    %108 = arith.addf %100, %107 : vector<4x8xf32>
    %109 = vector.extract_strided_slice %102 {offsets = [1, 0, 0], sizes = [1, 4, 4], strides = [1, 1, 1]} : vector<2x5x4xbf16> to vector<1x4x4xbf16>
    %110 = vector.shape_cast %109 : vector<1x4x4xbf16> to vector<4x4xbf16>
    %c16 = arith.constant 16 : index
    %c0_72 = arith.constant 0 : index
    %c0_73 = arith.constant 0 : index
    %111 = vector.load %arg12[%c16, %c0_72, %c0_73] : memref<27x4x8xbf16, #tpu.memory_space<vmem>>, vector<1x4x8xbf16>
    %112 = vector.shape_cast %111 : vector<1x4x8xbf16> to vector<4x8xbf16>
    %cst_74 = arith.constant dense<0.000000e+00> : vector<4x8xf32>
    %113 = tpu.matmul %110, %112, %cst_74 {dimension_numbers = #tpu.dot_dimension_numbers<[1], [0], [0], [1], [0, 0, 1, 1], [], []>} : vector<4x4xbf16>, vector<4x8xbf16>, vector<4x8xf32> -> vector<4x8xf32>
    %114 = arith.addf %108, %113 : vector<4x8xf32>
    %115 = vector.extract_strided_slice %102 {offsets = [0, 1, 0], sizes = [1, 4, 4], strides = [1, 1, 1]} : vector<2x5x4xbf16> to vector<1x4x4xbf16>
    %116 = vector.shape_cast %115 : vector<1x4x4xbf16> to vector<4x4xbf16>
    %c17 = arith.constant 17 : index
    %c0_75 = arith.constant 0 : index
    %c0_76 = arith.constant 0 : index
    %117 = vector.load %arg12[%c17, %c0_75, %c0_76] : memref<27x4x8xbf16, #tpu.memory_space<vmem>>, vector<1x4x8xbf16>
    %118 = vector.shape_cast %117 : vector<1x4x8xbf16> to vector<4x8xbf16>
    %cst_77 = arith.constant dense<0.000000e+00> : vector<4x8xf32>
    %119 = tpu.matmul %116, %118, %cst_77 {dimension_numbers = #tpu.dot_dimension_numbers<[1], [0], [0], [1], [0, 0, 1, 1], [], []>} : vector<4x4xbf16>, vector<4x8xbf16>, vector<4x8xf32> -> vector<4x8xf32>
    %120 = arith.addf %114, %119 : vector<4x8xf32>
    %c0_78 = arith.constant 0 : index
    %c0_79 = arith.constant 0 : index
    %c0_80 = arith.constant 0 : index
    %c0_81 = arith.constant 0 : index
    %121 = vector.load %arg9[%c0_78, %c0_79, %c0_80, %c0_81] : memref<1x2x5x4xbf16, #tpu.memory_space<vmem>>, vector<1x2x5x4xbf16>
    %122 = vector.shape_cast %121 : vector<1x2x5x4xbf16> to vector<2x5x4xbf16>
    %123 = vector.extract_strided_slice %122 {offsets = [0, 0, 0], sizes = [1, 4, 4], strides = [1, 1, 1]} : vector<2x5x4xbf16> to vector<1x4x4xbf16>
    %124 = vector.shape_cast %123 : vector<1x4x4xbf16> to vector<4x4xbf16>
    %c18 = arith.constant 18 : index
    %c0_82 = arith.constant 0 : index
    %c0_83 = arith.constant 0 : index
    %125 = vector.load %arg12[%c18, %c0_82, %c0_83] : memref<27x4x8xbf16, #tpu.memory_space<vmem>>, vector<1x4x8xbf16>
    %126 = vector.shape_cast %125 : vector<1x4x8xbf16> to vector<4x8xbf16>
    %cst_84 = arith.constant dense<0.000000e+00> : vector<4x8xf32>
    %127 = tpu.matmul %124, %126, %cst_84 {dimension_numbers = #tpu.dot_dimension_numbers<[1], [0], [0], [1], [0, 0, 1, 1], [], []>} : vector<4x4xbf16>, vector<4x8xbf16>, vector<4x8xf32> -> vector<4x8xf32>
    %128 = arith.addf %120, %127 : vector<4x8xf32>
    %129 = vector.extract_strided_slice %122 {offsets = [1, 0, 0], sizes = [1, 4, 4], strides = [1, 1, 1]} : vector<2x5x4xbf16> to vector<1x4x4xbf16>
    %130 = vector.shape_cast %129 : vector<1x4x4xbf16> to vector<4x4xbf16>
    %c19 = arith.constant 19 : index
    %c0_85 = arith.constant 0 : index
    %c0_86 = arith.constant 0 : index
    %131 = vector.load %arg12[%c19, %c0_85, %c0_86] : memref<27x4x8xbf16, #tpu.memory_space<vmem>>, vector<1x4x8xbf16>
    %132 = vector.shape_cast %131 : vector<1x4x8xbf16> to vector<4x8xbf16>
    %cst_87 = arith.constant dense<0.000000e+00> : vector<4x8xf32>
    %133 = tpu.matmul %130, %132, %cst_87 {dimension_numbers = #tpu.dot_dimension_numbers<[1], [0], [0], [1], [0, 0, 1, 1], [], []>} : vector<4x4xbf16>, vector<4x8xbf16>, vector<4x8xf32> -> vector<4x8xf32>
    %134 = arith.addf %128, %133 : vector<4x8xf32>
    %135 = vector.extract_strided_slice %122 {offsets = [0, 1, 0], sizes = [1, 4, 4], strides = [1, 1, 1]} : vector<2x5x4xbf16> to vector<1x4x4xbf16>
    %136 = vector.shape_cast %135 : vector<1x4x4xbf16> to vector<4x4xbf16>
    %c20 = arith.constant 20 : index
    %c0_88 = arith.constant 0 : index
    %c0_89 = arith.constant 0 : index
    %137 = vector.load %arg12[%c20, %c0_88, %c0_89] : memref<27x4x8xbf16, #tpu.memory_space<vmem>>, vector<1x4x8xbf16>
    %138 = vector.shape_cast %137 : vector<1x4x8xbf16> to vector<4x8xbf16>
    %cst_90 = arith.constant dense<0.000000e+00> : vector<4x8xf32>
    %139 = tpu.matmul %136, %138, %cst_90 {dimension_numbers = #tpu.dot_dimension_numbers<[1], [0], [0], [1], [0, 0, 1, 1], [], []>} : vector<4x4xbf16>, vector<4x8xbf16>, vector<4x8xf32> -> vector<4x8xf32>
    %140 = arith.addf %134, %139 : vector<4x8xf32>
    %c0_91 = arith.constant 0 : index
    %c0_92 = arith.constant 0 : index
    %c0_93 = arith.constant 0 : index
    %c0_94 = arith.constant 0 : index
    %141 = vector.load %arg10[%c0_91, %c0_92, %c0_93, %c0_94] : memref<1x2x5x4xbf16, #tpu.memory_space<vmem>>, vector<1x2x5x4xbf16>
    %142 = vector.shape_cast %141 : vector<1x2x5x4xbf16> to vector<2x5x4xbf16>
    %143 = vector.extract_strided_slice %142 {offsets = [0, 0, 0], sizes = [1, 4, 4], strides = [1, 1, 1]} : vector<2x5x4xbf16> to vector<1x4x4xbf16>
    %144 = vector.shape_cast %143 : vector<1x4x4xbf16> to vector<4x4xbf16>
    %c21 = arith.constant 21 : index
    %c0_95 = arith.constant 0 : index
    %c0_96 = arith.constant 0 : index
    %145 = vector.load %arg12[%c21, %c0_95, %c0_96] : memref<27x4x8xbf16, #tpu.memory_space<vmem>>, vector<1x4x8xbf16>
    %146 = vector.shape_cast %145 : vector<1x4x8xbf16> to vector<4x8xbf16>
    %cst_97 = arith.constant dense<0.000000e+00> : vector<4x8xf32>
    %147 = tpu.matmul %144, %146, %cst_97 {dimension_numbers = #tpu.dot_dimension_numbers<[1], [0], [0], [1], [0, 0, 1, 1], [], []>} : vector<4x4xbf16>, vector<4x8xbf16>, vector<4x8xf32> -> vector<4x8xf32>
    %148 = arith.addf %140, %147 : vector<4x8xf32>
    %149 = vector.extract_strided_slice %142 {offsets = [1, 0, 0], sizes = [1, 4, 4], strides = [1, 1, 1]} : vector<2x5x4xbf16> to vector<1x4x4xbf16>
    %150 = vector.shape_cast %149 : vector<1x4x4xbf16> to vector<4x4xbf16>
    %c22 = arith.constant 22 : index
    %c0_98 = arith.constant 0 : index
    %c0_99 = arith.constant 0 : index
    %151 = vector.load %arg12[%c22, %c0_98, %c0_99] : memref<27x4x8xbf16, #tpu.memory_space<vmem>>, vector<1x4x8xbf16>
    %152 = vector.shape_cast %151 : vector<1x4x8xbf16> to vector<4x8xbf16>
    %cst_100 = arith.constant dense<0.000000e+00> : vector<4x8xf32>
    %153 = tpu.matmul %150, %152, %cst_100 {dimension_numbers = #tpu.dot_dimension_numbers<[1], [0], [0], [1], [0, 0, 1, 1], [], []>} : vector<4x4xbf16>, vector<4x8xbf16>, vector<4x8xf32> -> vector<4x8xf32>
    %154 = arith.addf %148, %153 : vector<4x8xf32>
    %155 = vector.extract_strided_slice %142 {offsets = [0, 1, 0], sizes = [1, 4, 4], strides = [1, 1, 1]} : vector<2x5x4xbf16> to vector<1x4x4xbf16>
    %156 = vector.shape_cast %155 : vector<1x4x4xbf16> to vector<4x4xbf16>
    %c23 = arith.constant 23 : index
    %c0_101 = arith.constant 0 : index
    %c0_102 = arith.constant 0 : index
    %157 = vector.load %arg12[%c23, %c0_101, %c0_102] : memref<27x4x8xbf16, #tpu.memory_space<vmem>>, vector<1x4x8xbf16>
    %158 = vector.shape_cast %157 : vector<1x4x8xbf16> to vector<4x8xbf16>
    %cst_103 = arith.constant dense<0.000000e+00> : vector<4x8xf32>
    %159 = tpu.matmul %156, %158, %cst_103 {dimension_numbers = #tpu.dot_dimension_numbers<[1], [0], [0], [1], [0, 0, 1, 1], [], []>} : vector<4x4xbf16>, vector<4x8xbf16>, vector<4x8xf32> -> vector<4x8xf32>
    %160 = arith.addf %154, %159 : vector<4x8xf32>
    %c0_104 = arith.constant 0 : index
    %c0_105 = arith.constant 0 : index
    %c0_106 = arith.constant 0 : index
    %c0_107 = arith.constant 0 : index
    %161 = vector.load %arg11[%c0_104, %c0_105, %c0_106, %c0_107] : memref<1x2x5x4xbf16, #tpu.memory_space<vmem>>, vector<1x2x5x4xbf16>
    %162 = vector.shape_cast %161 : vector<1x2x5x4xbf16> to vector<2x5x4xbf16>
    %163 = vector.extract_strided_slice %162 {offsets = [0, 0, 0], sizes = [1, 4, 4], strides = [1, 1, 1]} : vector<2x5x4xbf16> to vector<1x4x4xbf16>
    %164 = vector.shape_cast %163 : vector<1x4x4xbf16> to vector<4x4xbf16>
    %c24 = arith.constant 24 : index
    %c0_108 = arith.constant 0 : index
    %c0_109 = arith.constant 0 : index
    %165 = vector.load %arg12[%c24, %c0_108, %c0_109] : memref<27x4x8xbf16, #tpu.memory_space<vmem>>, vector<1x4x8xbf16>
    %166 = vector.shape_cast %165 : vector<1x4x8xbf16> to vector<4x8xbf16>
    %cst_110 = arith.constant dense<0.000000e+00> : vector<4x8xf32>
    %167 = tpu.matmul %164, %166, %cst_110 {dimension_numbers = #tpu.dot_dimension_numbers<[1], [0], [0], [1], [0, 0, 1, 1], [], []>} : vector<4x4xbf16>, vector<4x8xbf16>, vector<4x8xf32> -> vector<4x8xf32>
    %168 = arith.addf %160, %167 : vector<4x8xf32>
    %169 = vector.extract_strided_slice %162 {offsets = [1, 0, 0], sizes = [1, 4, 4], strides = [1, 1, 1]} : vector<2x5x4xbf16> to vector<1x4x4xbf16>
    %170 = vector.shape_cast %169 : vector<1x4x4xbf16> to vector<4x4xbf16>
    %c25 = arith.constant 25 : index
    %c0_111 = arith.constant 0 : index
    %c0_112 = arith.constant 0 : index
    %171 = vector.load %arg12[%c25, %c0_111, %c0_112] : memref<27x4x8xbf16, #tpu.memory_space<vmem>>, vector<1x4x8xbf16>
    %172 = vector.shape_cast %171 : vector<1x4x8xbf16> to vector<4x8xbf16>
    %cst_113 = arith.constant dense<0.000000e+00> : vector<4x8xf32>
    %173 = tpu.matmul %170, %172, %cst_113 {dimension_numbers = #tpu.dot_dimension_numbers<[1], [0], [0], [1], [0, 0, 1, 1], [], []>} : vector<4x4xbf16>, vector<4x8xbf16>, vector<4x8xf32> -> vector<4x8xf32>
    %174 = arith.addf %168, %173 : vector<4x8xf32>
    %175 = vector.extract_strided_slice %162 {offsets = [0, 1, 0], sizes = [1, 4, 4], strides = [1, 1, 1]} : vector<2x5x4xbf16> to vector<1x4x4xbf16>
    %176 = vector.shape_cast %175 : vector<1x4x4xbf16> to vector<4x4xbf16>
    %c26 = arith.constant 26 : index
    %c0_114 = arith.constant 0 : index
    %c0_115 = arith.constant 0 : index
    %177 = vector.load %arg12[%c26, %c0_114, %c0_115] : memref<27x4x8xbf16, #tpu.memory_space<vmem>>, vector<1x4x8xbf16>
    %178 = vector.shape_cast %177 : vector<1x4x8xbf16> to vector<4x8xbf16>
    %cst_116 = arith.constant dense<0.000000e+00> : vector<4x8xf32>
    %179 = tpu.matmul %176, %178, %cst_116 {dimension_numbers = #tpu.dot_dimension_numbers<[1], [0], [0], [1], [0, 0, 1, 1], [], []>} : vector<4x4xbf16>, vector<4x8xbf16>, vector<4x8xf32> -> vector<4x8xf32>
    %180 = arith.addf %174, %179 : vector<4x8xf32>
    %c0_117 = arith.constant 0 : index
    %c0_118 = arith.constant 0 : index
    %181 = vector.load %arg13[%c0_117, %c0_118] : memref<1x8xf32, #tpu.memory_space<vmem>>, vector<1x8xf32>
    %182 = vector.broadcast %181 : vector<1x8xf32> to vector<4x8xf32>
    %183 = arith.addf %180, %182 : vector<4x8xf32>
    %cst_119 = arith.constant 0.000000e+00 : f32
    %184 = vector.broadcast %cst_119 : f32 to vector<4x8xf32>
    %185 = arith.cmpf oge, %183, %184 : vector<4x8xf32>
    %cst_120 = arith.constant 1.000000e-01 : f32
    %186 = vector.broadcast %cst_120 : f32 to vector<4x8xf32>
    %187 = arith.mulf %186, %183 : vector<4x8xf32>
    %188 = arith.select %185, %183, %187 : vector<4x8xi1>, vector<4x8xf32>
    %189 = arith.truncf %188 : vector<4x8xf32> to vector<4x8xbf16>
    %c0_121 = arith.constant 0 : index
    %c0_122 = arith.constant 0 : index
    %c0_123 = arith.constant 0 : index
    %190 = vector.load %arg14[%c0_121, %c0_122, %c0_123] : memref<1x4x8xbf16, #tpu.memory_space<vmem>>, vector<1x4x8xbf16>
    %191 = vector.shape_cast %190 : vector<1x4x8xbf16> to vector<4x8xbf16>
    %192 = vector.shape_cast %189 : vector<4x8xbf16> to vector<1x4x8xbf16>
    tpu.vector_store %arg14[%c0_121, %c0_122, %c0_123], %192 {strides = array<i32>} : memref<1x4x8xbf16, #tpu.memory_space<vmem>>, vector<1x4x8xbf16>,
    return
  }
  func.func @transform_0(%arg0: i32, %arg1: i32, %arg2: i32) -> (i32, i32, i32, i32) {
    %c9_i32 = arith.constant 9 : i32
    %0 = arith.muli %arg0, %c9_i32 : i32
    %c2_i32 = arith.constant 2 : i32
    %1 = arith.muli %c2_i32, %arg1 : i32
    %2 = arith.addi %0, %1 : i32
    %c0_i32 = arith.constant 0 : i32
    %3 = arith.addi %2, %c0_i32 : i32
    %c9_i32_0 = arith.constant 9 : i32
    %4 = arith.muli %3, %c9_i32_0 : i32
    %c2_i32_1 = arith.constant 2 : i32
    %5 = arith.muli %c2_i32_1, %arg2 : i32
    %6 = arith.addi %4, %5 : i32
    %c0_i32_2 = arith.constant 0 : i32
    %7 = arith.addi %6, %c0_i32_2 : i32
    %c0_i32_3 = arith.constant 0 : i32
    %c0_i32_4 = arith.constant 0 : i32
    %c0_i32_5 = arith.constant 0 : i32
    %c0_i32_6 = arith.constant 0 : i32
    return %7, %c0_i32_3, %c0_i32_4, %c0_i32_5 : i32, i32, i32, i32
  }
  func.func @transform_1(%arg0: i32, %arg1: i32, %arg2: i32) -> (i32, i32, i32, i32) {
    %c9_i32 = arith.constant 9 : i32
    %0 = arith.muli %arg0, %c9_i32 : i32
    %c2_i32 = arith.constant 2 : i32
    %1 = arith.muli %c2_i32, %arg1 : i32
    %2 = arith.addi %0, %1 : i32
    %c0_i32 = arith.constant 0 : i32
    %3 = arith.addi %2, %c0_i32 : i32
    %c9_i32_0 = arith.constant 9 : i32
    %4 = arith.muli %3, %c9_i32_0 : i32
    %c2_i32_1 = arith.constant 2 : i32
    %5 = arith.muli %c2_i32_1, %arg2 : i32
    %6 = arith.addi %4, %5 : i32
    %c1_i32 = arith.constant 1 : i32
    %7 = arith.addi %6, %c1_i32 : i32
    %c0_i32_2 = arith.constant 0 : i32
    %c0_i32_3 = arith.constant 0 : i32
    %c0_i32_4 = arith.constant 0 : i32
    %c0_i32_5 = arith.constant 0 : i32
    return %7, %c0_i32_2, %c0_i32_3, %c0_i32_4 : i32, i32, i32, i32
  }
  func.func @transform_2(%arg0: i32, %arg1: i32, %arg2: i32) -> (i32, i32, i32, i32) {
    %c9_i32 = arith.constant 9 : i32
    %0 = arith.muli %arg0, %c9_i32 : i32
    %c2_i32 = arith.constant 2 : i32
    %1 = arith.muli %c2_i32, %arg1 : i32
    %2 = arith.addi %0, %1 : i32
    %c0_i32 = arith.constant 0 : i32
    %3 = arith.addi %2, %c0_i32 : i32
    %c9_i32_0 = arith.constant 9 : i32
    %4 = arith.muli %3, %c9_i32_0 : i32
    %c2_i32_1 = arith.constant 2 : i32
    %5 = arith.muli %c2_i32_1, %arg2 : i32
    %6 = arith.addi %4, %5 : i32
    %c2_i32_2 = arith.constant 2 : i32
    %7 = arith.addi %6, %c2_i32_2 : i32
    %c0_i32_3 = arith.constant 0 : i32
    %c0_i32_4 = arith.constant 0 : i32
    %c0_i32_5 = arith.constant 0 : i32
    %c0_i32_6 = arith.constant 0 : i32
    return %7, %c0_i32_3, %c0_i32_4, %c0_i32_5 : i32, i32, i32, i32
  }
  func.func @transform_3(%arg0: i32, %arg1: i32, %arg2: i32) -> (i32, i32, i32, i32) {
    %c9_i32 = arith.constant 9 : i32
    %0 = arith.muli %arg0, %c9_i32 : i32
    %c2_i32 = arith.constant 2 : i32
    %1 = arith.muli %c2_i32, %arg1 : i32
    %2 = arith.addi %0, %1 : i32
    %c1_i32 = arith.constant 1 : i32
    %3 = arith.addi %2, %c1_i32 : i32
    %c9_i32_0 = arith.constant 9 : i32
    %4 = arith.muli %3, %c9_i32_0 : i32
    %c2_i32_1 = arith.constant 2 : i32
    %5 = arith.muli %c2_i32_1, %arg2 : i32
    %6 = arith.addi %4, %5 : i32
    %c0_i32 = arith.constant 0 : i32
    %7 = arith.addi %6, %c0_i32 : i32
    %c0_i32_2 = arith.constant 0 : i32
    %c0_i32_3 = arith.constant 0 : i32
    %c0_i32_4 = arith.constant 0 : i32
    %c0_i32_5 = arith.constant 0 : i32
    return %7, %c0_i32_2, %c0_i32_3, %c0_i32_4 : i32, i32, i32, i32
  }
  func.func @transform_4(%arg0: i32, %arg1: i32, %arg2: i32) -> (i32, i32, i32, i32) {
    %c9_i32 = arith.constant 9 : i32
    %0 = arith.muli %arg0, %c9_i32 : i32
    %c2_i32 = arith.constant 2 : i32
    %1 = arith.muli %c2_i32, %arg1 : i32
    %2 = arith.addi %0, %1 : i32
    %c1_i32 = arith.constant 1 : i32
    %3 = arith.addi %2, %c1_i32 : i32
    %c9_i32_0 = arith.constant 9 : i32
    %4 = arith.muli %3, %c9_i32_0 : i32
    %c2_i32_1 = arith.constant 2 : i32
    %5 = arith.muli %c2_i32_1, %arg2 : i32
    %6 = arith.addi %4, %5 : i32
    %c1_i32_2 = arith.constant 1 : i32
    %7 = arith.addi %6, %c1_i32_2 : i32
    %c0_i32 = arith.constant 0 : i32
    %c0_i32_3 = arith.constant 0 : i32
    %c0_i32_4 = arith.constant 0 : i32
    %c0_i32_5 = arith.constant 0 : i32
    return %7, %c0_i32, %c0_i32_3, %c0_i32_4 : i32, i32, i32, i32
  }
  func.func @transform_5(%arg0: i32, %arg1: i32, %arg2: i32) -> (i32, i32, i32, i32) {
    %c9_i32 = arith.constant 9 : i32
    %0 = arith.muli %arg0, %c9_i32 : i32
    %c2_i32 = arith.constant 2 : i32
    %1 = arith.muli %c2_i32, %arg1 : i32
    %2 = arith.addi %0, %1 : i32
    %c1_i32 = arith.constant 1 : i32
    %3 = arith.addi %2, %c1_i32 : i32
    %c9_i32_0 = arith.constant 9 : i32
    %4 = arith.muli %3, %c9_i32_0 : i32
    %c2_i32_1 = arith.constant 2 : i32
    %5 = arith.muli %c2_i32_1, %arg2 : i32
    %6 = arith.addi %4, %5 : i32
    %c2_i32_2 = arith.constant 2 : i32
    %7 = arith.addi %6, %c2_i32_2 : i32
    %c0_i32 = arith.constant 0 : i32
    %c0_i32_3 = arith.constant 0 : i32
    %c0_i32_4 = arith.constant 0 : i32
    %c0_i32_5 = arith.constant 0 : i32
    return %7, %c0_i32, %c0_i32_3, %c0_i32_4 : i32, i32, i32, i32
  }
  func.func @transform_6(%arg0: i32, %arg1: i32, %arg2: i32) -> (i32, i32, i32, i32) {
    %c9_i32 = arith.constant 9 : i32
    %0 = arith.muli %arg0, %c9_i32 : i32
    %c2_i32 = arith.constant 2 : i32
    %1 = arith.muli %c2_i32, %arg1 : i32
    %2 = arith.addi %0, %1 : i32
    %c2_i32_0 = arith.constant 2 : i32
    %3 = arith.addi %2, %c2_i32_0 : i32
    %c9_i32_1 = arith.constant 9 : i32
    %4 = arith.muli %3, %c9_i32_1 : i32
    %c2_i32_2 = arith.constant 2 : i32
    %5 = arith.muli %c2_i32_2, %arg2 : i32
    %6 = arith.addi %4, %5 : i32
    %c0_i32 = arith.constant 0 : i32
    %7 = arith.addi %6, %c0_i32 : i32
    %c0_i32_3 = arith.constant 0 : i32
    %c0_i32_4 = arith.constant 0 : i32
    %c0_i32_5 = arith.constant 0 : i32
    %c0_i32_6 = arith.constant 0 : i32
    return %7, %c0_i32_3, %c0_i32_4, %c0_i32_5 : i32, i32, i32, i32
  }
  func.func @transform_7(%arg0: i32, %arg1: i32, %arg2: i32) -> (i32, i32, i32, i32) {
    %c9_i32 = arith.constant 9 : i32
    %0 = arith.muli %arg0, %c9_i32 : i32
    %c2_i32 = arith.constant 2 : i32
    %1 = arith.muli %c2_i32, %arg1 : i32
    %2 = arith.addi %0, %1 : i32
    %c2_i32_0 = arith.constant 2 : i32
    %3 = arith.addi %2, %c2_i32_0 : i32
    %c9_i32_1 = arith.constant 9 : i32
    %4 = arith.muli %3, %c9_i32_1 : i32
    %c2_i32_2 = arith.constant 2 : i32
    %5 = arith.muli %c2_i32_2, %arg2 : i32
    %6 = arith.addi %4, %5 : i32
    %c1_i32 = arith.constant 1 : i32
    %7 = arith.addi %6, %c1_i32 : i32
    %c0_i32 = arith.constant 0 : i32
    %c0_i32_3 = arith.constant 0 : i32
    %c0_i32_4 = arith.constant 0 : i32
    %c0_i32_5 = arith.constant 0 : i32
    return %7, %c0_i32, %c0_i32_3, %c0_i32_4 : i32, i32, i32, i32
  }
  func.func @transform_8(%arg0: i32, %arg1: i32, %arg2: i32) -> (i32, i32, i32, i32) {
    %c9_i32 = arith.constant 9 : i32
    %0 = arith.muli %arg0, %c9_i32 : i32
    %c2_i32 = arith.constant 2 : i32
    %1 = arith.muli %c2_i32, %arg1 : i32
    %2 = arith.addi %0, %1 : i32
    %c2_i32_0 = arith.constant 2 : i32
    %3 = arith.addi %2, %c2_i32_0 : i32
    %c9_i32_1 = arith.constant 9 : i32
    %4 = arith.muli %3, %c9_i32_1 : i32
    %c2_i32_2 = arith.constant 2 : i32
    %5 = arith.muli %c2_i32_2, %arg2 : i32
    %6 = arith.addi %4, %5 : i32
    %c2_i32_3 = arith.constant 2 : i32
    %7 = arith.addi %6, %c2_i32_3 : i32
    %c0_i32 = arith.constant 0 : i32
    %c0_i32_4 = arith.constant 0 : i32
    %c0_i32_5 = arith.constant 0 : i32
    %c0_i32_6 = arith.constant 0 : i32
    return %7, %c0_i32, %c0_i32_4, %c0_i32_5 : i32, i32, i32, i32
  }
  func.func @transform_9(%arg0: i32, %arg1: i32, %arg2: i32) -> (i32, i32, i32) {
    %c0_i32 = arith.constant 0 : i32
    %c0_i32_0 = arith.constant 0 : i32
    %c0_i32_1 = arith.constant 0 : i32
    %c0_i32_2 = arith.constant 0 : i32
    return %c0_i32, %c0_i32_0, %c0_i32_1 : i32, i32, i32
  }
  func.func @transform_10(%arg0: i32, %arg1: i32, %arg2: i32) -> (i32, i32) {
    %c0_i32 = arith.constant 0 : i32
    %c0_i32_0 = arith.constant 0 : i32
    %c0_i32_1 = arith.constant 0 : i32
    return %c0_i32, %c0_i32_0 : i32, i32
  }
  func.func @transform_11(%arg0: i32, %arg1: i32, %arg2: i32) -> (i32, i32, i32) {
    %c4_i32 = arith.constant 4 : i32
    %0 = arith.muli %arg0, %c4_i32 : i32
    %c4_i32_0 = arith.constant 4 : i32
    %1 = arith.muli %0, %c4_i32_0 : i32
    %c4_i32_1 = arith.constant 4 : i32
    %2 = arith.muli %arg1, %c4_i32_1 : i32
    %3 = arith.addi %1, %2 : i32
    %4 = arith.addi %3, %arg2 : i32
    %c0_i32 = arith.constant 0 : i32
    %c0_i32_2 = arith.constant 0 : i32
    %c0_i32_3 = arith.constant 0 : i32
    return %4, %c0_i32, %c0_i32_2 : i32, i32, i32
  }
}

</mosaic_0001>

<llo_original>
// kernel: stride_conv3d_block.1
$region0: #{stride_conv3d_block.1}
  #allocation0 [shape = 'u32[]', space=smem, size = 0x4, offset = 0x4, fixed_abs, tag = 'smem constant byte address 0x4 - core index']
  #allocation1 [shape = 'u32[144,128]{1,0:T(1,128)}', space=vmem, size = 0x12000, scoped, tag = 'internal scratch']
  %s0 = inlined_call_operand.vmem [shape: bf16[162,2,5,4], index: 0, kind: input, shape index: {}, may-alias: {0,1,2,3,4,5,6,7,8}]
  %s1 = inlined_call_operand.vmem [shape: bf16[162,2,5,4], index: 1, kind: input, shape index: {}, may-alias: {0,1,2,3,4,5,6,7,8}]
  %s2 = inlined_call_operand.vmem [shape: bf16[162,2,5,4], index: 2, kind: input, shape index: {}, may-alias: {0,1,2,3,4,5,6,7,8}]
  %s3 = inlined_call_operand.vmem [shape: bf16[162,2,5,4], index: 3, kind: input, shape index: {}, may-alias: {0,1,2,3,4,5,6,7,8}]
  %s4 = inlined_call_operand.vmem [shape: bf16[162,2,5,4], index: 4, kind: input, shape index: {}, may-alias: {0,1,2,3,4,5,6,7,8}]
  %s5 = inlined_call_operand.vmem [shape: bf16[162,2,5,4], index: 5, kind: input, shape index: {}, may-alias: {0,1,2,3,4,5,6,7,8}]
  %s6 = inlined_call_operand.vmem [shape: bf16[162,2,5,4], index: 6, kind: input, shape index: {}, may-alias: {0,1,2,3,4,5,6,7,8}]
  %s7 = inlined_call_operand.vmem [shape: bf16[162,2,5,4], index: 7, kind: input, shape index: {}, may-alias: {0,1,2,3,4,5,6,7,8}]
  %s8 = inlined_call_operand.vmem [shape: bf16[162,2,5,4], index: 8, kind: input, shape index: {}, may-alias: {0,1,2,3,4,5,6,7,8}]
  %s9 = inlined_call_operand.vmem [shape: bf16[27,4,8], index: 9, kind: input, shape index: {}]
  %s10 = inlined_call_operand.vmem [shape: f32[1,8], index: 10, kind: input, shape index: {}]
  %s11 = inlined_call_operand.vmem [shape: bf16[32,4,8], index: 11, kind: output, shape index: {}]
  %s12 = sld [smem:[#allocation0]]
  $region77: #{stride_conv3d_block.1} parent=0
    _
  %s14 = ssub.s32 1, %s12
  %s15 = scalar_select 0, %s14, %s12
  loop: start=0, step=1, limit=34
  $region2: #{stride_conv3d_block.1} parent=0 // loop_pre_header
    _
  $region3: #{stride_conv3d_block.1} parent=0 // loop_header
    %s17 = sphi 0, %s21
    %p18 = scmp.ge.s32.totalorder %s17, 34
    %s24 = sphi 0, %s43
    %s25 = sphi 0, %s39
    %s26 = sphi 0, %s35
    %s27 = sphi 0, %s24
    %s28 = sphi 0, %s25
    %s29 = sphi 0, %s26
    %s30 = sphi 0, %s27
    %s31 = sphi 0, %s28
    %s32 = sphi 0, %s29
    %s58 = sphi 0, %s60
    %s61 = sphi 0, %s58
    %s62 = sphi 0, %s61
    %s78 = sphi 0, %s62
    %s98 = sphi 0, %s100
    %s101 = sphi 0, %s98
    %s102 = sphi 0, %s101
    %s118 = sphi 0, %s102
    %s138 = sphi 0, %s140
    %s141 = sphi 0, %s138
    %s142 = sphi 0, %s141
    %s158 = sphi 0, %s142
    %s178 = sphi 0, %s180
    %s181 = sphi 0, %s178
    %s182 = sphi 0, %s181
    %s198 = sphi 0, %s182
    %s220 = sphi 0, %s222
    %s223 = sphi 0, %s220
    %s224 = sphi 0, %s223
    %s240 = sphi 0, %s224
    %s262 = sphi 0, %s264
    %s265 = sphi 0, %s262
    %s266 = sphi 0, %s265
    %s282 = sphi 0, %s266
    %s302 = sphi 0, %s304
    %s305 = sphi 0, %s302
    %s306 = sphi 0, %s305
    %s322 = sphi 0, %s306
    %s344 = sphi 0, %s346
    %s347 = sphi 0, %s344
    %s348 = sphi 0, %s347
    %s364 = sphi 0, %s348
    %s386 = sphi 0, %s388
    %s389 = sphi 0, %s386
    %s390 = sphi 0, %s389
    %s406 = sphi 0, %s390
    %s410 = sphi 0, %s410
    %s412 = sphi 0, %s410
    %s413 = sphi 0, %s412
    %s427 = sphi 0, %s413
    %s431 = sphi 0, %s431
    %s433 = sphi 0, %s431
    %s434 = sphi 0, %s433
    %s448 = sphi 0, %s434
    %s462 = sphi 0, %s464
    %s465 = sphi 0, %s462
    %s466 = sphi 0, %s465
    %s482 = sphi 0, %s466
  $region4: #{stride_conv3d_block.1} parent=0 // loop_header_branch
    %20 = sbr.rel (%p18) target = $region8
  $region5: #{stride_conv3d_block.1} parent=0 // loop_body
    %s22 = ssub.s32 %s17, 1
    %s23 = ssub.s32 %s17, 2
    %s33 = sadd.s32 1, %s26
    %p34 = scmp.ge.s32.totalorder %s33, 4
    %s35 = scalar_select %p34, 0, %s33
    %s36 = sadd.s32 1, %s25
    %s37 = scalar_select %p34, %s36, %s25
    %p38 = scmp.ge.s32.totalorder %s37, 4
    %s39 = scalar_select %p38, 0, %s37
    %s40 = sadd.s32 1, %s24
    %s41 = scalar_select %p38, %s40, %s24
    %p42 = scmp.ge.s32.totalorder %s41, 2
    %s43 = scalar_select %p42, 0, %s41
    %s44 = smul.u32 %s24, 9
    %s45 = smul.u32 %s25, 2
    %s46 = sadd.s32 %s44, %s45
    %s47 = smul.u32 %s46, 9
    %s48 = smul.u32 %s26, 2
    %s49 = sadd.s32 %s47, %s48
    %s50 = smul.u32 %s43, 9
    %s51 = smul.u32 %s39, 2
    %s52 = sadd.s32 %s50, %s51
    %s53 = smul.u32 %s52, 9
    %s54 = smul.u32 %s35, 2
    %s55 = sadd.s32 %s53, %s54
    %s56 = ssub.s32 %s49, %s55
    %p57 = scmp.eq.s32.totalorder %s56, 0
    %s59 = sadd.s32 %s58, 1
    %s60 = scalar_select %p57, %s58, %s59
    %p63 = pneg %p57
    %p64 = scmp.eq.s32.totalorder %s17, 31
    %p65 = por %p63, %p64
    %p66 = scmp.ne.s32.totalorder %s58, %s61
    %p67 = scmp.eq.s32.totalorder %s17, 0
    %p68 = por %p66, %p67
    %p69 = scmp.ne.s32.totalorder %s58, %s61
    %p70 = scmp.eq.s32.totalorder %s22, 31
    %p71 = por %p69, %p70
    %p72 = scmp.ne.s32.totalorder %s61, %s62
    %p73 = scmp.eq.s32.totalorder %s22, 0
    %p74 = por %p72, %p73
    %p75 = scmp.ne.s32.totalorder %s61, %s62
    %p76 = scmp.eq.s32.totalorder %s23, 31
    %p77 = por %p75, %p76
    %p79 = scmp.ne.s32.totalorder %s62, %s78
    %p80 = scmp.eq.s32.totalorder %s23, 0
    %p81 = por %p79, %p80
    %s82 = smul.u32 %s24, 9
    %s83 = smul.u32 %s25, 2
    %s84 = sadd.s32 %s82, %s83
    %s85 = smul.u32 %s84, 9
    %s86 = smul.u32 %s26, 2
    %s87 = sadd.s32 %s85, %s86
    %s88 = sadd.s32 %s87, 1
    %s89 = smul.u32 %s43, 9
    %s90 = smul.u32 %s39, 2
    %s91 = sadd.s32 %s89, %s90
    %s92 = smul.u32 %s91, 9
    %s93 = smul.u32 %s35, 2
    %s94 = sadd.s32 %s92, %s93
    %s95 = sadd.s32 %s94, 1
    %s96 = ssub.s32 %s88, %s95
    %p97 = scmp.eq.s32.totalorder %s96, 0
    %s99 = sadd.s32 %s98, 1
    %s100 = scalar_select %p97, %s98, %s99
    %p103 = pneg %p97
    %p104 = scmp.eq.s32.totalorder %s17, 31
    %p105 = por %p103, %p104
    %p106 = scmp.ne.s32.totalorder %s98, %s101
    %p107 = scmp.eq.s32.totalorder %s17, 0
    %p108 = por %p106, %p107
    %p109 = scmp.ne.s32.totalorder %s98, %s101
    %p110 = scmp.eq.s32.totalorder %s22, 31
    %p111 = por %p109, %p110
    %p112 = scmp.ne.s32.totalorder %s101, %s102
    %p113 = scmp.eq.s32.totalorder %s22, 0
    %p114 = por %p112, %p113
    %p115 = scmp.ne.s32.totalorder %s101, %s102
    %p116 = scmp.eq.s32.totalorder %s23, 31
    %p117 = por %p115, %p116
    %p119 = scmp.ne.s32.totalorder %s102, %s118
    %p120 = scmp.eq.s32.totalorder %s23, 0
    %p121 = por %p119, %p120
    %s122 = smul.u32 %s24, 9
    %s123 = smul.u32 %s25, 2
    %s124 = sadd.s32 %s122, %s123
    %s125 = smul.u32 %s124, 9
    %s126 = smul.u32 %s26, 2
    %s127 = sadd.s32 %s125, %s126
    %s128 = sadd.s32 %s127, 2
    %s129 = smul.u32 %s43, 9
    %s130 = smul.u32 %s39, 2
    %s131 = sadd.s32 %s129, %s130
    %s132 = smul.u32 %s131, 9
    %s133 = smul.u32 %s35, 2
    %s134 = sadd.s32 %s132, %s133
    %s135 = sadd.s32 %s134, 2
    %s136 = ssub.s32 %s128, %s135
    %p137 = scmp.eq.s32.totalorder %s136, 0
    %s139 = sadd.s32 %s138, 1
    %s140 = scalar_select %p137, %s138, %s139
    %p143 = pneg %p137
    %p144 = scmp.eq.s32.totalorder %s17, 31
    %p145 = por %p143, %p144
    %p146 = scmp.ne.s32.totalorder %s138, %s141
    %p147 = scmp.eq.s32.totalorder %s17, 0
    %p148 = por %p146, %p147
    %p149 = scmp.ne.s32.totalorder %s138, %s141
    %p150 = scmp.eq.s32.totalorder %s22, 31
    %p151 = por %p149, %p150
    %p152 = scmp.ne.s32.totalorder %s141, %s142
    %p153 = scmp.eq.s32.totalorder %s22, 0
    %p154 = por %p152, %p153
    %p155 = scmp.ne.s32.totalorder %s141, %s142
    %p156 = scmp.eq.s32.totalorder %s23, 31
    %p157 = por %p155, %p156
    %p159 = scmp.ne.s32.totalorder %s142, %s158
    %p160 = scmp.eq.s32.totalorder %s23, 0
    %p161 = por %p159, %p160
    %s162 = smul.u32 %s24, 9
    %s163 = smul.u32 %s25, 2
    %s164 = sadd.s32 %s162, %s163
    %s165 = sadd.s32 %s164, 1
    %s166 = smul.u32 %s165, 9
    %s167 = smul.u32 %s26, 2
    %s168 = sadd.s32 %s166, %s167
    %s169 = smul.u32 %s43, 9
    %s170 = smul.u32 %s39, 2
    %s171 = sadd.s32 %s169, %s170
    %s172 = sadd.s32 %s171, 1
    %s173 = smul.u32 %s172, 9
    %s174 = smul.u32 %s35, 2
    %s175 = sadd.s32 %s173, %s174
    %s176 = ssub.s32 %s168, %s175
    %p177 = scmp.eq.s32.totalorder %s176, 0
    %s179 = sadd.s32 %s178, 1
    %s180 = scalar_select %p177, %s178, %s179
    %p183 = pneg %p177
    %p184 = scmp.eq.s32.totalorder %s17, 31
    %p185 = por %p183, %p184
    %p186 = scmp.ne.s32.totalorder %s178, %s181
    %p187 = scmp.eq.s32.totalorder %s17, 0
    %p188 = por %p186, %p187
    %p189 = scmp.ne.s32.totalorder %s178, %s181
    %p190 = scmp.eq.s32.totalorder %s22, 31
    %p191 = por %p189, %p190
    %p192 = scmp.ne.s32.totalorder %s181, %s182
    %p193 = scmp.eq.s32.totalorder %s22, 0
    %p194 = por %p192, %p193
    %p195 = scmp.ne.s32.totalorder %s181, %s182
    %p196 = scmp.eq.s32.totalorder %s23, 31
    %p197 = por %p195, %p196
    %p199 = scmp.ne.s32.totalorder %s182, %s198
    %p200 = scmp.eq.s32.totalorder %s23, 0
    %p201 = por %p199, %p200
    %s202 = smul.u32 %s24, 9
    %s203 = smul.u32 %s25, 2
    %s204 = sadd.s32 %s202, %s203
    %s205 = sadd.s32 %s204, 1
    %s206 = smul.u32 %s205, 9
    %s207 = smul.u32 %s26, 2
    %s208 = sadd.s32 %s206, %s207
    %s209 = sadd.s32 %s208, 1
    %s210 = smul.u32 %s43, 9
    %s211 = smul.u32 %s39, 2
    %s212 = sadd.s32 %s210, %s211
    %s213 = sadd.s32 %s212, 1
    %s214 = smul.u32 %s213, 9
    %s215 = smul.u32 %s35, 2
    %s216 = sadd.s32 %s214, %s215
    %s217 = sadd.s32 %s216, 1
    %s218 = ssub.s32 %s209, %s217
    %p219 = scmp.eq.s32.totalorder %s218, 0
    %s221 = sadd.s32 %s220, 1
    %s222 = scalar_select %p219, %s220, %s221
    %p225 = pneg %p219
    %p226 = scmp.eq.s32.totalorder %s17, 31
    %p227 = por %p225, %p226
    %p228 = scmp.ne.s32.totalorder %s220, %s223
    %p229 = scmp.eq.s32.totalorder %s17, 0
    %p230 = por %p228, %p229
    %p231 = scmp.ne.s32.totalorder %s220, %s223
    %p232 = scmp.eq.s32.totalorder %s22, 31
    %p233 = por %p231, %p232
    %p234 = scmp.ne.s32.totalorder %s223, %s224
    %p235 = scmp.eq.s32.totalorder %s22, 0
    %p236 = por %p234, %p235
    %p237 = scmp.ne.s32.totalorder %s223, %s224
    %p238 = scmp.eq.s32.totalorder %s23, 31
    %p239 = por %p237, %p238
    %p241 = scmp.ne.s32.totalorder %s224, %s240
    %p242 = scmp.eq.s32.totalorder %s23, 0
    %p243 = por %p241, %p242
    %s244 = smul.u32 %s24, 9
    %s245 = smul.u32 %s25, 2
    %s246 = sadd.s32 %s244, %s245
    %s247 = sadd.s32 %s246, 1
    %s248 = smul.u32 %s247, 9
    %s249 = smul.u32 %s26, 2
    %s250 = sadd.s32 %s248, %s249
    %s251 = sadd.s32 %s250, 2
    %s252 = smul.u32 %s43, 9
    %s253 = smul.u32 %s39, 2
    %s254 = sadd.s32 %s252, %s253
    %s255 = sadd.s32 %s254, 1
    %s256 = smul.u32 %s255, 9
    %s257 = smul.u32 %s35, 2
    %s258 = sadd.s32 %s256, %s257
    %s259 = sadd.s32 %s258, 2
    %s260 = ssub.s32 %s251, %s259
    %p261 = scmp.eq.s32.totalorder %s260, 0
    %s263 = sadd.s32 %s262, 1
    %s264 = scalar_select %p261, %s262, %s263
    %p267 = pneg %p261
    %p268 = scmp.eq.s32.totalorder %s17, 31
    %p269 = por %p267, %p268
    %p270 = scmp.ne.s32.totalorder %s262, %s265
    %p271 = scmp.eq.s32.totalorder %s17, 0
    %p272 = por %p270, %p271
    %p273 = scmp.ne.s32.totalorder %s262, %s265
    %p274 = scmp.eq.s32.totalorder %s22, 31
    %p275 = por %p273, %p274
    %p276 = scmp.ne.s32.totalorder %s265, %s266
    %p277 = scmp.eq.s32.totalorder %s22, 0
    %p278 = por %p276, %p277
    %p279 = scmp.ne.s32.totalorder %s265, %s266
    %p280 = scmp.eq.s32.totalorder %s23, 31
    %p281 = por %p279, %p280
    %p283 = scmp.ne.s32.totalorder %s266, %s282
    %p284 = scmp.eq.s32.totalorder %s23, 0
    %p285 = por %p283, %p284
    %s286 = smul.u32 %s24, 9
    %s287 = smul.u32 %s25, 2
    %s288 = sadd.s32 %s286, %s287
    %s289 = sadd.s32 %s288, 2
    %s290 = smul.u32 %s289, 9
    %s291 = smul.u32 %s26, 2
    %s292 = sadd.s32 %s290, %s291
    %s293 = smul.u32 %s43, 9
    %s294 = smul.u32 %s39, 2
    %s295 = sadd.s32 %s293, %s294
    %s296 = sadd.s32 %s295, 2
    %s297 = smul.u32 %s296, 9
    %s298 = smul.u32 %s35, 2
    %s299 = sadd.s32 %s297, %s298
    %s300 = ssub.s32 %s292, %s299
    %p301 = scmp.eq.s32.totalorder %s300, 0
    %s303 = sadd.s32 %s302, 1
    %s304 = scalar_select %p301, %s302, %s303
    %p307 = pneg %p301
    %p308 = scmp.eq.s32.totalorder %s17, 31
    %p309 = por %p307, %p308
    %p310 = scmp.ne.s32.totalorder %s302, %s305
    %p311 = scmp.eq.s32.totalorder %s17, 0
    %p312 = por %p310, %p311
    %p313 = scmp.ne.s32.totalorder %s302, %s305
    %p314 = scmp.eq.s32.totalorder %s22, 31
    %p315 = por %p313, %p314
    %p316 = scmp.ne.s32.totalorder %s305, %s306
    %p317 = scmp.eq.s32.totalorder %s22, 0
    %p318 = por %p316, %p317
    %p319 = scmp.ne.s32.totalorder %s305, %s306
    %p320 = scmp.eq.s32.totalorder %s23, 31
    %p321 = por %p319, %p320
    %p323 = scmp.ne.s32.totalorder %s306, %s322
    %p324 = scmp.eq.s32.totalorder %s23, 0
    %p325 = por %p323, %p324
    %s326 = smul.u32 %s24, 9
    %s327 = smul.u32 %s25, 2
    %s328 = sadd.s32 %s326, %s327
    %s329 = sadd.s32 %s328, 2
    %s330 = smul.u32 %s329, 9
    %s331 = smul.u32 %s26, 2
    %s332 = sadd.s32 %s330, %s331
    %s333 = sadd.s32 %s332, 1
    %s334 = smul.u32 %s43, 9
    %s335 = smul.u32 %s39, 2
    %s336 = sadd.s32 %s334, %s335
    %s337 = sadd.s32 %s336, 2
    %s338 = smul.u32 %s337, 9
    %s339 = smul.u32 %s35, 2
    %s340 = sadd.s32 %s338, %s339
    %s341 = sadd.s32 %s340, 1
    %s342 = ssub.s32 %s333, %s341
    %p343 = scmp.eq.s32.totalorder %s342, 0
    %s345 = sadd.s32 %s344, 1
    %s346 = scalar_select %p343, %s344, %s345
    %p349 = pneg %p343
    %p350 = scmp.eq.s32.totalorder %s17, 31
    %p351 = por %p349, %p350
    %p352 = scmp.ne.s32.totalorder %s344, %s347
    %p353 = scmp.eq.s32.totalorder %s17, 0
    %p354 = por %p352, %p353
    %p355 = scmp.ne.s32.totalorder %s344, %s347
    %p356 = scmp.eq.s32.totalorder %s22, 31
    %p357 = por %p355, %p356
    %p358 = scmp.ne.s32.totalorder %s347, %s348
    %p359 = scmp.eq.s32.totalorder %s22, 0
    %p360 = por %p358, %p359
    %p361 = scmp.ne.s32.totalorder %s347, %s348
    %p362 = scmp.eq.s32.totalorder %s23, 31
    %p363 = por %p361, %p362
    %p365 = scmp.ne.s32.totalorder %s348, %s364
    %p366 = scmp.eq.s32.totalorder %s23, 0
    %p367 = por %p365, %p366
    %s368 = smul.u32 %s24, 9
    %s369 = smul.u32 %s25, 2
    %s370 = sadd.s32 %s368, %s369
    %s371 = sadd.s32 %s370, 2
    %s372 = smul.u32 %s371, 9
    %s373 = smul.u32 %s26, 2
    %s374 = sadd.s32 %s372, %s373
    %s375 = sadd.s32 %s374, 2
    %s376 = smul.u32 %s43, 9
    %s377 = smul.u32 %s39, 2
    %s378 = sadd.s32 %s376, %s377
    %s379 = sadd.s32 %s378, 2
    %s380 = smul.u32 %s379, 9
    %s381 = smul.u32 %s35, 2
    %s382 = sadd.s32 %s380, %s381
    %s383 = sadd.s32 %s382, 2
    %s384 = ssub.s32 %s375, %s383
    %p385 = scmp.eq.s32.totalorder %s384, 0
    %s387 = sadd.s32 %s386, 1
    %s388 = scalar_select %p385, %s386, %s387
    %p391 = pneg %p385
    %p392 = scmp.eq.s32.totalorder %s17, 31
    %p393 = por %p391, %p392
    %p394 = scmp.ne.s32.totalorder %s386, %s389
    %p395 = scmp.eq.s32.totalorder %s17, 0
    %p396 = por %p394, %p395
    %p397 = scmp.ne.s32.totalorder %s386, %s389
    %p398 = scmp.eq.s32.totalorder %s22, 31
    %p399 = por %p397, %p398
    %p400 = scmp.ne.s32.totalorder %s389, %s390
    %p401 = scmp.eq.s32.totalorder %s22, 0
    %p402 = por %p400, %p401
    %p403 = scmp.ne.s32.totalorder %s389, %s390
    %p404 = scmp.eq.s32.totalorder %s23, 31
    %p405 = por %p403, %p404
    %p407 = scmp.ne.s32.totalorder %s390, %s406
    %p408 = scmp.eq.s32.totalorder %s23, 0
    %p409 = por %p407, %p408
    %s411 = sadd.s32 %s410, 1
    %p414 = scmp.eq.s32.totalorder %s17, 31
    %p415 = scmp.ne.s32.totalorder %s410, %s412
    %p416 = scmp.eq.s32.totalorder %s17, 0
    %p417 = por %p415, %p416
    %p418 = scmp.ne.s32.totalorder %s410, %s412
    %p419 = scmp.eq.s32.totalorder %s22, 31
    %p420 = por %p418, %p419
    %p421 = scmp.ne.s32.totalorder %s412, %s413
    %p422 = scmp.eq.s32.totalorder %s22, 0
    %p423 = por %p421, %p422
    %p424 = scmp.ne.s32.totalorder %s412, %s413
    %p425 = scmp.eq.s32.totalorder %s23, 31
    %p426 = por %p424, %p425
    %p428 = scmp.ne.s32.totalorder %s413, %s427
    %p429 = scmp.eq.s32.totalorder %s23, 0
    %p430 = por %p428, %p429
    %s432 = sadd.s32 %s431, 1
    %p435 = scmp.eq.s32.totalorder %s17, 31
    %p436 = scmp.ne.s32.totalorder %s431, %s433
    %p437 = scmp.eq.s32.totalorder %s17, 0
    %p438 = por %p436, %p437
    %p439 = scmp.ne.s32.totalorder %s431, %s433
    %p440 = scmp.eq.s32.totalorder %s22, 31
    %p441 = por %p439, %p440
    %p442 = scmp.ne.s32.totalorder %s433, %s434
    %p443 = scmp.eq.s32.totalorder %s22, 0
    %p444 = por %p442, %p443
    %p445 = scmp.ne.s32.totalorder %s433, %s434
    %p446 = scmp.eq.s32.totalorder %s23, 31
    %p447 = por %p445, %p446
    %p449 = scmp.ne.s32.totalorder %s434, %s448
    %p450 = scmp.eq.s32.totalorder %s23, 0
    %p451 = por %p449, %p450
    %s452 = smul.u32 %s24, 16
    %s453 = smul.u32 %s25, 4
    %s454 = sadd.s32 %s452, %s453
    %s455 = sadd.s32 %s454, %s26
    %s456 = smul.u32 %s43, 16
    %s457 = smul.u32 %s39, 4
    %s458 = sadd.s32 %s456, %s457
    %s459 = sadd.s32 %s458, %s35
    %s460 = ssub.s32 %s455, %s459
    %p461 = scmp.eq.s32.totalorder %s460, 0
    %s463 = sadd.s32 %s462, 1
    %s464 = scalar_select %p461, %s462, %s463
    %p467 = pneg %p461
    %p468 = scmp.eq.s32.totalorder %s17, 31
    %p469 = por %p467, %p468
    %p470 = scmp.ne.s32.totalorder %s462, %s465
    %p471 = scmp.eq.s32.totalorder %s17, 0
    %p472 = por %p470, %p471
    %p473 = scmp.ne.s32.totalorder %s462, %s465
    %p474 = scmp.eq.s32.totalorder %s22, 31
    %p475 = por %p473, %p474
    %p476 = scmp.ne.s32.totalorder %s465, %s466
    %p477 = scmp.eq.s32.totalorder %s22, 0
    %p478 = por %p476, %p477
    %p479 = scmp.ne.s32.totalorder %s465, %s466
    %p480 = scmp.eq.s32.totalorder %s23, 31
    %p481 = por %p479, %p480
    %p483 = scmp.ne.s32.totalorder %s466, %s482
    %p484 = scmp.eq.s32.totalorder %s23, 0
    %p485 = por %p483, %p484
    %p486 = scmp.le.s32.totalorder 1, %s17
    %p487 = scmp.lt.s32.totalorder %s17, 33
    %p488 = pnand %p486, %p487
    %p489 = pneg %p488
    // Predicated region
    $region9: #{stride_conv3d_block.1} parent=5 // pred_check
      _
    $region10: #{stride_conv3d_block.1} parent=5 // pred_check_branch
      %491 = sbr.rel (%p488) target = $region12
    $region11: #{stride_conv3d_block.1} parent=5 // pred_region
      %s492 = ssub.s32 %s17, 1
      // Predicated region
      $region13: #{stride_conv3d_block.1} parent=11 // pred_check
        %p493 = pneg %p423
      $region14: #{stride_conv3d_block.1} parent=11 // pred_check_branch
        %495 = sbr.rel (%p493) target = $region16
      $region15: #{stride_conv3d_block.1} parent=11 // pred_region
        _
      $region16: #{stride_conv3d_block.1} parent=11 // pred_fallthru
        _
      // Predicated region
      $region17: #{stride_conv3d_block.1} parent=11 // pred_check
        %p496 = pneg %p444
      $region18: #{stride_conv3d_block.1} parent=11 // pred_check_branch
        %498 = sbr.rel (%p496) target = $region20
      $region19: #{stride_conv3d_block.1} parent=11 // pred_region
        _
      $region20: #{stride_conv3d_block.1} parent=11 // pred_fallthru
        _
    $region12: #{stride_conv3d_block.1} parent=5 // pred_fallthru
      _
    %p499 = scmp.lt.s32.totalorder %s17, 32
    // Predicated region
    $region21: #{stride_conv3d_block.1} parent=5 // pred_check
      %p500 = pneg %p499
    $region22: #{stride_conv3d_block.1} parent=5 // pred_check_branch
      %502 = sbr.rel (%p500) target = $region24
    $region23: #{stride_conv3d_block.1} parent=5 // pred_region
      // Predicated region
      $region25: #{stride_conv3d_block.1} parent=23 // pred_check
        %p503 = pneg %p68
      $region26: #{stride_conv3d_block.1} parent=23 // pred_check_branch
        %505 = sbr.rel (%p503) target = $region28
      $region27: #{stride_conv3d_block.1} parent=23 // pred_region
        %s506 = smul.u32 %s24, 9
        %s507 = smul.u32 %s25, 2
        %s508 = sadd.s32 %s506, %s507
        %s509 = smul.u32 %s508, 9
        %s510 = smul.u32 %s26, 2
        %s511 = sadd.s32 %s509, %s510
        %p512 = scmp.lt.s32.totalorder %s511, 161
        %s513 = scalar_select %p512, %s511, 161
        %s514 = smul.addr %s513, 2
        %s515 = smul.addr %s514, 4
        %s516 = scalar_lea.vmem %s0, %s515
        %s517 = smul.u32 %s24, 9
        %s518 = smul.u32 %s25, 2
        %s519 = sadd.s32 %s517, %s518
        %s520 = smul.u32 %s519, 9
        %s521 = smul.u32 %s26, 2
        %s522 = sadd.s32 %s520, %s521
      $region28: #{stride_conv3d_block.1} parent=23 // pred_fallthru
        _
      // Predicated region
      $region29: #{stride_conv3d_block.1} parent=23 // pred_check
        %p523 = pneg %p108
      $region30: #{stride_conv3d_block.1} parent=23 // pred_check_branch
        %525 = sbr.rel (%p523) target = $region32
      $region31: #{stride_conv3d_block.1} parent=23 // pred_region
        %s526 = smul.u32 %s24, 9
        %s527 = smul.u32 %s25, 2
        %s528 = sadd.s32 %s526, %s527
        %s529 = smul.u32 %s528, 9
        %s530 = smul.u32 %s26, 2
        %s531 = sadd.s32 %s529, %s530
        %s532 = sadd.s32 %s531, 1
        %p533 = scmp.lt.s32.totalorder %s532, 161
        %s534 = scalar_select %p533, %s532, 161
        %s535 = smul.addr %s534, 2
        %s536 = smul.addr %s535, 4
        %s537 = scalar_lea.vmem %s1, %s536
        %s538 = smul.u32 %s24, 9
        %s539 = smul.u32 %s25, 2
        %s540 = sadd.s32 %s538, %s539
        %s541 = smul.u32 %s540, 9
        %s542 = smul.u32 %s26, 2
        %s543 = sadd.s32 %s541, %s542
        %s544 = sadd.s32 %s543, 1
      $region32: #{stride_conv3d_block.1} parent=23 // pred_fallthru
        _
      // Predicated region
      $region33: #{stride_conv3d_block.1} parent=23 // pred_check
        %p545 = pneg %p148
      $region34: #{stride_conv3d_block.1} parent=23 // pred_check_branch
        %547 = sbr.rel (%p545) target = $region36
      $region35: #{stride_conv3d_block.1} parent=23 // pred_region
        %s548 = smul.u32 %s24, 9
        %s549 = smul.u32 %s25, 2
        %s550 = sadd.s32 %s548, %s549
        %s551 = smul.u32 %s550, 9
        %s552 = smul.u32 %s26, 2
        %s553 = sadd.s32 %s551, %s552
        %s554 = sadd.s32 %s553, 2
        %p555 = scmp.lt.s32.totalorder %s554, 161
        %s556 = scalar_select %p555, %s554, 161
        %s557 = smul.addr %s556, 2
        %s558 = smul.addr %s557, 4
        %s559 = scalar_lea.vmem %s2, %s558
        %s560 = smul.u32 %s24, 9
        %s561 = smul.u32 %s25, 2
        %s562 = sadd.s32 %s560, %s561
        %s563 = smul.u32 %s562, 9
        %s564 = smul.u32 %s26, 2
        %s565 = sadd.s32 %s563, %s564
        %s566 = sadd.s32 %s565, 2
      $region36: #{stride_conv3d_block.1} parent=23 // pred_fallthru
        _
      // Predicated region
      $region37: #{stride_conv3d_block.1} parent=23 // pred_check
        %p567 = pneg %p188
      $region38: #{stride_conv3d_block.1} parent=23 // pred_check_branch
        %569 = sbr.rel (%p567) target = $region40
      $region39: #{stride_conv3d_block.1} parent=23 // pred_region
        %s570 = smul.u32 %s24, 9
        %s571 = smul.u32 %s25, 2
        %s572 = sadd.s32 %s570, %s571
        %s573 = sadd.s32 %s572, 1
        %s574 = smul.u32 %s573, 9
        %s575 = smul.u32 %s26, 2
        %s576 = sadd.s32 %s574, %s575
        %p577 = scmp.lt.s32.totalorder %s576, 161
        %s578 = scalar_select %p577, %s576, 161
        %s579 = smul.addr %s578, 2
        %s580 = smul.addr %s579, 4
        %s581 = scalar_lea.vmem %s3, %s580
        %s582 = smul.u32 %s24, 9
        %s583 = smul.u32 %s25, 2
        %s584 = sadd.s32 %s582, %s583
        %s585 = sadd.s32 %s584, 1
        %s586 = smul.u32 %s585, 9
        %s587 = smul.u32 %s26, 2
        %s588 = sadd.s32 %s586, %s587
      $region40: #{stride_conv3d_block.1} parent=23 // pred_fallthru
        _
      // Predicated region
      $region41: #{stride_conv3d_block.1} parent=23 // pred_check
        %p589 = pneg %p230
      $region42: #{stride_conv3d_block.1} parent=23 // pred_check_branch
        %591 = sbr.rel (%p589) target = $region44
      $region43: #{stride_conv3d_block.1} parent=23 // pred_region
        %s592 = smul.u32 %s24, 9
        %s593 = smul.u32 %s25, 2
        %s594 = sadd.s32 %s592, %s593
        %s595 = sadd.s32 %s594, 1
        %s596 = smul.u32 %s595, 9
        %s597 = smul.u32 %s26, 2
        %s598 = sadd.s32 %s596, %s597
        %s599 = sadd.s32 %s598, 1
        %p600 = scmp.lt.s32.totalorder %s599, 161
        %s601 = scalar_select %p600, %s599, 161
        %s602 = smul.addr %s601, 2
        %s603 = smul.addr %s602, 4
        %s604 = scalar_lea.vmem %s4, %s603
        %s605 = smul.u32 %s24, 9
        %s606 = smul.u32 %s25, 2
        %s607 = sadd.s32 %s605, %s606
        %s608 = sadd.s32 %s607, 1
        %s609 = smul.u32 %s608, 9
        %s610 = smul.u32 %s26, 2
        %s611 = sadd.s32 %s609, %s610
        %s612 = sadd.s32 %s611, 1
      $region44: #{stride_conv3d_block.1} parent=23 // pred_fallthru
        _
      // Predicated region
      $region45: #{stride_conv3d_block.1} parent=23 // pred_check
        %p613 = pneg %p272
      $region46: #{stride_conv3d_block.1} parent=23 // pred_check_branch
        %615 = sbr.rel (%p613) target = $region48
      $region47: #{stride_conv3d_block.1} parent=23 // pred_region
        %s616 = smul.u32 %s24, 9
        %s617 = smul.u32 %s25, 2
        %s618 = sadd.s32 %s616, %s617
        %s619 = sadd.s32 %s618, 1
        %s620 = smul.u32 %s619, 9
        %s621 = smul.u32 %s26, 2
        %s622 = sadd.s32 %s620, %s621
        %s623 = sadd.s32 %s622, 2
        %p624 = scmp.lt.s32.totalorder %s623, 161
        %s625 = scalar_select %p624, %s623, 161
        %s626 = smul.addr %s625, 2
        %s627 = smul.addr %s626, 4
        %s628 = scalar_lea.vmem %s5, %s627
        %s629 = smul.u32 %s24, 9
        %s630 = smul.u32 %s25, 2
        %s631 = sadd.s32 %s629, %s630
        %s632 = sadd.s32 %s631, 1
        %s633 = smul.u32 %s632, 9
        %s634 = smul.u32 %s26, 2
        %s635 = sadd.s32 %s633, %s634
        %s636 = sadd.s32 %s635, 2
      $region48: #{stride_conv3d_block.1} parent=23 // pred_fallthru
        _
      // Predicated region
      $region49: #{stride_conv3d_block.1} parent=23 // pred_check
        %p637 = pneg %p312
      $region50: #{stride_conv3d_block.1} parent=23 // pred_check_branch
        %639 = sbr.rel (%p637) target = $region52
      $region51: #{stride_conv3d_block.1} parent=23 // pred_region
        %s640 = smul.u32 %s24, 9
        %s641 = smul.u32 %s25, 2
        %s642 = sadd.s32 %s640, %s641
        %s643 = sadd.s32 %s642, 2
        %s644 = smul.u32 %s643, 9
        %s645 = smul.u32 %s26, 2
        %s646 = sadd.s32 %s644, %s645
        %p647 = scmp.lt.s32.totalorder %s646, 161
        %s648 = scalar_select %p647, %s646, 161
        %s649 = smul.addr %s648, 2
        %s650 = smul.addr %s649, 4
        %s651 = scalar_lea.vmem %s6, %s650
        %s652 = smul.u32 %s24, 9
        %s653 = smul.u32 %s25, 2
        %s654 = sadd.s32 %s652, %s653
        %s655 = sadd.s32 %s654, 2
        %s656 = smul.u32 %s655, 9
        %s657 = smul.u32 %s26, 2
        %s658 = sadd.s32 %s656, %s657
      $region52: #{stride_conv3d_block.1} parent=23 // pred_fallthru
        _
      // Predicated region
      $region53: #{stride_conv3d_block.1} parent=23 // pred_check
        %p659 = pneg %p354
      $region54: #{stride_conv3d_block.1} parent=23 // pred_check_branch
        %661 = sbr.rel (%p659) target = $region56
      $region55: #{stride_conv3d_block.1} parent=23 // pred_region
        %s662 = smul.u32 %s24, 9
        %s663 = smul.u32 %s25, 2
        %s664 = sadd.s32 %s662, %s663
        %s665 = sadd.s32 %s664, 2
        %s666 = smul.u32 %s665, 9
        %s667 = smul.u32 %s26, 2
        %s668 = sadd.s32 %s666, %s667
        %s669 = sadd.s32 %s668, 1
        %p670 = scmp.lt.s32.totalorder %s669, 161
        %s671 = scalar_select %p670, %s669, 161
        %s672 = smul.addr %s671, 2
        %s673 = smul.addr %s672, 4
        %s674 = scalar_lea.vmem %s7, %s673
        %s675 = smul.u32 %s24, 9
        %s676 = smul.u32 %s25, 2
        %s677 = sadd.s32 %s675, %s676
        %s678 = sadd.s32 %s677, 2
        %s679 = smul.u32 %s678, 9
        %s680 = smul.u32 %s26, 2
        %s681 = sadd.s32 %s679, %s680
        %s682 = sadd.s32 %s681, 1
      $region56: #{stride_conv3d_block.1} parent=23 // pred_fallthru
        _
      // Predicated region
      $region57: #{stride_conv3d_block.1} parent=23 // pred_check
        %p683 = pneg %p396
      $region58: #{stride_conv3d_block.1} parent=23 // pred_check_branch
        %685 = sbr.rel (%p683) target = $region60
      $region59: #{stride_conv3d_block.1} parent=23 // pred_region
        %s686 = smul.u32 %s24, 9
        %s687 = smul.u32 %s25, 2
        %s688 = sadd.s32 %s686, %s687
        %s689 = sadd.s32 %s688, 2
        %s690 = smul.u32 %s689, 9
        %s691 = smul.u32 %s26, 2
        %s692 = sadd.s32 %s690, %s691
        %s693 = sadd.s32 %s692, 2
        %p694 = scmp.lt.s32.totalorder %s693, 161
        %s695 = scalar_select %p694, %s693, 161
        %s696 = smul.addr %s695, 2
        %s697 = smul.addr %s696, 4
        %s698 = scalar_lea.vmem %s8, %s697
        %s699 = smul.u32 %s24, 9
        %s700 = smul.u32 %s25, 2
        %s701 = sadd.s32 %s699, %s700
        %s702 = sadd.s32 %s701, 2
        %s703 = smul.u32 %s702, 9
        %s704 = smul.u32 %s26, 2
        %s705 = sadd.s32 %s703, %s704
        %s706 = sadd.s32 %s705, 2
      $region60: #{stride_conv3d_block.1} parent=23 // pred_fallthru
        _
    $region24: #{stride_conv3d_block.1} parent=5 // pred_fallthru
      _
    %p707 = scmp.le.s32.totalorder 1, %s17
    %p708 = scmp.lt.s32.totalorder %s17, 33
    %p709 = pnand %p707, %p708
    %p710 = pneg %p709
    // Predicated region
    $region61: #{stride_conv3d_block.1} parent=5 // pred_check
      _
    $region62: #{stride_conv3d_block.1} parent=5 // pred_check_branch
      %712 = sbr.rel (%p709) target = $region64
    $region63: #{stride_conv3d_block.1} parent=5 // pred_region
      %s713 = ssub.s32 %s17, 1
      %s714 = smul.u32 %s27, 9
      %s715 = smul.u32 %s28, 2
      %s716 = sadd.s32 %s714, %s715
      %s717 = smul.u32 %s716, 9
      %s718 = smul.u32 %s29, 2
      %s719 = sadd.s32 %s717, %s718
      %p720 = scmp.lt.s32.totalorder %s719, 161
      %s721 = scalar_select %p720, %s719, 161
      %s722 = smul.addr %s721, 2
      %s723 = smul.addr %s722, 4
      %s724 = scalar_lea.vmem %s0, %s723
      %p725 = pneg %p74
      %p726 = pneg %p71
      %s727 = smul.u32 %s27, 9
      %s728 = smul.u32 %s28, 2
      %s729 = sadd.s32 %s727, %s728
      %s730 = smul.u32 %s729, 9
      %s731 = smul.u32 %s29, 2
      %s732 = sadd.s32 %s730, %s731
      %s733 = sadd.s32 %s732, 1
      %p734 = scmp.lt.s32.totalorder %s733, 161
      %s735 = scalar_select %p734, %s733, 161
      %s736 = smul.addr %s735, 2
      %s737 = smul.addr %s736, 4
      %s738 = scalar_lea.vmem %s1, %s737
      %p739 = pneg %p114
      %p740 = pneg %p111
      %s741 = smul.u32 %s27, 9
      %s742 = smul.u32 %s28, 2
      %s743 = sadd.s32 %s741, %s742
      %s744 = smul.u32 %s743, 9
      %s745 = smul.u32 %s29, 2
      %s746 = sadd.s32 %s744, %s745
      %s747 = sadd.s32 %s746, 2
      %p748 = scmp.lt.s32.totalorder %s747, 161
      %s749 = scalar_select %p748, %s747, 161
      %s750 = smul.addr %s749, 2
      %s751 = smul.addr %s750, 4
      %s752 = scalar_lea.vmem %s2, %s751
      %p753 = pneg %p154
      %p754 = pneg %p151
      %s755 = smul.u32 %s27, 9
      %s756 = smul.u32 %s28, 2
      %s757 = sadd.s32 %s755, %s756
      %s758 = sadd.s32 %s757, 1
      %s759 = smul.u32 %s758, 9
      %s760 = smul.u32 %s29, 2
      %s761 = sadd.s32 %s759, %s760
      %p762 = scmp.lt.s32.totalorder %s761, 161
      %s763 = scalar_select %p762, %s761, 161
      %s764 = smul.addr %s763, 2
      %s765 = smul.addr %s764, 4
      %s766 = scalar_lea.vmem %s3, %s765
      %p767 = pneg %p194
      %p768 = pneg %p191
      %s769 = smul.u32 %s27, 9
      %s770 = smul.u32 %s28, 2
      %s771 = sadd.s32 %s769, %s770
      %s772 = sadd.s32 %s771, 1
      %s773 = smul.u32 %s772, 9
      %s774 = smul.u32 %s29, 2
      %s775 = sadd.s32 %s773, %s774
      %s776 = sadd.s32 %s775, 1
      %p777 = scmp.lt.s32.totalorder %s776, 161
      %s778 = scalar_select %p777, %s776, 161
      %s779 = smul.addr %s778, 2
      %s780 = smul.addr %s779, 4
      %s781 = scalar_lea.vmem %s4, %s780
      %p782 = pneg %p236
      %p783 = pneg %p233
      %s784 = smul.u32 %s27, 9
      %s785 = smul.u32 %s28, 2
      %s786 = sadd.s32 %s784, %s785
      %s787 = sadd.s32 %s786, 1
      %s788 = smul.u32 %s787, 9
      %s789 = smul.u32 %s29, 2
      %s790 = sadd.s32 %s788, %s789
      %s791 = sadd.s32 %s790, 2
      %p792 = scmp.lt.s32.totalorder %s791, 161
      %s793 = scalar_select %p792, %s791, 161
      %s794 = smul.addr %s793, 2
      %s795 = smul.addr %s794, 4
      %s796 = scalar_lea.vmem %s5, %s795
      %p797 = pneg %p278
      %p798 = pneg %p275
      %s799 = smul.u32 %s27, 9
      %s800 = smul.u32 %s28, 2
      %s801 = sadd.s32 %s799, %s800
      %s802 = sadd.s32 %s801, 2
      %s803 = smul.u32 %s802, 9
      %s804 = smul.u32 %s29, 2
      %s805 = sadd.s32 %s803, %s804
      %p806 = scmp.lt.s32.totalorder %s805, 161
      %s807 = scalar_select %p806, %s805, 161
      %s808 = smul.addr %s807, 2
      %s809 = smul.addr %s808, 4
      %s810 = scalar_lea.vmem %s6, %s809
      %p811 = pneg %p318
      %p812 = pneg %p315
      %s813 = smul.u32 %s27, 9
      %s814 = smul.u32 %s28, 2
      %s815 = sadd.s32 %s813, %s814
      %s816 = sadd.s32 %s815, 2
      %s817 = smul.u32 %s816, 9
      %s818 = smul.u32 %s29, 2
      %s819 = sadd.s32 %s817, %s818
      %s820 = sadd.s32 %s819, 1
      %p821 = scmp.lt.s32.totalorder %s820, 161
      %s822 = scalar_select %p821, %s820, 161
      %s823 = smul.addr %s822, 2
      %s824 = smul.addr %s823, 4
      %s825 = scalar_lea.vmem %s7, %s824
      %p826 = pneg %p360
      %p827 = pneg %p357
      %s828 = smul.u32 %s27, 9
      %s829 = smul.u32 %s28, 2
      %s830 = sadd.s32 %s828, %s829
      %s831 = sadd.s32 %s830, 2
      %s832 = smul.u32 %s831, 9
      %s833 = smul.u32 %s29, 2
      %s834 = sadd.s32 %s832, %s833
      %s835 = sadd.s32 %s834, 2
      %p836 = scmp.lt.s32.totalorder %s835, 161
      %s837 = scalar_select %p836, %s835, 161
      %s838 = smul.addr %s837, 2
      %s839 = smul.addr %s838, 4
      %s840 = scalar_lea.vmem %s8, %s839
      %p841 = pneg %p402
      %p842 = pneg %p399
      %p843 = pneg %p423
      %p844 = pneg %p420
      %p845 = pneg %p444
      %p846 = pneg %p441
      %p847 = pneg %p478
      %p848 = pneg %p475
      %s849 = smul.u32 %s27, 16
      %s850 = smul.u32 %s28, 4
      %s851 = sadd.s32 %s849, %s850
      %s852 = sadd.s32 %s851, %s29
      %p853 = scmp.lt.s32.totalorder %s852, 31
      %s854 = scalar_select %p853, %s852, 31
      %s855 = smul.addr %s854, 2
      %s856 = scalar_lea.vmem %s11, %s855
      %s857 = smul.u32 %s27, 9
      %s858 = smul.u32 %s28, 2
      %s859 = sadd.s32 %s857, %s858
      %s860 = smul.u32 %s859, 9
      %s861 = smul.u32 %s29, 2
      %s862 = sadd.s32 %s860, %s861
      %p863 = scmp.lt.s32.totalorder %s862, 161
      %s864 = scalar_select %p863, %s862, 161
      %s865 = smul.addr %s864, 2
      %s866 = smul.addr %s865, 4
      %s867 = scalar_lea.vmem %s0, %s866
      %s868 = smul.u32 %s27, 9
      %s869 = smul.u32 %s28, 2
      %s870 = sadd.s32 %s868, %s869
      %s871 = smul.u32 %s870, 9
      %s872 = smul.u32 %s29, 2
      %s873 = sadd.s32 %s871, %s872
      %s874 = smul.u32 %s27, 9
      %s875 = smul.u32 %s28, 2
      %s876 = sadd.s32 %s874, %s875
      %s877 = smul.u32 %s876, 9
      %s878 = smul.u32 %s29, 2
      %s879 = sadd.s32 %s877, %s878
      %s880 = sadd.s32 %s879, 1
      %p881 = scmp.lt.s32.totalorder %s880, 161
      %s882 = scalar_select %p881, %s880, 161
      %s883 = smul.addr %s882, 2
      %s884 = smul.addr %s883, 4
      %s885 = scalar_lea.vmem %s1, %s884
      %s886 = smul.u32 %s27, 9
      %s887 = smul.u32 %s28, 2
      %s888 = sadd.s32 %s886, %s887
      %s889 = smul.u32 %s888, 9
      %s890 = smul.u32 %s29, 2
      %s891 = sadd.s32 %s889, %s890
      %s892 = sadd.s32 %s891, 1
      %s893 = smul.u32 %s27, 9
      %s894 = smul.u32 %s28, 2
      %s895 = sadd.s32 %s893, %s894
      %s896 = smul.u32 %s895, 9
      %s897 = smul.u32 %s29, 2
      %s898 = sadd.s32 %s896, %s897
      %s899 = sadd.s32 %s898, 2
      %p900 = scmp.lt.s32.totalorder %s899, 161
      %s901 = scalar_select %p900, %s899, 161
      %s902 = smul.addr %s901, 2
      %s903 = smul.addr %s902, 4
      %s904 = scalar_lea.vmem %s2, %s903
      %s905 = smul.u32 %s27, 9
      %s906 = smul.u32 %s28, 2
      %s907 = sadd.s32 %s905, %s906
      %s908 = smul.u32 %s907, 9
      %s909 = smul.u32 %s29, 2
      %s910 = sadd.s32 %s908, %s909
      %s911 = sadd.s32 %s910, 2
      %s912 = smul.u32 %s27, 9
      %s913 = smul.u32 %s28, 2
      %s914 = sadd.s32 %s912, %s913
      %s915 = sadd.s32 %s914, 1
      %s916 = smul.u32 %s915, 9
      %s917 = smul.u32 %s29, 2
      %s918 = sadd.s32 %s916, %s917
      %p919 = scmp.lt.s32.totalorder %s918, 161
      %s920 = scalar_select %p919, %s918, 161
      %s921 = smul.addr %s920, 2
      %s922 = smul.addr %s921, 4
      %s923 = scalar_lea.vmem %s3, %s922
      %s924 = smul.u32 %s27, 9
      %s925 = smul.u32 %s28, 2
      %s926 = sadd.s32 %s924, %s925
      %s927 = sadd.s32 %s926, 1
      %s928 = smul.u32 %s927, 9
      %s929 = smul.u32 %s29, 2
      %s930 = sadd.s32 %s928, %s929
      %s931 = smul.u32 %s27, 9
      %s932 = smul.u32 %s28, 2
      %s933 = sadd.s32 %s931, %s932
      %s934 = sadd.s32 %s933, 1
      %s935 = smul.u32 %s934, 9
      %s936 = smul.u32 %s29, 2
      %s937 = sadd.s32 %s935, %s936
      %s938 = sadd.s32 %s937, 1
      %p939 = scmp.lt.s32.totalorder %s938, 161
      %s940 = scalar_select %p939, %s938, 161
      %s941 = smul.addr %s940, 2
      %s942 = smul.addr %s941, 4
      %s943 = scalar_lea.vmem %s4, %s942
      %s944 = smul.u32 %s27, 9
      %s945 = smul.u32 %s28, 2
      %s946 = sadd.s32 %s944, %s945
      %s947 = sadd.s32 %s946, 1
      %s948 = smul.u32 %s947, 9
      %s949 = smul.u32 %s29, 2
      %s950 = sadd.s32 %s948, %s949
      %s951 = sadd.s32 %s950, 1
      %s952 = smul.u32 %s27, 9
      %s953 = smul.u32 %s28, 2
      %s954 = sadd.s32 %s952, %s953
      %s955 = sadd.s32 %s954, 1
      %s956 = smul.u32 %s955, 9
      %s957 = smul.u32 %s29, 2
      %s958 = sadd.s32 %s956, %s957
      %s959 = sadd.s32 %s958, 2
      %p960 = scmp.lt.s32.totalorder %s959, 161
      %s961 = scalar_select %p960, %s959, 161
      %s962 = smul.addr %s961, 2
      %s963 = smul.addr %s962, 4
      %s964 = scalar_lea.vmem %s5, %s963
      %s965 = smul.u32 %s27, 9
      %s966 = smul.u32 %s28, 2
      %s967 = sadd.s32 %s965, %s966
      %s968 = sadd.s32 %s967, 1
      %s969 = smul.u32 %s968, 9
      %s970 = smul.u32 %s29, 2
      %s971 = sadd.s32 %s969, %s970
      %s972 = sadd.s32 %s971, 2
      %s973 = smul.u32 %s27, 9
      %s974 = smul.u32 %s28, 2
      %s975 = sadd.s32 %s973, %s974
      %s976 = sadd.s32 %s975, 2
      %s977 = smul.u32 %s976, 9
      %s978 = smul.u32 %s29, 2
      %s979 = sadd.s32 %s977, %s978
      %p980 = scmp.lt.s32.totalorder %s979, 161
      %s981 = scalar_select %p980, %s979, 161
      %s982 = smul.addr %s981, 2
      %s983 = smul.addr %s982, 4
      %s984 = scalar_lea.vmem %s6, %s983
      %s985 = smul.u32 %s27, 9
      %s986 = smul.u32 %s28, 2
      %s987 = sadd.s32 %s985, %s986
      %s988 = sadd.s32 %s987, 2
      %s989 = smul.u32 %s988, 9
      %s990 = smul.u32 %s29, 2
      %s991 = sadd.s32 %s989, %s990
      %s992 = smul.u32 %s27, 9
      %s993 = smul.u32 %s28, 2
      %s994 = sadd.s32 %s992, %s993
      %s995 = sadd.s32 %s994, 2
      %s996 = smul.u32 %s995, 9
      %s997 = smul.u32 %s29, 2
      %s998 = sadd.s32 %s996, %s997
      %s999 = sadd.s32 %s998, 1
      %p1000 = scmp.lt.s32.totalorder %s999, 161
      %s1001 = scalar_select %p1000, %s999, 161
      %s1002 = smul.addr %s1001, 2
      %s1003 = smul.addr %s1002, 4
      %s1004 = scalar_lea.vmem %s7, %s1003
      %s1005 = smul.u32 %s27, 9
      %s1006 = smul.u32 %s28, 2
      %s1007 = sadd.s32 %s1005, %s1006
      %s1008 = sadd.s32 %s1007, 2
      %s1009 = smul.u32 %s1008, 9
      %s1010 = smul.u32 %s29, 2
      %s1011 = sadd.s32 %s1009, %s1010
      %s1012 = sadd.s32 %s1011, 1
      %s1013 = smul.u32 %s27, 9
      %s1014 = smul.u32 %s28, 2
      %s1015 = sadd.s32 %s1013, %s1014
      %s1016 = sadd.s32 %s1015, 2
      %s1017 = smul.u32 %s1016, 9
      %s1018 = smul.u32 %s29, 2
      %s1019 = sadd.s32 %s1017, %s1018
      %s1020 = sadd.s32 %s1019, 2
      %p1021 = scmp.lt.s32.totalorder %s1020, 161
      %s1022 = scalar_select %p1021, %s1020, 161
      %s1023 = smul.addr %s1022, 2
      %s1024 = smul.addr %s1023, 4
      %s1025 = scalar_lea.vmem %s8, %s1024
      %s1026 = smul.u32 %s27, 9
      %s1027 = smul.u32 %s28, 2
      %s1028 = sadd.s32 %s1026, %s1027
      %s1029 = sadd.s32 %s1028, 2
      %s1030 = smul.u32 %s1029, 9
      %s1031 = smul.u32 %s29, 2
      %s1032 = sadd.s32 %s1030, %s1031
      %s1033 = sadd.s32 %s1032, 2
      %s1034 = smul.u32 %s27, 16
      %s1035 = smul.u32 %s28, 4
      %s1036 = sadd.s32 %s1034, %s1035
      %s1037 = sadd.s32 %s1036, %s29
      %p1038 = scmp.lt.s32.totalorder %s1037, 31
      %s1039 = scalar_select %p1038, %s1037, 31
      %s1040 = smul.addr %s1039, 2
      %s1041 = scalar_lea.vmem %s11, %s1040
      %s1042 = smul.u32 %s27, 16
      %s1043 = smul.u32 %s28, 4
      %s1044 = sadd.s32 %s1042, %s1043
      %s1045 = sadd.s32 %s1044, %s29
      %v1047 = vld [vmem:[%s867] sm:$0x7]
      %v1048 = vld [vmem:[%s867 + $0x4] sm:$0x7]
      %v1049 = vld [vmem:[%s9] sm:$0x3]
      %s1050 = scalar_lea.vmem %s9, 2
      %v1051 = vld [vmem:[%s1050] sm:$0x3]
      %vm1052 = vcmask 31744
      %v1054 = vsel %vm1052, %v1048, 0
      %vm1056 = vcmask 1041408
      %v1058 = vsel %vm1056, %v1051, 0
      %1060 = vmatprep.subr.bf16.mxu0 0
      %1061 = vmatpush1.bf16.msra.mxu0 %v1058
      %1062 = vmatprep.subr.bf16.mxu0 0
      %1063 = vmatpush1.bf16.msra.mxu0 0
      %1064 = vmatprep.subr.bf16.mxu0 0
      %1065 = vmatpush1.bf16.msra.mxu0 0
      %1066 = vmatprep.subr.bf16.mxu0 0
      %1067 = vmatpush1.bf16.msra.mxu0 0
      %1068 = vmatprep.subr.bf16.mxu0 0
      %1069 = vmatpush1.bf16.msra.mxu0 0
      %1070 = vmatprep.subr.bf16.mxu0 0
      %1071 = vmatpush1.bf16.msra.mxu0 0
      %1072 = vmatprep.subr.bf16.mxu0 0
      %1073 = vmatpush1.bf16.msra.mxu0 0
      %1074 = vmatprep.subr.bf16.mxu0 0
      %1075 = vmatpush1.bf16.msra.mxu0 0
      %1076 = vmatprep.subr.bf16.mxu0 0
      %1077 = vmatpush1.bf16.msra.mxu0 0
      %1078 = vmatprep.subr.bf16.mxu0 0
      %1079 = vmatpush1.bf16.msra.mxu0 0
      %1080 = vmatprep.subr.bf16.mxu0 0
      %1081 = vmatpush1.bf16.msra.mxu0 0
      %1082 = vmatprep.subr.bf16.mxu0 0
      %1083 = vmatpush1.bf16.msra.mxu0 0
      %1084 = vmatprep.subr.bf16.mxu0 0
      %1085 = vmatpush1.bf16.msra.mxu0 0
      %1086 = vmatprep.subr.bf16.mxu0 0
      %1087 = vmatpush1.bf16.msra.mxu0 0
      %1088 = vmatprep.subr.bf16.mxu0 0
      %1089 = vmatpush1.bf16.msra.mxu0 0
      %1090 = vmatprep.subr.bf16.mxu0 0
      %1091 = vmatpush1.bf16.msra.mxu0 0
      %1092 = vmatprep.mubr.bf16.mxu0 0
      %1093 = vmatmul.mubr.bf16.gmra.mrb[0].mxu0 %v1054
      %v1094 = vpop.f32.mrb[0].mxu0
      %v1095 = vadd.f32 0.0, %v1094
      %v1096 = vpop.f32.mrb[0].mxu0
      %v1097 = vpop.f32.mrb[0].mxu0
      %v1098 = vpop.f32.mrb[0].mxu0
      %1099 = vdwg.mxu0
      %v1101 = vsel %vm1052, %v1047, 0
      %v1104 = vsel %vm1056, %v1049, 0
      %1106 = vmatprep.subr.bf16.mxu0 0
      %1107 = vmatpush1.bf16.msra.mxu0 %v1104
      %1108 = vmatprep.subr.bf16.mxu0 0
      %1109 = vmatpush1.bf16.msra.mxu0 0
      %1110 = vmatprep.subr.bf16.mxu0 0
      %1111 = vmatpush1.bf16.msra.mxu0 0
      %1112 = vmatprep.subr.bf16.mxu0 0
      %1113 = vmatpush1.bf16.msra.mxu0 0
      %1114 = vmatprep.subr.bf16.mxu0 0
      %1115 = vmatpush1.bf16.msra.mxu0 0
      %1116 = vmatprep.subr.bf16.mxu0 0
      %1117 = vmatpush1.bf16.msra.mxu0 0
      %1118 = vmatprep.subr.bf16.mxu0 0
      %1119 = vmatpush1.bf16.msra.mxu0 0
      %1120 = vmatprep.subr.bf16.mxu0 0
      %1121 = vmatpush1.bf16.msra.mxu0 0
      %1122 = vmatprep.subr.bf16.mxu0 0
      %1123 = vmatpush1.bf16.msra.mxu0 0
      %1124 = vmatprep.subr.bf16.mxu0 0
      %1125 = vmatpush1.bf16.msra.mxu0 0
      %1126 = vmatprep.subr.bf16.mxu0 0
      %1127 = vmatpush1.bf16.msra.mxu0 0
      %1128 = vmatprep.subr.bf16.mxu0 0
      %1129 = vmatpush1.bf16.msra.mxu0 0
      %1130 = vmatprep.subr.bf16.mxu0 0
      %1131 = vmatpush1.bf16.msra.mxu0 0
      %1132 = vmatprep.subr.bf16.mxu0 0
      %1133 = vmatpush1.bf16.msra.mxu0 0
      %1134 = vmatprep.subr.bf16.mxu0 0
      %1135 = vmatpush1.bf16.msra.mxu0 0
      %1136 = vmatprep.subr.bf16.mxu0 0
      %1137 = vmatpush1.bf16.msra.mxu0 0
      %1138 = vmatprep.mubr.bf16.mxu0 0
      %1139 = vmatmul.mubr.bf16.gmra.mrb[0].mxu0 %v1101
      %v1140 = vpop.f32.mrb[0].mxu0
      %v1141 = vadd.f32 %v1095, %v1140
      %v1142 = vpop.f32.mrb[0].mxu0
      %v1143 = vpop.f32.mrb[0].mxu0
      %v1144 = vpop.f32.mrb[0].mxu0
      %1145 = vdwg.mxu0
      %s1146 = scalar_lea.vmem %s9, 4
      %v1147 = vld [vmem:[%s1146] sm:$0x3]
      %v1149 = vunpack.c.l.b16 %v1047
      %v1150 = vpack.c.b16 %v1149, %v1149
      %v1152 = vshrl.u32 %v1150, 16
      %v1154 = vshll.u32 %v1150, 16
      %v1156 = vrot.slane %v1154, 1
      %v1157 = vor.u32 %v1152, %v1156
      %v1159 = vsel %vm1052, %v1157, 0
      %v1162 = vsel %vm1056, %v1147, 0
      %1164 = vmatprep.subr.bf16.mxu0 0
      %1165 = vmatpush1.bf16.msra.mxu0 %v1162
      %1166 = vmatprep.subr.bf16.mxu0 0
      %1167 = vmatpush1.bf16.msra.mxu0 0
      %1168 = vmatprep.subr.bf16.mxu0 0
      %1169 = vmatpush1.bf16.msra.mxu0 0
      %1170 = vmatprep.subr.bf16.mxu0 0
      %1171 = vmatpush1.bf16.msra.mxu0 0
      %1172 = vmatprep.subr.bf16.mxu0 0
      %1173 = vmatpush1.bf16.msra.mxu0 0
      %1174 = vmatprep.subr.bf16.mxu0 0
      %1175 = vmatpush1.bf16.msra.mxu0 0
      %1176 = vmatprep.subr.bf16.mxu0 0
      %1177 = vmatpush1.bf16.msra.mxu0 0
      %1178 = vmatprep.subr.bf16.mxu0 0
      %1179 = vmatpush1.bf16.msra.mxu0 0
      %1180 = vmatprep.subr.bf16.mxu0 0
      %1181 = vmatpush1.bf16.msra.mxu0 0
      %1182 = vmatprep.subr.bf16.mxu0 0
      %1183 = vmatpush1.bf16.msra.mxu0 0
      %1184 = vmatprep.subr.bf16.mxu0 0
      %1185 = vmatpush1.bf16.msra.mxu0 0
      %1186 = vmatprep.subr.bf16.mxu0 0
      %1187 = vmatpush1.bf16.msra.mxu0 0
      %1188 = vmatprep.subr.bf16.mxu0 0
      %1189 = vmatpush1.bf16.msra.mxu0 0
      %1190 = vmatprep.subr.bf16.mxu0 0
      %1191 = vmatpush1.bf16.msra.mxu0 0
      %1192 = vmatprep.subr.bf16.mxu0 0
      %1193 = vmatpush1.bf16.msra.mxu0 0
      %1194 = vmatprep.subr.bf16.mxu0 0
      %1195 = vmatpush1.bf16.msra.mxu0 0
      %1196 = vmatprep.mubr.bf16.mxu0 0
      %1197 = vmatmul.mubr.bf16.gmra.mrb[0].mxu0 %v1159
      %v1198 = vpop.f32.mrb[0].mxu0
      %v1199 = vadd.f32 0.0, %v1198
      %v1200 = vpop.f32.mrb[0].mxu0
      %v1201 = vpop.f32.mrb[0].mxu0
      %v1202 = vpop.f32.mrb[0].mxu0
      %1203 = vdwg.mxu0
      %v1204 = vadd.f32 %v1141, %v1199
      %v1205 = vld [vmem:[%s885] sm:$0x7]
      %v1206 = vld [vmem:[%s885 + $0x4] sm:$0x7]
      %s1207 = scalar_lea.vmem %s9, 6
      %v1208 = vld [vmem:[%s1207] sm:$0x3]
      %v1210 = vsel %vm1052, %v1205, 0
      %v1213 = vsel %vm1056, %v1208, 0
      %1215 = vmatprep.subr.bf16.mxu0 0
      %1216 = vmatpush1.bf16.msra.mxu0 %v1213
      %1217 = vmatprep.subr.bf16.mxu0 0
      %1218 = vmatpush1.bf16.msra.mxu0 0
      %1219 = vmatprep.subr.bf16.mxu0 0
      %1220 = vmatpush1.bf16.msra.mxu0 0
      %1221 = vmatprep.subr.bf16.mxu0 0
      %1222 = vmatpush1.bf16.msra.mxu0 0
      %1223 = vmatprep.subr.bf16.mxu0 0
      %1224 = vmatpush1.bf16.msra.mxu0 0
      %1225 = vmatprep.subr.bf16.mxu0 0
      %1226 = vmatpush1.bf16.msra.mxu0 0
      %1227 = vmatprep.subr.bf16.mxu0 0
      %1228 = vmatpush1.bf16.msra.mxu0 0
      %1229 = vmatprep.subr.bf16.mxu0 0
      %1230 = vmatpush1.bf16.msra.mxu0 0
      %1231 = vmatprep.subr.bf16.mxu0 0
      %1232 = vmatpush1.bf16.msra.mxu0 0
      %1233 = vmatprep.subr.bf16.mxu0 0
      %1234 = vmatpush1.bf16.msra.mxu0 0
      %1235 = vmatprep.subr.bf16.mxu0 0
      %1236 = vmatpush1.bf16.msra.mxu0 0
      %1237 = vmatprep.subr.bf16.mxu0 0
      %1238 = vmatpush1.bf16.msra.mxu0 0
      %1239 = vmatprep.subr.bf16.mxu0 0
      %1240 = vmatpush1.bf16.msra.mxu0 0
      %1241 = vmatprep.subr.bf16.mxu0 0
      %1242 = vmatpush1.bf16.msra.mxu0 0
      %1243 = vmatprep.subr.bf16.mxu0 0
      %1244 = vmatpush1.bf16.msra.mxu0 0
      %1245 = vmatprep.subr.bf16.mxu0 0
      %1246 = vmatpush1.bf16.msra.mxu0 0
      %1247 = vmatprep.mubr.bf16.mxu0 0
      %1248 = vmatmul.mubr.bf16.gmra.mrb[0].mxu0 %v1210
      %v1249 = vpop.f32.mrb[0].mxu0
      %v1250 = vadd.f32 0.0, %v1249
      %v1251 = vpop.f32.mrb[0].mxu0
      %v1252 = vpop.f32.mrb[0].mxu0
      %v1253 = vpop.f32.mrb[0].mxu0
      %1254 = vdwg.mxu0
      %v1255 = vadd.f32 %v1204, %v1250
      %s1256 = scalar_lea.vmem %s9, 8
      %v1257 = vld [vmem:[%s1256] sm:$0x3]
      %v1259 = vsel %vm1052, %v1206, 0
      %v1262 = vsel %vm1056, %v1257, 0
      %1264 = vmatprep.subr.bf16.mxu0 0
      %1265 = vmatpush1.bf16.msra.mxu0 %v1262
      %1266 = vmatprep.subr.bf16.mxu0 0
      %1267 = vmatpush1.bf16.msra.mxu0 0
      %1268 = vmatprep.subr.bf16.mxu0 0
      %1269 = vmatpush1.bf16.msra.mxu0 0
      %1270 = vmatprep.subr.bf16.mxu0 0
      %1271 = vmatpush1.bf16.msra.mxu0 0
      %1272 = vmatprep.subr.bf16.mxu0 0
      %1273 = vmatpush1.bf16.msra.mxu0 0
      %1274 = vmatprep.subr.bf16.mxu0 0
      %1275 = vmatpush1.bf16.msra.mxu0 0
      %1276 = vmatprep.subr.bf16.mxu0 0
      %1277 = vmatpush1.bf16.msra.mxu0 0
      %1278 = vmatprep.subr.bf16.mxu0 0
      %1279 = vmatpush1.bf16.msra.mxu0 0
      %1280 = vmatprep.subr.bf16.mxu0 0
      %1281 = vmatpush1.bf16.msra.mxu0 0
      %1282 = vmatprep.subr.bf16.mxu0 0
      %1283 = vmatpush1.bf16.msra.mxu0 0
      %1284 = vmatprep.subr.bf16.mxu0 0
      %1285 = vmatpush1.bf16.msra.mxu0 0
      %1286 = vmatprep.subr.bf16.mxu0 0
      %1287 = vmatpush1.bf16.msra.mxu0 0
      %1288 = vmatprep.subr.bf16.mxu0 0
      %1289 = vmatpush1.bf16.msra.mxu0 0
      %1290 = vmatprep.subr.bf16.mxu0 0
      %1291 = vmatpush1.bf16.msra.mxu0 0
      %1292 = vmatprep.subr.bf16.mxu0 0
      %1293 = vmatpush1.bf16.msra.mxu0 0
      %1294 = vmatprep.subr.bf16.mxu0 0
      %1295 = vmatpush1.bf16.msra.mxu0 0
      %1296 = vmatprep.mubr.bf16.mxu0 0
      %1297 = vmatmul.mubr.bf16.gmra.mrb[0].mxu0 %v1259
      %v1298 = vpop.f32.mrb[0].mxu0
      %v1299 = vadd.f32 0.0, %v1298
      %v1300 = vpop.f32.mrb[0].mxu0
      %v1301 = vpop.f32.mrb[0].mxu0
      %v1302 = vpop.f32.mrb[0].mxu0
      %1303 = vdwg.mxu0
      %v1304 = vadd.f32 %v1255, %v1299
      %s1305 = scalar_lea.vmem %s9, 10
      %v1306 = vld [vmem:[%s1305] sm:$0x3]
      %v1308 = vunpack.c.l.b16 %v1205
      %v1309 = vpack.c.b16 %v1308, %v1308
      %v1311 = vshrl.u32 %v1309, 16
      %v1313 = vshll.u32 %v1309, 16
      %v1315 = vrot.slane %v1313, 1
      %v1316 = vor.u32 %v1311, %v1315
      %v1318 = vsel %vm1052, %v1316, 0
      %v1321 = vsel %vm1056, %v1306, 0
      %1323 = vmatprep.subr.bf16.mxu0 0
      %1324 = vmatpush1.bf16.msra.mxu0 %v1321
      %1325 = vmatprep.subr.bf16.mxu0 0
      %1326 = vmatpush1.bf16.msra.mxu0 0
      %1327 = vmatprep.subr.bf16.mxu0 0
      %1328 = vmatpush1.bf16.msra.mxu0 0
      %1329 = vmatprep.subr.bf16.mxu0 0
      %1330 = vmatpush1.bf16.msra.mxu0 0
      %1331 = vmatprep.subr.bf16.mxu0 0
      %1332 = vmatpush1.bf16.msra.mxu0 0
      %1333 = vmatprep.subr.bf16.mxu0 0
      %1334 = vmatpush1.bf16.msra.mxu0 0
      %1335 = vmatprep.subr.bf16.mxu0 0
      %1336 = vmatpush1.bf16.msra.mxu0 0
      %1337 = vmatprep.subr.bf16.mxu0 0
      %1338 = vmatpush1.bf16.msra.mxu0 0
      %1339 = vmatprep.subr.bf16.mxu0 0
      %1340 = vmatpush1.bf16.msra.mxu0 0
      %1341 = vmatprep.subr.bf16.mxu0 0
      %1342 = vmatpush1.bf16.msra.mxu0 0
      %1343 = vmatprep.subr.bf16.mxu0 0
      %1344 = vmatpush1.bf16.msra.mxu0 0
      %1345 = vmatprep.subr.bf16.mxu0 0
      %1346 = vmatpush1.bf16.msra.mxu0 0
      %1347 = vmatprep.subr.bf16.mxu0 0
      %1348 = vmatpush1.bf16.msra.mxu0 0
      %1349 = vmatprep.subr.bf16.mxu0 0
      %1350 = vmatpush1.bf16.msra.mxu0 0
      %1351 = vmatprep.subr.bf16.mxu0 0
      %1352 = vmatpush1.bf16.msra.mxu0 0
      %1353 = vmatprep.subr.bf16.mxu0 0
      %1354 = vmatpush1.bf16.msra.mxu0 0
      %1355 = vmatprep.mubr.bf16.mxu0 0
      %1356 = vmatmul.mubr.bf16.gmra.mrb[0].mxu0 %v1318
      %v1357 = vpop.f32.mrb[0].mxu0
      %v1358 = vadd.f32 0.0, %v1357
      %v1359 = vpop.f32.mrb[0].mxu0
      %v1360 = vpop.f32.mrb[0].mxu0
      %v1361 = vpop.f32.mrb[0].mxu0
      %1362 = vdwg.mxu0
      %v1363 = vadd.f32 %v1304, %v1358
      %v1364 = vld [vmem:[%s904] sm:$0x7]
      %v1365 = vld [vmem:[%s904 + $0x4] sm:$0x7]
      %s1366 = scalar_lea.vmem %s9, 12
      %v1367 = vld [vmem:[%s1366] sm:$0x3]
      %v1369 = vsel %vm1052, %v1364, 0
      %v1372 = vsel %vm1056, %v1367, 0
      %1374 = vmatprep.subr.bf16.mxu0 0
      %1375 = vmatpush1.bf16.msra.mxu0 %v1372
      %1376 = vmatprep.subr.bf16.mxu0 0
      %1377 = vmatpush1.bf16.msra.mxu0 0
      %1378 = vmatprep.subr.bf16.mxu0 0
      %1379 = vmatpush1.bf16.msra.mxu0 0
      %1380 = vmatprep.subr.bf16.mxu0 0
      %1381 = vmatpush1.bf16.msra.mxu0 0
      %1382 = vmatprep.subr.bf16.mxu0 0
      %1383 = vmatpush1.bf16.msra.mxu0 0
      %1384 = vmatprep.subr.bf16.mxu0 0
      %1385 = vmatpush1.bf16.msra.mxu0 0
      %1386 = vmatprep.subr.bf16.mxu0 0
      %1387 = vmatpush1.bf16.msra.mxu0 0
      %1388 = vmatprep.subr.bf16.mxu0 0
      %1389 = vmatpush1.bf16.msra.mxu0 0
      %1390 = vmatprep.subr.bf16.mxu0 0
      %1391 = vmatpush1.bf16.msra.mxu0 0
      %1392 = vmatprep.subr.bf16.mxu0 0
      %1393 = vmatpush1.bf16.msra.mxu0 0
      %1394 = vmatprep.subr.bf16.mxu0 0
      %1395 = vmatpush1.bf16.msra.mxu0 0
      %1396 = vmatprep.subr.bf16.mxu0 0
      %1397 = vmatpush1.bf16.msra.mxu0 0
      %1398 = vmatprep.subr.bf16.mxu0 0
      %1399 = vmatpush1.bf16.msra.mxu0 0
      %1400 = vmatprep.subr.bf16.mxu0 0
      %1401 = vmatpush1.bf16.msra.mxu0 0
      %1402 = vmatprep.subr.bf16.mxu0 0
      %1403 = vmatpush1.bf16.msra.mxu0 0
      %1404 = vmatprep.subr.bf16.mxu0 0
      %1405 = vmatpush1.bf16.msra.mxu0 0
      %1406 = vmatprep.mubr.bf16.mxu0 0
      %1407 = vmatmul.mubr.bf16.gmra.mrb[0].mxu0 %v1369
      %v1408 = vpop.f32.mrb[0].mxu0
      %v1409 = vadd.f32 0.0, %v1408
      %v1410 = vpop.f32.mrb[0].mxu0
      %v1411 = vpop.f32.mrb[0].mxu0
      %v1412 = vpop.f32.mrb[0].mxu0
      %1413 = vdwg.mxu0
      %v1414 = vadd.f32 %v1363, %v1409
      %s1415 = scalar_lea.vmem %s9, 14
      %v1416 = vld [vmem:[%s1415] sm:$0x3]
      %v1418 = vsel %vm1052, %v1365, 0
      %v1421 = vsel %vm1056, %v1416, 0
      %1423 = vmatprep.subr.bf16.mxu0 0
      %1424 = vmatpush1.bf16.msra.mxu0 %v1421
      %1425 = vmatprep.subr.bf16.mxu0 0
      %1426 = vmatpush1.bf16.msra.mxu0 0
      %1427 = vmatprep.subr.bf16.mxu0 0
      %1428 = vmatpush1.bf16.msra.mxu0 0
      %1429 = vmatprep.subr.bf16.mxu0 0
      %1430 = vmatpush1.bf16.msra.mxu0 0
      %1431 = vmatprep.subr.bf16.mxu0 0
      %1432 = vmatpush1.bf16.msra.mxu0 0
      %1433 = vmatprep.subr.bf16.mxu0 0
      %1434 = vmatpush1.bf16.msra.mxu0 0
      %1435 = vmatprep.subr.bf16.mxu0 0
      %1436 = vmatpush1.bf16.msra.mxu0 0
      %1437 = vmatprep.subr.bf16.mxu0 0
      %1438 = vmatpush1.bf16.msra.mxu0 0
      %1439 = vmatprep.subr.bf16.mxu0 0
      %1440 = vmatpush1.bf16.msra.mxu0 0
      %1441 = vmatprep.subr.bf16.mxu0 0
      %1442 = vmatpush1.bf16.msra.mxu0 0
      %1443 = vmatprep.subr.bf16.mxu0 0
      %1444 = vmatpush1.bf16.msra.mxu0 0
      %1445 = vmatprep.subr.bf16.mxu0 0
      %1446 = vmatpush1.bf16.msra.mxu0 0
      %1447 = vmatprep.subr.bf16.mxu0 0
      %1448 = vmatpush1.bf16.msra.mxu0 0
      %1449 = vmatprep.subr.bf16.mxu0 0
      %1450 = vmatpush1.bf16.msra.mxu0 0
      %1451 = vmatprep.subr.bf16.mxu0 0
      %1452 = vmatpush1.bf16.msra.mxu0 0
      %1453 = vmatprep.subr.bf16.mxu0 0
      %1454 = vmatpush1.bf16.msra.mxu0 0
      %1455 = vmatprep.mubr.bf16.mxu0 0
      %1456 = vmatmul.mubr.bf16.gmra.mrb[0].mxu0 %v1418
      %v1457 = vpop.f32.mrb[0].mxu0
      %v1458 = vadd.f32 0.0, %v1457
      %v1459 = vpop.f32.mrb[0].mxu0
      %v1460 = vpop.f32.mrb[0].mxu0
      %v1461 = vpop.f32.mrb[0].mxu0
      %1462 = vdwg.mxu0
      %v1463 = vadd.f32 %v1414, %v1458
      %s1464 = scalar_lea.vmem %s9, 16
      %v1465 = vld [vmem:[%s1464] sm:$0x3]
      %v1467 = vunpack.c.l.b16 %v1364
      %v1468 = vpack.c.b16 %v1467, %v1467
      %v1470 = vshrl.u32 %v1468, 16
      %v1472 = vshll.u32 %v1468, 16
      %v1474 = vrot.slane %v1472, 1
      %v1475 = vor.u32 %v1470, %v1474
      %v1477 = vsel %vm1052, %v1475, 0
      %v1480 = vsel %vm1056, %v1465, 0
      %1482 = vmatprep.subr.bf16.mxu0 0
      %1483 = vmatpush1.bf16.msra.mxu0 %v1480
      %1484 = vmatprep.subr.bf16.mxu0 0
      %1485 = vmatpush1.bf16.msra.mxu0 0
      %1486 = vmatprep.subr.bf16.mxu0 0
      %1487 = vmatpush1.bf16.msra.mxu0 0
      %1488 = vmatprep.subr.bf16.mxu0 0
      %1489 = vmatpush1.bf16.msra.mxu0 0
      %1490 = vmatprep.subr.bf16.mxu0 0
      %1491 = vmatpush1.bf16.msra.mxu0 0
      %1492 = vmatprep.subr.bf16.mxu0 0
      %1493 = vmatpush1.bf16.msra.mxu0 0
      %1494 = vmatprep.subr.bf16.mxu0 0
      %1495 = vmatpush1.bf16.msra.mxu0 0
      %1496 = vmatprep.subr.bf16.mxu0 0
      %1497 = vmatpush1.bf16.msra.mxu0 0
      %1498 = vmatprep.subr.bf16.mxu0 0
      %1499 = vmatpush1.bf16.msra.mxu0 0
      %1500 = vmatprep.subr.bf16.mxu0 0
      %1501 = vmatpush1.bf16.msra.mxu0 0
      %1502 = vmatprep.subr.bf16.mxu0 0
      %1503 = vmatpush1.bf16.msra.mxu0 0
      %1504 = vmatprep.subr.bf16.mxu0 0
      %1505 = vmatpush1.bf16.msra.mxu0 0
      %1506 = vmatprep.subr.bf16.mxu0 0
      %1507 = vmatpush1.bf16.msra.mxu0 0
      %1508 = vmatprep.subr.bf16.mxu0 0
      %1509 = vmatpush1.bf16.msra.mxu0 0
      %1510 = vmatprep.subr.bf16.mxu0 0
      %1511 = vmatpush1.bf16.msra.mxu0 0
      %1512 = vmatprep.subr.bf16.mxu0 0
      %1513 = vmatpush1.bf16.msra.mxu0 0
      %1514 = vmatprep.mubr.bf16.mxu0 0
      %1515 = vmatmul.mubr.bf16.gmra.mrb[0].mxu0 %v1477
      %v1516 = vpop.f32.mrb[0].mxu0
      %v1517 = vadd.f32 0.0, %v1516
      %v1518 = vpop.f32.mrb[0].mxu0
      %v1519 = vpop.f32.mrb[0].mxu0
      %v1520 = vpop.f32.mrb[0].mxu0
      %1521 = vdwg.mxu0
      %v1522 = vadd.f32 %v1463, %v1517
      %v1523 = vld [vmem:[%s923] sm:$0x7]
      %v1524 = vld [vmem:[%s923 + $0x4] sm:$0x7]
      %s1525 = scalar_lea.vmem %s9, 18
      %v1526 = vld [vmem:[%s1525] sm:$0x3]
      %v1528 = vsel %vm1052, %v1523, 0
      %v1531 = vsel %vm1056, %v1526, 0
      %1533 = vmatprep.subr.bf16.mxu0 0
      %1534 = vmatpush1.bf16.msra.mxu0 %v1531
      %1535 = vmatprep.subr.bf16.mxu0 0
      %1536 = vmatpush1.bf16.msra.mxu0 0
      %1537 = vmatprep.subr.bf16.mxu0 0
      %1538 = vmatpush1.bf16.msra.mxu0 0
      %1539 = vmatprep.subr.bf16.mxu0 0
      %1540 = vmatpush1.bf16.msra.mxu0 0
      %1541 = vmatprep.subr.bf16.mxu0 0
      %1542 = vmatpush1.bf16.msra.mxu0 0
      %1543 = vmatprep.subr.bf16.mxu0 0
      %1544 = vmatpush1.bf16.msra.mxu0 0
      %1545 = vmatprep.subr.bf16.mxu0 0
      %1546 = vmatpush1.bf16.msra.mxu0 0
      %1547 = vmatprep.subr.bf16.mxu0 0
      %1548 = vmatpush1.bf16.msra.mxu0 0
      %1549 = vmatprep.subr.bf16.mxu0 0
      %1550 = vmatpush1.bf16.msra.mxu0 0
      %1551 = vmatprep.subr.bf16.mxu0 0
      %1552 = vmatpush1.bf16.msra.mxu0 0
      %1553 = vmatprep.subr.bf16.mxu0 0
      %1554 = vmatpush1.bf16.msra.mxu0 0
      %1555 = vmatprep.subr.bf16.mxu0 0
      %1556 = vmatpush1.bf16.msra.mxu0 0
      %1557 = vmatprep.subr.bf16.mxu0 0
      %1558 = vmatpush1.bf16.msra.mxu0 0
      %1559 = vmatprep.subr.bf16.mxu0 0
      %1560 = vmatpush1.bf16.msra.mxu0 0
      %1561 = vmatprep.subr.bf16.mxu0 0
      %1562 = vmatpush1.bf16.msra.mxu0 0
      %1563 = vmatprep.subr.bf16.mxu0 0
      %1564 = vmatpush1.bf16.msra.mxu0 0
      %1565 = vmatprep.mubr.bf16.mxu0 0
      %1566 = vmatmul.mubr.bf16.gmra.mrb[0].mxu0 %v1528
      %v1567 = vpop.f32.mrb[0].mxu0
      %v1568 = vadd.f32 0.0, %v1567
      %v1569 = vpop.f32.mrb[0].mxu0
      %v1570 = vpop.f32.mrb[0].mxu0
      %v1571 = vpop.f32.mrb[0].mxu0
      %1572 = vdwg.mxu0
      %v1573 = vadd.f32 %v1522, %v1568
      %s1574 = scalar_lea.vmem %s9, 20
      %v1575 = vld [vmem:[%s1574] sm:$0x3]
      %v1577 = vsel %vm1052, %v1524, 0
      %v1580 = vsel %vm1056, %v1575, 0
      %1582 = vmatprep.subr.bf16.mxu0 0
      %1583 = vmatpush1.bf16.msra.mxu0 %v1580
      %1584 = vmatprep.subr.bf16.mxu0 0
      %1585 = vmatpush1.bf16.msra.mxu0 0
      %1586 = vmatprep.subr.bf16.mxu0 0
      %1587 = vmatpush1.bf16.msra.mxu0 0
      %1588 = vmatprep.subr.bf16.mxu0 0
      %1589 = vmatpush1.bf16.msra.mxu0 0
      %1590 = vmatprep.subr.bf16.mxu0 0
      %1591 = vmatpush1.bf16.msra.mxu0 0
      %1592 = vmatprep.subr.bf16.mxu0 0
      %1593 = vmatpush1.bf16.msra.mxu0 0
      %1594 = vmatprep.subr.bf16.mxu0 0
      %1595 = vmatpush1.bf16.msra.mxu0 0
      %1596 = vmatprep.subr.bf16.mxu0 0
      %1597 = vmatpush1.bf16.msra.mxu0 0
      %1598 = vmatprep.subr.bf16.mxu0 0
      %1599 = vmatpush1.bf16.msra.mxu0 0
      %1600 = vmatprep.subr.bf16.mxu0 0
      %1601 = vmatpush1.bf16.msra.mxu0 0
      %1602 = vmatprep.subr.bf16.mxu0 0
      %1603 = vmatpush1.bf16.msra.mxu0 0
      %1604 = vmatprep.subr.bf16.mxu0 0
      %1605 = vmatpush1.bf16.msra.mxu0 0
      %1606 = vmatprep.subr.bf16.mxu0 0
      %1607 = vmatpush1.bf16.msra.mxu0 0
      %1608 = vmatprep.subr.bf16.mxu0 0
      %1609 = vmatpush1.bf16.msra.mxu0 0
      %1610 = vmatprep.subr.bf16.mxu0 0
      %1611 = vmatpush1.bf16.msra.mxu0 0
      %1612 = vmatprep.subr.bf16.mxu0 0
      %1613 = vmatpush1.bf16.msra.mxu0 0
      %1614 = vmatprep.mubr.bf16.mxu0 0
      %1615 = vmatmul.mubr.bf16.gmra.mrb[0].mxu0 %v1577
      %v1616 = vpop.f32.mrb[0].mxu0
      %v1617 = vadd.f32 0.0, %v1616
      %v1618 = vpop.f32.mrb[0].mxu0
      %v1619 = vpop.f32.mrb[0].mxu0
      %v1620 = vpop.f32.mrb[0].mxu0
      %1621 = vdwg.mxu0
      %v1622 = vadd.f32 %v1573, %v1617
      %s1623 = scalar_lea.vmem %s9, 22
      %v1624 = vld [vmem:[%s1623] sm:$0x3]
      %v1626 = vunpack.c.l.b16 %v1523
      %v1627 = vpack.c.b16 %v1626, %v1626
      %v1629 = vshrl.u32 %v1627, 16
      %v1631 = vshll.u32 %v1627, 16
      %v1633 = vrot.slane %v1631, 1
      %v1634 = vor.u32 %v1629, %v1633
      %v1636 = vsel %vm1052, %v1634, 0
      %v1639 = vsel %vm1056, %v1624, 0
      %1641 = vmatprep.subr.bf16.mxu0 0
      %1642 = vmatpush1.bf16.msra.mxu0 %v1639
      %1643 = vmatprep.subr.bf16.mxu0 0
      %1644 = vmatpush1.bf16.msra.mxu0 0
      %1645 = vmatprep.subr.bf16.mxu0 0
      %1646 = vmatpush1.bf16.msra.mxu0 0
      %1647 = vmatprep.subr.bf16.mxu0 0
      %1648 = vmatpush1.bf16.msra.mxu0 0
      %1649 = vmatprep.subr.bf16.mxu0 0
      %1650 = vmatpush1.bf16.msra.mxu0 0
      %1651 = vmatprep.subr.bf16.mxu0 0
      %1652 = vmatpush1.bf16.msra.mxu0 0
      %1653 = vmatprep.subr.bf16.mxu0 0
      %1654 = vmatpush1.bf16.msra.mxu0 0
      %1655 = vmatprep.subr.bf16.mxu0 0
      %1656 = vmatpush1.bf16.msra.mxu0 0
      %1657 = vmatprep.subr.bf16.mxu0 0
      %1658 = vmatpush1.bf16.msra.mxu0 0
      %1659 = vmatprep.subr.bf16.mxu0 0
      %1660 = vmatpush1.bf16.msra.mxu0 0
      %1661 = vmatprep.subr.bf16.mxu0 0
      %1662 = vmatpush1.bf16.msra.mxu0 0
      %1663 = vmatprep.subr.bf16.mxu0 0
      %1664 = vmatpush1.bf16.msra.mxu0 0
      %1665 = vmatprep.subr.bf16.mxu0 0
      %1666 = vmatpush1.bf16.msra.mxu0 0
      %1667 = vmatprep.subr.bf16.mxu0 0
      %1668 = vmatpush1.bf16.msra.mxu0 0
      %1669 = vmatprep.subr.bf16.mxu0 0
      %1670 = vmatpush1.bf16.msra.mxu0 0
      %1671 = vmatprep.subr.bf16.mxu0 0
      %1672 = vmatpush1.bf16.msra.mxu0 0
      %1673 = vmatprep.mubr.bf16.mxu0 0
      %1674 = vmatmul.mubr.bf16.gmra.mrb[0].mxu0 %v1636
      %v1675 = vpop.f32.mrb[0].mxu0
      %v1676 = vadd.f32 0.0, %v1675
      %v1677 = vpop.f32.mrb[0].mxu0
      %v1678 = vpop.f32.mrb[0].mxu0
      %v1679 = vpop.f32.mrb[0].mxu0
      %1680 = vdwg.mxu0
      %v1681 = vadd.f32 %v1622, %v1676
      %v1682 = vld [vmem:[%s943] sm:$0x7]
      %v1683 = vld [vmem:[%s943 + $0x4] sm:$0x7]
      %s1684 = scalar_lea.vmem %s9, 24
      %v1685 = vld [vmem:[%s1684] sm:$0x3]
      %v1687 = vsel %vm1052, %v1682, 0
      %v1690 = vsel %vm1056, %v1685, 0
      %1692 = vmatprep.subr.bf16.mxu0 0
      %1693 = vmatpush1.bf16.msra.mxu0 %v1690
      %1694 = vmatprep.subr.bf16.mxu0 0
      %1695 = vmatpush1.bf16.msra.mxu0 0
      %1696 = vmatprep.subr.bf16.mxu0 0
      %1697 = vmatpush1.bf16.msra.mxu0 0
      %1698 = vmatprep.subr.bf16.mxu0 0
      %1699 = vmatpush1.bf16.msra.mxu0 0
      %1700 = vmatprep.subr.bf16.mxu0 0
      %1701 = vmatpush1.bf16.msra.mxu0 0
      %1702 = vmatprep.subr.bf16.mxu0 0
      %1703 = vmatpush1.bf16.msra.mxu0 0
      %1704 = vmatprep.subr.bf16.mxu0 0
      %1705 = vmatpush1.bf16.msra.mxu0 0
      %1706 = vmatprep.subr.bf16.mxu0 0
      %1707 = vmatpush1.bf16.msra.mxu0 0
      %1708 = vmatprep.subr.bf16.mxu0 0
      %1709 = vmatpush1.bf16.msra.mxu0 0
      %1710 = vmatprep.subr.bf16.mxu0 0
      %1711 = vmatpush1.bf16.msra.mxu0 0
      %1712 = vmatprep.subr.bf16.mxu0 0
      %1713 = vmatpush1.bf16.msra.mxu0 0
      %1714 = vmatprep.subr.bf16.mxu0 0
      %1715 = vmatpush1.bf16.msra.mxu0 0
      %1716 = vmatprep.subr.bf16.mxu0 0
      %1717 = vmatpush1.bf16.msra.mxu0 0
      %1718 = vmatprep.subr.bf16.mxu0 0
      %1719 = vmatpush1.bf16.msra.mxu0 0
      %1720 = vmatprep.subr.bf16.mxu0 0
      %1721 = vmatpush1.bf16.msra.mxu0 0
      %1722 = vmatprep.subr.bf16.mxu0 0
      %1723 = vmatpush1.bf16.msra.mxu0 0
      %1724 = vmatprep.mubr.bf16.mxu0 0
      %1725 = vmatmul.mubr.bf16.gmra.mrb[0].mxu0 %v1687
      %v1726 = vpop.f32.mrb[0].mxu0
      %v1727 = vadd.f32 0.0, %v1726
      %v1728 = vpop.f32.mrb[0].mxu0
      %v1729 = vpop.f32.mrb[0].mxu0
      %v1730 = vpop.f32.mrb[0].mxu0
      %1731 = vdwg.mxu0
      %v1732 = vadd.f32 %v1681, %v1727
      %s1733 = scalar_lea.vmem %s9, 26
      %v1734 = vld [vmem:[%s1733] sm:$0x3]
      %v1736 = vsel %vm1052, %v1683, 0
      %v1739 = vsel %vm1056, %v1734, 0
      %1741 = vmatprep.subr.bf16.mxu0 0
      %1742 = vmatpush1.bf16.msra.mxu0 %v1739
      %1743 = vmatprep.subr.bf16.mxu0 0
      %1744 = vmatpush1.bf16.msra.mxu0 0
      %1745 = vmatprep.subr.bf16.mxu0 0
      %1746 = vmatpush1.bf16.msra.mxu0 0
      %1747 = vmatprep.subr.bf16.mxu0 0
      %1748 = vmatpush1.bf16.msra.mxu0 0
      %1749 = vmatprep.subr.bf16.mxu0 0
      %1750 = vmatpush1.bf16.msra.mxu0 0
      %1751 = vmatprep.subr.bf16.mxu0 0
      %1752 = vmatpush1.bf16.msra.mxu0 0
      %1753 = vmatprep.subr.bf16.mxu0 0
      %1754 = vmatpush1.bf16.msra.mxu0 0
      %1755 = vmatprep.subr.bf16.mxu0 0
      %1756 = vmatpush1.bf16.msra.mxu0 0
      %1757 = vmatprep.subr.bf16.mxu0 0
      %1758 = vmatpush1.bf16.msra.mxu0 0
      %1759 = vmatprep.subr.bf16.mxu0 0
      %1760 = vmatpush1.bf16.msra.mxu0 0
      %1761 = vmatprep.subr.bf16.mxu0 0
      %1762 = vmatpush1.bf16.msra.mxu0 0
      %1763 = vmatprep.subr.bf16.mxu0 0
      %1764 = vmatpush1.bf16.msra.mxu0 0
      %1765 = vmatprep.subr.bf16.mxu0 0
      %1766 = vmatpush1.bf16.msra.mxu0 0
      %1767 = vmatprep.subr.bf16.mxu0 0
      %1768 = vmatpush1.bf16.msra.mxu0 0
      %1769 = vmatprep.subr.bf16.mxu0 0
      %1770 = vmatpush1.bf16.msra.mxu0 0
      %1771 = vmatprep.subr.bf16.mxu0 0
      %1772 = vmatpush1.bf16.msra.mxu0 0
      %1773 = vmatprep.mubr.bf16.mxu0 0
      %1774 = vmatmul.mubr.bf16.gmra.mrb[0].mxu0 %v1736
      %v1775 = vpop.f32.mrb[0].mxu0
      %v1776 = vadd.f32 0.0, %v1775
      %v1777 = vpop.f32.mrb[0].mxu0
      %v1778 = vpop.f32.mrb[0].mxu0
      %v1779 = vpop.f32.mrb[0].mxu0
      %1780 = vdwg.mxu0
      %v1781 = vadd.f32 %v1732, %v1776
      %s1782 = scalar_lea.vmem %s9, 28
      %v1783 = vld [vmem:[%s1782] sm:$0x3]
      %v1785 = vunpack.c.l.b16 %v1682
      %v1786 = vpack.c.b16 %v1785, %v1785
      %v1788 = vshrl.u32 %v1786, 16
      %v1790 = vshll.u32 %v1786, 16
      %v1792 = vrot.slane %v1790, 1
      %v1793 = vor.u32 %v1788, %v1792
      %v1795 = vsel %vm1052, %v1793, 0
      %v1798 = vsel %vm1056, %v1783, 0
      %1800 = vmatprep.subr.bf16.mxu0 0
      %1801 = vmatpush1.bf16.msra.mxu0 %v1798
      %1802 = vmatprep.subr.bf16.mxu0 0
      %1803 = vmatpush1.bf16.msra.mxu0 0
      %1804 = vmatprep.subr.bf16.mxu0 0
      %1805 = vmatpush1.bf16.msra.mxu0 0
      %1806 = vmatprep.subr.bf16.mxu0 0
      %1807 = vmatpush1.bf16.msra.mxu0 0
      %1808 = vmatprep.subr.bf16.mxu0 0
      %1809 = vmatpush1.bf16.msra.mxu0 0
      %1810 = vmatprep.subr.bf16.mxu0 0
      %1811 = vmatpush1.bf16.msra.mxu0 0
      %1812 = vmatprep.subr.bf16.mxu0 0
      %1813 = vmatpush1.bf16.msra.mxu0 0
      %1814 = vmatprep.subr.bf16.mxu0 0
      %1815 = vmatpush1.bf16.msra.mxu0 0
      %1816 = vmatprep.subr.bf16.mxu0 0
      %1817 = vmatpush1.bf16.msra.mxu0 0
      %1818 = vmatprep.subr.bf16.mxu0 0
      %1819 = vmatpush1.bf16.msra.mxu0 0
      %1820 = vmatprep.subr.bf16.mxu0 0
      %1821 = vmatpush1.bf16.msra.mxu0 0
      %1822 = vmatprep.subr.bf16.mxu0 0
      %1823 = vmatpush1.bf16.msra.mxu0 0
      %1824 = vmatprep.subr.bf16.mxu0 0
      %1825 = vmatpush1.bf16.msra.mxu0 0
      %1826 = vmatprep.subr.bf16.mxu0 0
      %1827 = vmatpush1.bf16.msra.mxu0 0
      %1828 = vmatprep.subr.bf16.mxu0 0
      %1829 = vmatpush1.bf16.msra.mxu0 0
      %1830 = vmatprep.subr.bf16.mxu0 0
      %1831 = vmatpush1.bf16.msra.mxu0 0
      %1832 = vmatprep.mubr.bf16.mxu0 0
      %1833 = vmatmul.mubr.bf16.gmra.mrb[0].mxu0 %v1795
      %v1834 = vpop.f32.mrb[0].mxu0
      %v1835 = vadd.f32 0.0, %v1834
      %v1836 = vpop.f32.mrb[0].mxu0
      %v1837 = vpop.f32.mrb[0].mxu0
      %v1838 = vpop.f32.mrb[0].mxu0
      %1839 = vdwg.mxu0
      %v1840 = vadd.f32 %v1781, %v1835
      %v1841 = vld [vmem:[%s964] sm:$0x7]
      %v1842 = vld [vmem:[%s964 + $0x4] sm:$0x7]
      %s1843 = scalar_lea.vmem %s9, 30
      %v1844 = vld [vmem:[%s1843] sm:$0x3]
      %v1846 = vsel %vm1052, %v1841, 0
      %v1849 = vsel %vm1056, %v1844, 0
      %1851 = vmatprep.subr.bf16.mxu0 0
      %1852 = vmatpush1.bf16.msra.mxu0 %v1849
      %1853 = vmatprep.subr.bf16.mxu0 0
      %1854 = vmatpush1.bf16.msra.mxu0 0
      %1855 = vmatprep.subr.bf16.mxu0 0
      %1856 = vmatpush1.bf16.msra.mxu0 0
      %1857 = vmatprep.subr.bf16.mxu0 0
      %1858 = vmatpush1.bf16.msra.mxu0 0
      %1859 = vmatprep.subr.bf16.mxu0 0
      %1860 = vmatpush1.bf16.msra.mxu0 0
      %1861 = vmatprep.subr.bf16.mxu0 0
      %1862 = vmatpush1.bf16.msra.mxu0 0
      %1863 = vmatprep.subr.bf16.mxu0 0
      %1864 = vmatpush1.bf16.msra.mxu0 0
      %1865 = vmatprep.subr.bf16.mxu0 0
      %1866 = vmatpush1.bf16.msra.mxu0 0
      %1867 = vmatprep.subr.bf16.mxu0 0
      %1868 = vmatpush1.bf16.msra.mxu0 0
      %1869 = vmatprep.subr.bf16.mxu0 0
      %1870 = vmatpush1.bf16.msra.mxu0 0
      %1871 = vmatprep.subr.bf16.mxu0 0
      %1872 = vmatpush1.bf16.msra.mxu0 0
      %1873 = vmatprep.subr.bf16.mxu0 0
      %1874 = vmatpush1.bf16.msra.mxu0 0
      %1875 = vmatprep.subr.bf16.mxu0 0
      %1876 = vmatpush1.bf16.msra.mxu0 0
      %1877 = vmatprep.subr.bf16.mxu0 0
      %1878 = vmatpush1.bf16.msra.mxu0 0
      %1879 = vmatprep.subr.bf16.mxu0 0
      %1880 = vmatpush1.bf16.msra.mxu0 0
      %1881 = vmatprep.subr.bf16.mxu0 0
      %1882 = vmatpush1.bf16.msra.mxu0 0
      %1883 = vmatprep.mubr.bf16.mxu0 0
      %1884 = vmatmul.mubr.bf16.gmra.mrb[0].mxu0 %v1846
      %v1885 = vpop.f32.mrb[0].mxu0
      %v1886 = vadd.f32 0.0, %v1885
      %v1887 = vpop.f32.mrb[0].mxu0
      %v1888 = vpop.f32.mrb[0].mxu0
      %v1889 = vpop.f32.mrb[0].mxu0
      %1890 = vdwg.mxu0
      %v1891 = vadd.f32 %v1840, %v1886
      %s1892 = scalar_lea.vmem %s9, 32
      %v1893 = vld [vmem:[%s1892] sm:$0x3]
      %v1895 = vsel %vm1052, %v1842, 0
      %v1898 = vsel %vm1056, %v1893, 0
      %1900 = vmatprep.subr.bf16.mxu0 0
      %1901 = vmatpush1.bf16.msra.mxu0 %v1898
      %1902 = vmatprep.subr.bf16.mxu0 0
      %1903 = vmatpush1.bf16.msra.mxu0 0
      %1904 = vmatprep.subr.bf16.mxu0 0
      %1905 = vmatpush1.bf16.msra.mxu0 0
      %1906 = vmatprep.subr.bf16.mxu0 0
      %1907 = vmatpush1.bf16.msra.mxu0 0
      %1908 = vmatprep.subr.bf16.mxu0 0
      %1909 = vmatpush1.bf16.msra.mxu0 0
      %1910 = vmatprep.subr.bf16.mxu0 0
      %1911 = vmatpush1.bf16.msra.mxu0 0
      %1912 = vmatprep.subr.bf16.mxu0 0
      %1913 = vmatpush1.bf16.msra.mxu0 0
      %1914 = vmatprep.subr.bf16.mxu0 0
      %1915 = vmatpush1.bf16.msra.mxu0 0
      %1916 = vmatprep.subr.bf16.mxu0 0
      %1917 = vmatpush1.bf16.msra.mxu0 0
      %1918 = vmatprep.subr.bf16.mxu0 0
      %1919 = vmatpush1.bf16.msra.mxu0 0
      %1920 = vmatprep.subr.bf16.mxu0 0
      %1921 = vmatpush1.bf16.msra.mxu0 0
      %1922 = vmatprep.subr.bf16.mxu0 0
      %1923 = vmatpush1.bf16.msra.mxu0 0
      %1924 = vmatprep.subr.bf16.mxu0 0
      %1925 = vmatpush1.bf16.msra.mxu0 0
      %1926 = vmatprep.subr.bf16.mxu0 0
      %1927 = vmatpush1.bf16.msra.mxu0 0
      %1928 = vmatprep.subr.bf16.mxu0 0
      %1929 = vmatpush1.bf16.msra.mxu0 0
      %1930 = vmatprep.subr.bf16.mxu0 0
      %1931 = vmatpush1.bf16.msra.mxu0 0
      %1932 = vmatprep.mubr.bf16.mxu0 0
      %1933 = vmatmul.mubr.bf16.gmra.mrb[0].mxu0 %v1895
      %v1934 = vpop.f32.mrb[0].mxu0
      %v1935 = vadd.f32 0.0, %v1934
      %v1936 = vpop.f32.mrb[0].mxu0
      %v1937 = vpop.f32.mrb[0].mxu0
      %v1938 = vpop.f32.mrb[0].mxu0
      %1939 = vdwg.mxu0
      %v1940 = vadd.f32 %v1891, %v1935
      %s1941 = scalar_lea.vmem %s9, 34
      %v1942 = vld [vmem:[%s1941] sm:$0x3]
      %v1944 = vunpack.c.l.b16 %v1841
      %v1945 = vpack.c.b16 %v1944, %v1944
      %v1947 = vshrl.u32 %v1945, 16
      %v1949 = vshll.u32 %v1945, 16
      %v1951 = vrot.slane %v1949, 1
      %v1952 = vor.u32 %v1947, %v1951
      %v1954 = vsel %vm1052, %v1952, 0
      %v1957 = vsel %vm1056, %v1942, 0
      %1959 = vmatprep.subr.bf16.mxu0 0
      %1960 = vmatpush1.bf16.msra.mxu0 %v1957
      %1961 = vmatprep.subr.bf16.mxu0 0
      %1962 = vmatpush1.bf16.msra.mxu0 0
      %1963 = vmatprep.subr.bf16.mxu0 0
      %1964 = vmatpush1.bf16.msra.mxu0 0
      %1965 = vmatprep.subr.bf16.mxu0 0
      %1966 = vmatpush1.bf16.msra.mxu0 0
      %1967 = vmatprep.subr.bf16.mxu0 0
      %1968 = vmatpush1.bf16.msra.mxu0 0
      %1969 = vmatprep.subr.bf16.mxu0 0
      %1970 = vmatpush1.bf16.msra.mxu0 0
      %1971 = vmatprep.subr.bf16.mxu0 0
      %1972 = vmatpush1.bf16.msra.mxu0 0
      %1973 = vmatprep.subr.bf16.mxu0 0
      %1974 = vmatpush1.bf16.msra.mxu0 0
      %1975 = vmatprep.subr.bf16.mxu0 0
      %1976 = vmatpush1.bf16.msra.mxu0 0
      %1977 = vmatprep.subr.bf16.mxu0 0
      %1978 = vmatpush1.bf16.msra.mxu0 0
      %1979 = vmatprep.subr.bf16.mxu0 0
      %1980 = vmatpush1.bf16.msra.mxu0 0
      %1981 = vmatprep.subr.bf16.mxu0 0
      %1982 = vmatpush1.bf16.msra.mxu0 0
      %1983 = vmatprep.subr.bf16.mxu0 0
      %1984 = vmatpush1.bf16.msra.mxu0 0
      %1985 = vmatprep.subr.bf16.mxu0 0
      %1986 = vmatpush1.bf16.msra.mxu0 0
      %1987 = vmatprep.subr.bf16.mxu0 0
      %1988 = vmatpush1.bf16.msra.mxu0 0
      %1989 = vmatprep.subr.bf16.mxu0 0
      %1990 = vmatpush1.bf16.msra.mxu0 0
      %1991 = vmatprep.mubr.bf16.mxu0 0
      %1992 = vmatmul.mubr.bf16.gmra.mrb[0].mxu0 %v1954
      %v1993 = vpop.f32.mrb[0].mxu0
      %v1994 = vadd.f32 0.0, %v1993
      %v1995 = vpop.f32.mrb[0].mxu0
      %v1996 = vpop.f32.mrb[0].mxu0
      %v1997 = vpop.f32.mrb[0].mxu0
      %1998 = vdwg.mxu0
      %v1999 = vadd.f32 %v1940, %v1994
      %v2000 = vld [vmem:[%s984] sm:$0x7]
      %v2001 = vld [vmem:[%s984 + $0x4] sm:$0x7]
      %s2002 = scalar_lea.vmem %s9, 36
      %v2003 = vld [vmem:[%s2002] sm:$0x3]
      %v2005 = vsel %vm1052, %v2000, 0
      %v2008 = vsel %vm1056, %v2003, 0
      %2010 = vmatprep.subr.bf16.mxu0 0
      %2011 = vmatpush1.bf16.msra.mxu0 %v2008
      %2012 = vmatprep.subr.bf16.mxu0 0
      %2013 = vmatpush1.bf16.msra.mxu0 0
      %2014 = vmatprep.subr.bf16.mxu0 0
      %2015 = vmatpush1.bf16.msra.mxu0 0
      %2016 = vmatprep.subr.bf16.mxu0 0
      %2017 = vmatpush1.bf16.msra.mxu0 0
      %2018 = vmatprep.subr.bf16.mxu0 0
      %2019 = vmatpush1.bf16.msra.mxu0 0
      %2020 = vmatprep.subr.bf16.mxu0 0
      %2021 = vmatpush1.bf16.msra.mxu0 0
      %2022 = vmatprep.subr.bf16.mxu0 0
      %2023 = vmatpush1.bf16.msra.mxu0 0
      %2024 = vmatprep.subr.bf16.mxu0 0
      %2025 = vmatpush1.bf16.msra.mxu0 0
      %2026 = vmatprep.subr.bf16.mxu0 0
      %2027 = vmatpush1.bf16.msra.mxu0 0
      %2028 = vmatprep.subr.bf16.mxu0 0
      %2029 = vmatpush1.bf16.msra.mxu0 0
      %2030 = vmatprep.subr.bf16.mxu0 0
      %2031 = vmatpush1.bf16.msra.mxu0 0
      %2032 = vmatprep.subr.bf16.mxu0 0
      %2033 = vmatpush1.bf16.msra.mxu0 0
      %2034 = vmatprep.subr.bf16.mxu0 0
      %2035 = vmatpush1.bf16.msra.mxu0 0
      %2036 = vmatprep.subr.bf16.mxu0 0
      %2037 = vmatpush1.bf16.msra.mxu0 0
      %2038 = vmatprep.subr.bf16.mxu0 0
      %2039 = vmatpush1.bf16.msra.mxu0 0
      %2040 = vmatprep.subr.bf16.mxu0 0
      %2041 = vmatpush1.bf16.msra.mxu0 0
      %2042 = vmatprep.mubr.bf16.mxu0 0
      %2043 = vmatmul.mubr.bf16.gmra.mrb[0].mxu0 %v2005
      %v2044 = vpop.f32.mrb[0].mxu0
      %v2045 = vadd.f32 0.0, %v2044
      %v2046 = vpop.f32.mrb[0].mxu0
      %v2047 = vpop.f32.mrb[0].mxu0
      %v2048 = vpop.f32.mrb[0].mxu0
      %2049 = vdwg.mxu0
      %v2050 = vadd.f32 %v1999, %v2045
      %s2051 = scalar_lea.vmem %s9, 38
      %v2052 = vld [vmem:[%s2051] sm:$0x3]
      %v2054 = vsel %vm1052, %v2001, 0
      %v2057 = vsel %vm1056, %v2052, 0
      %2059 = vmatprep.subr.bf16.mxu0 0
      %2060 = vmatpush1.bf16.msra.mxu0 %v2057
      %2061 = vmatprep.subr.bf16.mxu0 0
      %2062 = vmatpush1.bf16.msra.mxu0 0
      %2063 = vmatprep.subr.bf16.mxu0 0
      %2064 = vmatpush1.bf16.msra.mxu0 0
      %2065 = vmatprep.subr.bf16.mxu0 0
      %2066 = vmatpush1.bf16.msra.mxu0 0
      %2067 = vmatprep.subr.bf16.mxu0 0
      %2068 = vmatpush1.bf16.msra.mxu0 0
      %2069 = vmatprep.subr.bf16.mxu0 0
      %2070 = vmatpush1.bf16.msra.mxu0 0
      %2071 = vmatprep.subr.bf16.mxu0 0
      %2072 = vmatpush1.bf16.msra.mxu0 0
      %2073 = vmatprep.subr.bf16.mxu0 0
      %2074 = vmatpush1.bf16.msra.mxu0 0
      %2075 = vmatprep.subr.bf16.mxu0 0
      %2076 = vmatpush1.bf16.msra.mxu0 0
      %2077 = vmatprep.subr.bf16.mxu0 0
      %2078 = vmatpush1.bf16.msra.mxu0 0
      %2079 = vmatprep.subr.bf16.mxu0 0
      %2080 = vmatpush1.bf16.msra.mxu0 0
      %2081 = vmatprep.subr.bf16.mxu0 0
      %2082 = vmatpush1.bf16.msra.mxu0 0
      %2083 = vmatprep.subr.bf16.mxu0 0
      %2084 = vmatpush1.bf16.msra.mxu0 0
      %2085 = vmatprep.subr.bf16.mxu0 0
      %2086 = vmatpush1.bf16.msra.mxu0 0
      %2087 = vmatprep.subr.bf16.mxu0 0
      %2088 = vmatpush1.bf16.msra.mxu0 0
      %2089 = vmatprep.subr.bf16.mxu0 0
      %2090 = vmatpush1.bf16.msra.mxu0 0
      %2091 = vmatprep.mubr.bf16.mxu0 0
      %2092 = vmatmul.mubr.bf16.gmra.mrb[0].mxu0 %v2054
      %v2093 = vpop.f32.mrb[0].mxu0
      %v2094 = vadd.f32 0.0, %v2093
      %v2095 = vpop.f32.mrb[0].mxu0
      %v2096 = vpop.f32.mrb[0].mxu0
      %v2097 = vpop.f32.mrb[0].mxu0
      %2098 = vdwg.mxu0
      %v2099 = vadd.f32 %v2050, %v2094
      %s2100 = scalar_lea.vmem %s9, 40
      %v2101 = vld [vmem:[%s2100] sm:$0x3]
      %v2103 = vunpack.c.l.b16 %v2000
      %v2104 = vpack.c.b16 %v2103, %v2103
      %v2106 = vshrl.u32 %v2104, 16
      %v2108 = vshll.u32 %v2104, 16
      %v2110 = vrot.slane %v2108, 1
      %v2111 = vor.u32 %v2106, %v2110
      %v2113 = vsel %vm1052, %v2111, 0
      %v2116 = vsel %vm1056, %v2101, 0
      %2118 = vmatprep.subr.bf16.mxu0 0
      %2119 = vmatpush1.bf16.msra.mxu0 %v2116
      %2120 = vmatprep.subr.bf16.mxu0 0
      %2121 = vmatpush1.bf16.msra.mxu0 0
      %2122 = vmatprep.subr.bf16.mxu0 0
      %2123 = vmatpush1.bf16.msra.mxu0 0
      %2124 = vmatprep.subr.bf16.mxu0 0
      %2125 = vmatpush1.bf16.msra.mxu0 0
      %2126 = vmatprep.subr.bf16.mxu0 0
      %2127 = vmatpush1.bf16.msra.mxu0 0
      %2128 = vmatprep.subr.bf16.mxu0 0
      %2129 = vmatpush1.bf16.msra.mxu0 0
      %2130 = vmatprep.subr.bf16.mxu0 0
      %2131 = vmatpush1.bf16.msra.mxu0 0
      %2132 = vmatprep.subr.bf16.mxu0 0
      %2133 = vmatpush1.bf16.msra.mxu0 0
      %2134 = vmatprep.subr.bf16.mxu0 0
      %2135 = vmatpush1.bf16.msra.mxu0 0
      %2136 = vmatprep.subr.bf16.mxu0 0
      %2137 = vmatpush1.bf16.msra.mxu0 0
      %2138 = vmatprep.subr.bf16.mxu0 0
      %2139 = vmatpush1.bf16.msra.mxu0 0
      %2140 = vmatprep.subr.bf16.mxu0 0
      %2141 = vmatpush1.bf16.msra.mxu0 0
      %2142 = vmatprep.subr.bf16.mxu0 0
      %2143 = vmatpush1.bf16.msra.mxu0 0
      %2144 = vmatprep.subr.bf16.mxu0 0
      %2145 = vmatpush1.bf16.msra.mxu0 0
      %2146 = vmatprep.subr.bf16.mxu0 0
      %2147 = vmatpush1.bf16.msra.mxu0 0
      %2148 = vmatprep.subr.bf16.mxu0 0
      %2149 = vmatpush1.bf16.msra.mxu0 0
      %2150 = vmatprep.mubr.bf16.mxu0 0
      %2151 = vmatmul.mubr.bf16.gmra.mrb[0].mxu0 %v2113
      %v2152 = vpop.f32.mrb[0].mxu0
      %v2153 = vadd.f32 0.0, %v2152
      %v2154 = vpop.f32.mrb[0].mxu0
      %v2155 = vpop.f32.mrb[0].mxu0
      %v2156 = vpop.f32.mrb[0].mxu0
      %2157 = vdwg.mxu0
      %v2158 = vadd.f32 %v2099, %v2153
      %v2159 = vld [vmem:[%s1004] sm:$0x7]
      %v2160 = vld [vmem:[%s1004 + $0x4] sm:$0x7]
      %s2161 = scalar_lea.vmem %s9, 42
      %v2162 = vld [vmem:[%s2161] sm:$0x3]
      %v2164 = vsel %vm1052, %v2159, 0
      %v2167 = vsel %vm1056, %v2162, 0
      %2169 = vmatprep.subr.bf16.mxu0 0
      %2170 = vmatpush1.bf16.msra.mxu0 %v2167
      %2171 = vmatprep.subr.bf16.mxu0 0
      %2172 = vmatpush1.bf16.msra.mxu0 0
      %2173 = vmatprep.subr.bf16.mxu0 0
      %2174 = vmatpush1.bf16.msra.mxu0 0
      %2175 = vmatprep.subr.bf16.mxu0 0
      %2176 = vmatpush1.bf16.msra.mxu0 0
      %2177 = vmatprep.subr.bf16.mxu0 0
      %2178 = vmatpush1.bf16.msra.mxu0 0
      %2179 = vmatprep.subr.bf16.mxu0 0
      %2180 = vmatpush1.bf16.msra.mxu0 0
      %2181 = vmatprep.subr.bf16.mxu0 0
      %2182 = vmatpush1.bf16.msra.mxu0 0
      %2183 = vmatprep.subr.bf16.mxu0 0
      %2184 = vmatpush1.bf16.msra.mxu0 0
      %2185 = vmatprep.subr.bf16.mxu0 0
      %2186 = vmatpush1.bf16.msra.mxu0 0
      %2187 = vmatprep.subr.bf16.mxu0 0
      %2188 = vmatpush1.bf16.msra.mxu0 0
      %2189 = vmatprep.subr.bf16.mxu0 0
      %2190 = vmatpush1.bf16.msra.mxu0 0
      %2191 = vmatprep.subr.bf16.mxu0 0
      %2192 = vmatpush1.bf16.msra.mxu0 0
      %2193 = vmatprep.subr.bf16.mxu0 0
      %2194 = vmatpush1.bf16.msra.mxu0 0
      %2195 = vmatprep.subr.bf16.mxu0 0
      %2196 = vmatpush1.bf16.msra.mxu0 0
      %2197 = vmatprep.subr.bf16.mxu0 0
      %2198 = vmatpush1.bf16.msra.mxu0 0
      %2199 = vmatprep.subr.bf16.mxu0 0
      %2200 = vmatpush1.bf16.msra.mxu0 0
      %2201 = vmatprep.mubr.bf16.mxu0 0
      %2202 = vmatmul.mubr.bf16.gmra.mrb[0].mxu0 %v2164
      %v2203 = vpop.f32.mrb[0].mxu0
      %v2204 = vadd.f32 0.0, %v2203
      %v2205 = vpop.f32.mrb[0].mxu0
      %v2206 = vpop.f32.mrb[0].mxu0
      %v2207 = vpop.f32.mrb[0].mxu0
      %2208 = vdwg.mxu0
      %v2209 = vadd.f32 %v2158, %v2204
      %s2210 = scalar_lea.vmem %s9, 44
      %v2211 = vld [vmem:[%s2210] sm:$0x3]
      %v2213 = vsel %vm1052, %v2160, 0
      %v2216 = vsel %vm1056, %v2211, 0
      %2218 = vmatprep.subr.bf16.mxu0 0
      %2219 = vmatpush1.bf16.msra.mxu0 %v2216
      %2220 = vmatprep.subr.bf16.mxu0 0
      %2221 = vmatpush1.bf16.msra.mxu0 0
      %2222 = vmatprep.subr.bf16.mxu0 0
      %2223 = vmatpush1.bf16.msra.mxu0 0
      %2224 = vmatprep.subr.bf16.mxu0 0
      %2225 = vmatpush1.bf16.msra.mxu0 0
      %2226 = vmatprep.subr.bf16.mxu0 0
      %2227 = vmatpush1.bf16.msra.mxu0 0
      %2228 = vmatprep.subr.bf16.mxu0 0
      %2229 = vmatpush1.bf16.msra.mxu0 0
      %2230 = vmatprep.subr.bf16.mxu0 0
      %2231 = vmatpush1.bf16.msra.mxu0 0
      %2232 = vmatprep.subr.bf16.mxu0 0
      %2233 = vmatpush1.bf16.msra.mxu0 0
      %2234 = vmatprep.subr.bf16.mxu0 0
      %2235 = vmatpush1.bf16.msra.mxu0 0
      %2236 = vmatprep.subr.bf16.mxu0 0
      %2237 = vmatpush1.bf16.msra.mxu0 0
      %2238 = vmatprep.subr.bf16.mxu0 0
      %2239 = vmatpush1.bf16.msra.mxu0 0
      %2240 = vmatprep.subr.bf16.mxu0 0
      %2241 = vmatpush1.bf16.msra.mxu0 0
      %2242 = vmatprep.subr.bf16.mxu0 0
      %2243 = vmatpush1.bf16.msra.mxu0 0
      %2244 = vmatprep.subr.bf16.mxu0 0
      %2245 = vmatpush1.bf16.msra.mxu0 0
      %2246 = vmatprep.subr.bf16.mxu0 0
      %2247 = vmatpush1.bf16.msra.mxu0 0
      %2248 = vmatprep.subr.bf16.mxu0 0
      %2249 = vmatpush1.bf16.msra.mxu0 0
      %2250 = vmatprep.mubr.bf16.mxu0 0
      %2251 = vmatmul.mubr.bf16.gmra.mrb[0].mxu0 %v2213
      %v2252 = vpop.f32.mrb[0].mxu0
      %v2253 = vadd.f32 0.0, %v2252
      %v2254 = vpop.f32.mrb[0].mxu0
      %v2255 = vpop.f32.mrb[0].mxu0
      %v2256 = vpop.f32.mrb[0].mxu0
      %2257 = vdwg.mxu0
      %v2258 = vadd.f32 %v2209, %v2253
      %s2259 = scalar_lea.vmem %s9, 46
      %v2260 = vld [vmem:[%s2259] sm:$0x3]
      %v2262 = vunpack.c.l.b16 %v2159
      %v2263 = vpack.c.b16 %v2262, %v2262
      %v2265 = vshrl.u32 %v2263, 16
      %v2267 = vshll.u32 %v2263, 16
      %v2269 = vrot.slane %v2267, 1
      %v2270 = vor.u32 %v2265, %v2269
      %v2272 = vsel %vm1052, %v2270, 0
      %v2275 = vsel %vm1056, %v2260, 0
      %2277 = vmatprep.subr.bf16.mxu0 0
      %2278 = vmatpush1.bf16.msra.mxu0 %v2275
      %2279 = vmatprep.subr.bf16.mxu0 0
      %2280 = vmatpush1.bf16.msra.mxu0 0
      %2281 = vmatprep.subr.bf16.mxu0 0
      %2282 = vmatpush1.bf16.msra.mxu0 0
      %2283 = vmatprep.subr.bf16.mxu0 0
      %2284 = vmatpush1.bf16.msra.mxu0 0
      %2285 = vmatprep.subr.bf16.mxu0 0
      %2286 = vmatpush1.bf16.msra.mxu0 0
      %2287 = vmatprep.subr.bf16.mxu0 0
      %2288 = vmatpush1.bf16.msra.mxu0 0
      %2289 = vmatprep.subr.bf16.mxu0 0
      %2290 = vmatpush1.bf16.msra.mxu0 0
      %2291 = vmatprep.subr.bf16.mxu0 0
      %2292 = vmatpush1.bf16.msra.mxu0 0
      %2293 = vmatprep.subr.bf16.mxu0 0
      %2294 = vmatpush1.bf16.msra.mxu0 0
      %2295 = vmatprep.subr.bf16.mxu0 0
      %2296 = vmatpush1.bf16.msra.mxu0 0
      %2297 = vmatprep.subr.bf16.mxu0 0
      %2298 = vmatpush1.bf16.msra.mxu0 0
      %2299 = vmatprep.subr.bf16.mxu0 0
      %2300 = vmatpush1.bf16.msra.mxu0 0
      %2301 = vmatprep.subr.bf16.mxu0 0
      %2302 = vmatpush1.bf16.msra.mxu0 0
      %2303 = vmatprep.subr.bf16.mxu0 0
      %2304 = vmatpush1.bf16.msra.mxu0 0
      %2305 = vmatprep.subr.bf16.mxu0 0
      %2306 = vmatpush1.bf16.msra.mxu0 0
      %2307 = vmatprep.subr.bf16.mxu0 0
      %2308 = vmatpush1.bf16.msra.mxu0 0
      %2309 = vmatprep.mubr.bf16.mxu0 0
      %2310 = vmatmul.mubr.bf16.gmra.mrb[0].mxu0 %v2272
      %v2311 = vpop.f32.mrb[0].mxu0
      %v2312 = vadd.f32 0.0, %v2311
      %v2313 = vpop.f32.mrb[0].mxu0
      %v2314 = vpop.f32.mrb[0].mxu0
      %v2315 = vpop.f32.mrb[0].mxu0
      %2316 = vdwg.mxu0
      %v2317 = vadd.f32 %v2258, %v2312
      %v2318 = vld [vmem:[%s1025] sm:$0x7]
      %v2319 = vld [vmem:[%s1025 + $0x4] sm:$0x7]
      %s2320 = scalar_lea.vmem %s9, 48
      %v2321 = vld [vmem:[%s2320] sm:$0x3]
      %v2323 = vsel %vm1052, %v2318, 0
      %v2326 = vsel %vm1056, %v2321, 0
      %2328 = vmatprep.subr.bf16.mxu0 0
      %2329 = vmatpush1.bf16.msra.mxu0 %v2326
      %2330 = vmatprep.subr.bf16.mxu0 0
      %2331 = vmatpush1.bf16.msra.mxu0 0
      %2332 = vmatprep.subr.bf16.mxu0 0
      %2333 = vmatpush1.bf16.msra.mxu0 0
      %2334 = vmatprep.subr.bf16.mxu0 0
      %2335 = vmatpush1.bf16.msra.mxu0 0
      %2336 = vmatprep.subr.bf16.mxu0 0
      %2337 = vmatpush1.bf16.msra.mxu0 0
      %2338 = vmatprep.subr.bf16.mxu0 0
      %2339 = vmatpush1.bf16.msra.mxu0 0
      %2340 = vmatprep.subr.bf16.mxu0 0
      %2341 = vmatpush1.bf16.msra.mxu0 0
      %2342 = vmatprep.subr.bf16.mxu0 0
      %2343 = vmatpush1.bf16.msra.mxu0 0
      %2344 = vmatprep.subr.bf16.mxu0 0
      %2345 = vmatpush1.bf16.msra.mxu0 0
      %2346 = vmatprep.subr.bf16.mxu0 0
      %2347 = vmatpush1.bf16.msra.mxu0 0
      %2348 = vmatprep.subr.bf16.mxu0 0
      %2349 = vmatpush1.bf16.msra.mxu0 0
      %2350 = vmatprep.subr.bf16.mxu0 0
      %2351 = vmatpush1.bf16.msra.mxu0 0
      %2352 = vmatprep.subr.bf16.mxu0 0
      %2353 = vmatpush1.bf16.msra.mxu0 0
      %2354 = vmatprep.subr.bf16.mxu0 0
      %2355 = vmatpush1.bf16.msra.mxu0 0
      %2356 = vmatprep.subr.bf16.mxu0 0
      %2357 = vmatpush1.bf16.msra.mxu0 0
      %2358 = vmatprep.subr.bf16.mxu0 0
      %2359 = vmatpush1.bf16.msra.mxu0 0
      %2360 = vmatprep.mubr.bf16.mxu0 0
      %2361 = vmatmul.mubr.bf16.gmra.mrb[0].mxu0 %v2323
      %v2362 = vpop.f32.mrb[0].mxu0
      %v2363 = vadd.f32 0.0, %v2362
      %v2364 = vpop.f32.mrb[0].mxu0
      %v2365 = vpop.f32.mrb[0].mxu0
      %v2366 = vpop.f32.mrb[0].mxu0
      %2367 = vdwg.mxu0
      %v2368 = vadd.f32 %v2317, %v2363
      %s2369 = scalar_lea.vmem %s9, 50
      %v2370 = vld [vmem:[%s2369] sm:$0x3]
      %v2372 = vsel %vm1052, %v2319, 0
      %v2375 = vsel %vm1056, %v2370, 0
      %2377 = vmatprep.subr.bf16.mxu0 0
      %2378 = vmatpush1.bf16.msra.mxu0 %v2375
      %2379 = vmatprep.subr.bf16.mxu0 0
      %2380 = vmatpush1.bf16.msra.mxu0 0
      %2381 = vmatprep.subr.bf16.mxu0 0
      %2382 = vmatpush1.bf16.msra.mxu0 0
      %2383 = vmatprep.subr.bf16.mxu0 0
      %2384 = vmatpush1.bf16.msra.mxu0 0
      %2385 = vmatprep.subr.bf16.mxu0 0
      %2386 = vmatpush1.bf16.msra.mxu0 0
      %2387 = vmatprep.subr.bf16.mxu0 0
      %2388 = vmatpush1.bf16.msra.mxu0 0
      %2389 = vmatprep.subr.bf16.mxu0 0
      %2390 = vmatpush1.bf16.msra.mxu0 0
      %2391 = vmatprep.subr.bf16.mxu0 0
      %2392 = vmatpush1.bf16.msra.mxu0 0
      %2393 = vmatprep.subr.bf16.mxu0 0
      %2394 = vmatpush1.bf16.msra.mxu0 0
      %2395 = vmatprep.subr.bf16.mxu0 0
      %2396 = vmatpush1.bf16.msra.mxu0 0
      %2397 = vmatprep.subr.bf16.mxu0 0
      %2398 = vmatpush1.bf16.msra.mxu0 0
      %2399 = vmatprep.subr.bf16.mxu0 0
      %2400 = vmatpush1.bf16.msra.mxu0 0
      %2401 = vmatprep.subr.bf16.mxu0 0
      %2402 = vmatpush1.bf16.msra.mxu0 0
      %2403 = vmatprep.subr.bf16.mxu0 0
      %2404 = vmatpush1.bf16.msra.mxu0 0
      %2405 = vmatprep.subr.bf16.mxu0 0
      %2406 = vmatpush1.bf16.msra.mxu0 0
      %2407 = vmatprep.subr.bf16.mxu0 0
      %2408 = vmatpush1.bf16.msra.mxu0 0
      %2409 = vmatprep.mubr.bf16.mxu0 0
      %2410 = vmatmul.mubr.bf16.gmra.mrb[0].mxu0 %v2372
      %v2411 = vpop.f32.mrb[0].mxu0
      %v2412 = vadd.f32 0.0, %v2411
      %v2413 = vpop.f32.mrb[0].mxu0
      %v2414 = vpop.f32.mrb[0].mxu0
      %v2415 = vpop.f32.mrb[0].mxu0
      %2416 = vdwg.mxu0
      %v2417 = vadd.f32 %v2368, %v2412
      %s2418 = scalar_lea.vmem %s9, 52
      %v2419 = vld [vmem:[%s2418] sm:$0x3]
      %v2421 = vunpack.c.l.b16 %v2318
      %v2422 = vpack.c.b16 %v2421, %v2421
      %v2424 = vshrl.u32 %v2422, 16
      %v2426 = vshll.u32 %v2422, 16
      %v2428 = vrot.slane %v2426, 1
      %v2429 = vor.u32 %v2424, %v2428
      %v2431 = vsel %vm1052, %v2429, 0
      %v2434 = vsel %vm1056, %v2419, 0
      %2436 = vmatprep.subr.bf16.mxu0 0
      %2437 = vmatpush1.bf16.msra.mxu0 %v2434
      %2438 = vmatprep.subr.bf16.mxu0 0
      %2439 = vmatpush1.bf16.msra.mxu0 0
      %2440 = vmatprep.subr.bf16.mxu0 0
      %2441 = vmatpush1.bf16.msra.mxu0 0
      %2442 = vmatprep.subr.bf16.mxu0 0
      %2443 = vmatpush1.bf16.msra.mxu0 0
      %2444 = vmatprep.subr.bf16.mxu0 0
      %2445 = vmatpush1.bf16.msra.mxu0 0
      %2446 = vmatprep.subr.bf16.mxu0 0
      %2447 = vmatpush1.bf16.msra.mxu0 0
      %2448 = vmatprep.subr.bf16.mxu0 0
      %2449 = vmatpush1.bf16.msra.mxu0 0
      %2450 = vmatprep.subr.bf16.mxu0 0
      %2451 = vmatpush1.bf16.msra.mxu0 0
      %2452 = vmatprep.subr.bf16.mxu0 0
      %2453 = vmatpush1.bf16.msra.mxu0 0
      %2454 = vmatprep.subr.bf16.mxu0 0
      %2455 = vmatpush1.bf16.msra.mxu0 0
      %2456 = vmatprep.subr.bf16.mxu0 0
      %2457 = vmatpush1.bf16.msra.mxu0 0
      %2458 = vmatprep.subr.bf16.mxu0 0
      %2459 = vmatpush1.bf16.msra.mxu0 0
      %2460 = vmatprep.subr.bf16.mxu0 0
      %2461 = vmatpush1.bf16.msra.mxu0 0
      %2462 = vmatprep.subr.bf16.mxu0 0
      %2463 = vmatpush1.bf16.msra.mxu0 0
      %2464 = vmatprep.subr.bf16.mxu0 0
      %2465 = vmatpush1.bf16.msra.mxu0 0
      %2466 = vmatprep.subr.bf16.mxu0 0
      %2467 = vmatpush1.bf16.msra.mxu0 0
      %2468 = vmatprep.mubr.bf16.mxu0 0
      %2469 = vmatmul.mubr.bf16.gmra.mrb[0].mxu0 %v2431
      %v2470 = vpop.f32.mrb[0].mxu0
      %v2471 = vadd.f32 0.0, %v2470
      %v2472 = vpop.f32.mrb[0].mxu0
      %v2473 = vpop.f32.mrb[0].mxu0
      %v2474 = vpop.f32.mrb[0].mxu0
      %2475 = vdwg.mxu0
      %v2476 = vadd.f32 %v2417, %v2471
      %v2477 = vld [vmem:[%s10] sm:$0x1]
      %v2479 = vlaneseq
      %v2480 = vshrl.u32 %v2479, 7
      %v2481 = vsub.s32 0, %v2480
      %v2482 = vrot.slane %v2477, %v2481
      %v2484 = vadd.f32 %v2476, %v2482
      %vm2485 = vcmp.ge.f32.partialorder %v2484, 0.0
      %v2486 = vmul.f32 %v2484, 0.1
      %v2487 = vsel %vm2485, %v2484, %v2486
      %v2488 = vpack.c.bf16 %v2487, %v2487
      %vm2489 = vcmask 58368
      %2490 = vst.msk [vmem:[%s1041] sm:$0x3] %vm2489, %v2488
      %s2491 = smul.u32 %s27, 16
      %s2492 = smul.u32 %s28, 4
      %s2493 = sadd.s32 %s2491, %s2492
      %s2494 = sadd.s32 %s2493, %s29
      %p2495 = scmp.lt.s32.totalorder %s2494, 31
      %s2496 = scalar_select %p2495, %s2494, 31
      %s2497 = smul.addr %s2496, 2
      %s2498 = scalar_lea.vmem %s11, %s2497
      // Predicated region
      $region65: #{stride_conv3d_block.1} parent=63 // pred_check
        %p2499 = pneg %p475
      $region66: #{stride_conv3d_block.1} parent=63 // pred_check_branch
        %2501 = sbr.rel (%p2499) target = $region68
      $region67: #{stride_conv3d_block.1} parent=63 // pred_region
        %s2502 = smul.u32 %s27, 16
        %s2503 = smul.u32 %s28, 4
        %s2504 = sadd.s32 %s2502, %s2503
        %s2505 = sadd.s32 %s2504, %s29
      $region68: #{stride_conv3d_block.1} parent=63 // pred_fallthru
        _
    $region64: #{stride_conv3d_block.1} parent=5 // pred_fallthru
      _
    %p2506 = scmp.le.s32.totalorder 2, %s17
    // Predicated region
    $region69: #{stride_conv3d_block.1} parent=5 // pred_check
      %p2507 = pneg %p2506
    $region70: #{stride_conv3d_block.1} parent=5 // pred_check_branch
      %2509 = sbr.rel (%p2507) target = $region72
    $region71: #{stride_conv3d_block.1} parent=5 // pred_region
      %s2510 = ssub.s32 %s17, 2
      // Predicated region
      $region73: #{stride_conv3d_block.1} parent=71 // pred_check
        %p2511 = pneg %p481
      $region74: #{stride_conv3d_block.1} parent=71 // pred_check_branch
        %2513 = sbr.rel (%p2511) target = $region76
      $region75: #{stride_conv3d_block.1} parent=71 // pred_region
        %s2514 = smul.u32 %s30, 16
        %s2515 = smul.u32 %s31, 4
        %s2516 = sadd.s32 %s2514, %s2515
        %s2517 = sadd.s32 %s2516, %s32
        %p2518 = scmp.lt.s32.totalorder %s2517, 31
        %s2519 = scalar_select %p2518, %s2517, 31
        %s2520 = smul.addr %s2519, 2
        %s2521 = scalar_lea.vmem %s11, %s2520
      $region76: #{stride_conv3d_block.1} parent=71 // pred_fallthru
        _
    $region72: #{stride_conv3d_block.1} parent=5 // pred_fallthru
      _
  $region6: #{stride_conv3d_block.1} parent=0 // loop_footer
    %s21 = sadd.s32 1, %s17
  $region7: #{stride_conv3d_block.1} parent=0 // loop_footer_branch
    %16 = sbr.rel target = $region3
  $region8: #{stride_conv3d_block.1} parent=0 // loop_exit
    _

</llo_original>
